<compile_context>
chip_gen: v7x
topology: tpu7x:2x2x1
jax: 0.10.0
libtpu: 0.0.40
codegen_flags: <defaults>
</compile_context>

<pallas_src>
import functools
import math

import jax
import jax.numpy as jnp
from jax.experimental import pallas as pl
from jax.experimental.pallas import tpu as pltpu

LEAKY_SLOPE = 0.2
BN_EPS = 1e-5


def _round_up(x, m):
    return ((x + m - 1) // m) * m


def _sublane(dtype):
    # rows per native sublane tile for this dtype (8 for 4-byte, 16 for 2-byte)
    return 8 * (4 // jnp.dtype(dtype).itemsize)


def _pick_row_tile(H, W, N, sublane, target_rows=512, min_steps=4):
    """Largest divisor TH of H s.t. the per-tile slab start stays sublane-aligned,
    the tile is not too big, and the grid has a few (pipelinable) steps."""
    cands = [th for th in range(1, H + 1)
             if H % th == 0
             and (th * (W + 2)) % sublane == 0
             and th * W <= target_rows]
    if not cands:
        return H                       # whole image per step (block == full dims)
    good = [th for th in cands if N * (H // th) >= min_steps]
    return max(good) if good else max(cands)


# ---------------------------------------------------------------------------
# In-kernel conv tile: 9 shifted-tap matmuls over the resident padded image.
# ---------------------------------------------------------------------------
def _conv_tile(x_ref, w_ref, *, TH, W, ntr, sublane):
    """f32 conv slab (TP, C4p) for grid step (n, r).

    Slab row q maps to padded-width coords (y_local, x') = (q // (W+2), q % (W+2));
    columns x' in [W, W+2) are junk (masked in stats, dropped in the wrapper)."""
    WP = W + 2
    TP = TH * WP
    SLAB = TP + 2 * WP + 2                       # covers all 9 tap shifts
    if ntr == 1:
        base = 0
    else:
        base = pl.multiple_of(pl.program_id(1) * TP, sublane)
    slab = x_ref[pl.ds(base, SLAB), :]           # (SLAB, Cin) compute dtype
    acc = None
    for dy in range(3):
        for dx in range(3):
            off = dy * WP + dx
            xt = slab[off:off + TP, :]           # (TP, Cin) shifted tap view
            p = jnp.dot(xt, w_ref[3 * dy + dx],
                        preferred_element_type=jnp.float32)
            acc = p if acc is None else acc + p
    return acc                                    # (TP, C4p) f32


# ---------------------------------------------------------------------------
# Pass 1: BN partial statistics only (conv never leaves the chip).
# ---------------------------------------------------------------------------
def _stats_kernel(x_ref, w_ref, mask_ref, st_ref, *, TH, W, ntr, sublane):
    conv = _conv_tile(x_ref, w_ref, TH=TH, W=W, ntr=ntr, sublane=sublane)
    valid = mask_ref[...]                                 # (TP, 1), 1.0 on real pixels
    cnt = float(TH * W)
    s = jnp.sum(conv * valid, axis=0, keepdims=True)      # (1, C4p) per-tile sum
    d = (conv - s * (1.0 / cnt)) * valid
    m2 = jnp.sum(d * d, axis=0, keepdims=True)            # centered 2nd moment
    st_ref[0:1, :] = s
    st_ref[1:2, :] = m2
    st_ref[2:8, :] = jnp.zeros((6, st_ref.shape[1]), jnp.float32)


# ---------------------------------------------------------------------------
# Pass 2: recompute conv, apply folded BatchNorm + LeakyReLU, write output.
# ---------------------------------------------------------------------------
def _out_kernel(x_ref, w_ref, scale_ref, shift_ref, o_ref, *, TH, W, ntr, sublane):
    conv = _conv_tile(x_ref, w_ref, TH=TH, W=W, ntr=ntr, sublane=sublane)
    y = conv * scale_ref[...] + shift_ref[...]
    o_ref[...] = jnp.where(y >= 0, y, LEAKY_SLOPE * y)


def upblock_forward(x_nchw, w_oihw, gamma, beta, *,
                    compute_dtype=jnp.bfloat16, row_tile=512):
    """UpBlock forward: (N, Cin, H, W) f32 -> (N, Cout, 2H, 2W) f32."""
    N, Cin, H, W = map(int, x_nchw.shape)
    Cout = int(w_oihw.shape[0])
    WP = W + 2
    C4 = 4 * Cout
    C4p = _round_up(C4, 128)                    # lane-dense outputs / MXU N dim
    R = N * H * W
    sub = _sublane(compute_dtype)
    TH = _pick_row_tile(H, W, N, sub, target_rows=row_tile)
    ntr = H // TH
    TP = TH * WP

    # ---- x: NCHW -> zero-padded NHWC, flattened to (padded pixels, Cin) ----
    x_nhwc = jnp.transpose(x_nchw.astype(jnp.float32), (0, 2, 3, 1))
    x_pad = jnp.pad(x_nhwc, ((0, 0), (1, 1), (1, 1), (0, 0)))
    x2 = x_pad.reshape(N, (H + 2) * WP, Cin)
    x2 = jnp.pad(x2, ((0, 0), (0, 2), (0, 0))).astype(compute_dtype)  # slab overrun guard

    # ---- sub-pixel folded weights: (9 taps, Cin, 4*Cout -> C4p) ----
    # nearest-2x upsample + 3x3/pad1 conv == per-output-parity 2x2 conv; F
    # places each parity's folded taps into the 3x3 layout.
    F = jnp.array([[[1., 0., 0.],
                    [0., 1., 1.],
                    [0., 0., 0.]],
                   [[0., 0., 0.],
                    [1., 1., 0.],
                    [0., 0., 1.]]], dtype=jnp.float32)              # [parity, k, d]
    wt = jnp.transpose(w_oihw.astype(jnp.float32), (2, 3, 1, 0))    # (ky,kx,Cin,Cout)
    w_fold = jnp.einsum('akd,ble,deco->abklco', F, F, wt)           # (py,px,ky,kx,Ci,Co)
    w3 = jnp.transpose(w_fold, (2, 3, 4, 0, 1, 5)).reshape(9, Cin, C4)
    w3 = jnp.pad(w3, ((0, 0), (0, 0), (0, C4p - C4))).astype(compute_dtype)

    # valid-row mask of the padded-width conv slab (junk columns x' >= W)
    valid = (jnp.arange(TP) % WP < W).astype(jnp.float32).reshape(TP, 1)

    grid = (N, ntr)
    cparams = pltpu.CompilerParams(
        dimension_semantics=("parallel", "parallel"),
        vmem_limit_bytes=32 * 1024 * 1024)
    x_spec = pl.BlockSpec((None, int(x2.shape[1]), Cin), lambda n, r: (n, 0, 0))
    w_spec = pl.BlockSpec((9, Cin, C4p), lambda n, r: (0, 0, 0))
    # TODO(synk): for production channel counts, single-buffer x/w via
    # pipeline_mode=pl.Buffered(1) and re-sweep row_tile / vmem_limit per chip gen.

    kwargs = dict(TH=TH, W=W, ntr=ntr, sublane=sub)

    # ---- pass 1: per-tile BN statistics only ----
    stats = pl.pallas_call(
        functools.partial(_stats_kernel, **kwargs),
        out_shape=jax.ShapeDtypeStruct((N, ntr * 8, C4p), jnp.float32),
        grid=grid,
        in_specs=[x_spec, w_spec,
                  pl.BlockSpec((TP, 1), lambda n, r: (0, 0))],
        out_specs=pl.BlockSpec((None, 8, C4p), lambda n, r: (n, r, 0)),
        compiler_params=cparams,
    )(x2, w3, valid)

    # ---- tiny JAX glue: Chan combine, pool 4 parities, fold gamma/beta ----
    st = stats.reshape(N * ntr, 8, C4p)
    t_sum, t_m2 = st[:, 0, :], st[:, 1, :]
    m = float(TH * W)                                    # rows per tile
    col_mean = jnp.sum(t_sum, axis=0) / R
    t_mean = t_sum / m
    col_m2 = jnp.sum(t_m2, axis=0) + m * jnp.sum((t_mean - col_mean) ** 2, axis=0)
    cm = col_mean[:C4].reshape(4, Cout)
    c2 = col_m2[:C4].reshape(4, Cout)
    ch_mean = jnp.mean(cm, axis=0)
    ch_m2 = jnp.sum(c2, axis=0) + R * jnp.sum((cm - ch_mean) ** 2, axis=0)
    ch_var = ch_m2 / (4.0 * R)                           # biased (BN training fwd)
    inv_std = jax.lax.rsqrt(ch_var + BN_EPS)
    scale_c = gamma.astype(jnp.float32).reshape(Cout) * inv_std
    shift_c = beta.astype(jnp.float32).reshape(Cout) - ch_mean * scale_c
    scale4 = jnp.pad(jnp.tile(scale_c, 4), (0, C4p - C4)).reshape(1, C4p)
    shift4 = jnp.pad(jnp.tile(shift_c, 4), (0, C4p - C4)).reshape(1, C4p)
    # TODO(synk): PyTorch training-mode BN also updates running_mean/running_var;
    # only the forward output is reproduced here.

    # ---- pass 2: recompute conv, fused BN + LeakyReLU, single output write ----
    out_flat = pl.pallas_call(
        functools.partial(_out_kernel, **kwargs),
        out_shape=jax.ShapeDtypeStruct((N, H * WP, C4p), jnp.float32),
        grid=grid,
        in_specs=[x_spec, w_spec,
                  pl.BlockSpec((1, C4p), lambda n, r: (0, 0)),
                  pl.BlockSpec((1, C4p), lambda n, r: (0, 0))],
        out_specs=pl.BlockSpec((None, TP, C4p), lambda n, r: (n, r, 0)),
        compiler_params=cparams,
    )(x2, w3, scale4, shift4)

    # ---- drop junk columns; depth-to-space + NHWC->NCHW in ONE transpose ----
    out = out_flat.reshape(N, H, WP, C4p)[:, :, :W, :C4]
    out = out.reshape(N, H, W, 2, 2, Cout)
    return jnp.transpose(out, (0, 5, 1, 3, 2, 4)).reshape(N, Cout, 2 * H, 2 * W)


def _reference(x_nchw, w_oihw, gamma, beta):
    """Pure-JAX reference matching PyTorch UpBlock forward (training-mode BN)."""
    xu = jnp.repeat(jnp.repeat(x_nchw.astype(jnp.float32), 2, axis=2), 2, axis=3)
    conv = jax.lax.conv_general_dilated(
        xu, w_oihw.astype(jnp.float32), window_strides=(1, 1),
        padding=((1, 1), (1, 1)),
        dimension_numbers=("NCHW", "OIHW", "NCHW"))
    mean = jnp.mean(conv, axis=(0, 2, 3), keepdims=True)
    var = jnp.mean((conv - mean) ** 2, axis=(0, 2, 3), keepdims=True)
    y = (conv - mean) * jax.lax.rsqrt(var + BN_EPS)
    y = y * gamma.reshape(1, -1, 1, 1) + beta.reshape(1, -1, 1, 1)
    return jnp.where(y >= 0, y, LEAKY_SLOPE * y)


if __name__ == "__main__":
    key = jax.random.PRNGKey(0)
    N, Cin, Cout, S = 2, 4, 8, 16

    kx, kw = jax.random.split(key)
    x = jax.random.normal(kx, (N, Cin, S, S), dtype=jnp.float32)

    # Conv2d(Cin, Cout, 3, bias=False)-style init; BatchNorm2d default affine.
    fan_in = Cin * 3 * 3
    bound = 1.0 / math.sqrt(fan_in)
    w = jax.random.uniform(kw, (Cout, Cin, 3, 3), jnp.float32, -bound, bound)
    gamma = jnp.ones((Cout,), jnp.float32)
    beta = jnp.zeros((Cout,), jnp.float32)

    ref = jax.block_until_ready(_reference(x, w, gamma, beta))

    # Exact-precision check (f32 matmul operands).
    fwd32 = jax.jit(functools.partial(upblock_forward, compute_dtype=jnp.float32))
    out32 = jax.block_until_ready(fwd32(x, w, gamma, beta))
    assert out32.shape == (N, Cout, 2 * S, 2 * S)
    err32 = float(jnp.max(jnp.abs(out32 - ref)))
    assert jnp.allclose(out32, ref, atol=1e-4, rtol=1e-4), err32

    # Production path: bf16 MXU operands, f32 accumulation / BN statistics.
    fwd16 = jax.jit(upblock_forward)
    out16 = jax.block_until_ready(fwd16(x, w, gamma, beta))
    assert out16.shape == (N, Cout, 2 * S, 2 * S)
    err16 = float(jnp.max(jnp.abs(out16 - ref)))
    assert jnp.allclose(out16, ref, atol=3e-2, rtol=3e-2), err16

    print("KERNEL_OK")
</pallas_src>

<mosaic_0001>
module attributes {stable_mosaic.version = 11 : i64} {
  func.func @_stats_kernel(%arg0: i32, %arg1: i32, %arg2: memref<1x326x4xf32, #tpu.memory_space<vmem>>, %arg3: memref<9x4x128xf32, #tpu.memory_space<vmem>>, %arg4: memref<144x1xf32, #tpu.memory_space<vmem>>, %arg5: memref<1x8x128xf32, #tpu.memory_space<vmem>>) attributes {dimension_semantics = [#tpu.dimension_semantics<parallel>, #tpu.dimension_semantics<parallel>], iteration_bounds = array<i64: 2, 2>, scalar_prefetch = 0 : i64, scratch_operands = 0 : i64, tpu.core_type = #tpu.core_type<tc>, window_params = [{transform_indices = @transform_0, window_bounds = array<i64: 1, 326, 4>}, {pipeline_mode = #tpu.pipeline_mode<synchronous>, transform_indices = @transform_1, window_bounds = array<i64: 9, 4, 128>}, {pipeline_mode = #tpu.pipeline_mode<synchronous>, transform_indices = @transform_2, window_bounds = array<i64: 144, 1>}, {transform_indices = @transform_3, window_bounds = array<i64: 1, 8, 128>}]} {
    %c144_i32 = arith.constant 144 : i32
    %0 = arith.muli %arg1, %c144_i32 : i32
    %1 = tpu.assume_multiple %0, 8 : i32
    %c0 = arith.constant 0 : index
    %2 = arith.index_cast %1 : i32 to index
    %c0_0 = arith.constant 0 : index
    %3 = vector.load %arg2[%c0, %2, %c0_0] : memref<1x326x4xf32, #tpu.memory_space<vmem>>, vector<1x182x4xf32>
    %4 = vector.shape_cast %3 : vector<1x182x4xf32> to vector<182x4xf32>
    %5 = vector.extract_strided_slice %4 {offsets = [0, 0], sizes = [144, 4], strides = [1, 1]} : vector<182x4xf32> to vector<144x4xf32>
    %c0_1 = arith.constant 0 : index
    %c0_2 = arith.constant 0 : index
    %c0_3 = arith.constant 0 : index
    %6 = vector.load %arg3[%c0_1, %c0_2, %c0_3] : memref<9x4x128xf32, #tpu.memory_space<vmem>>, vector<1x4x128xf32>
    %7 = vector.shape_cast %6 : vector<1x4x128xf32> to vector<4x128xf32>
    %cst = arith.constant dense<0.000000e+00> : vector<144x128xf32>
    %8 = tpu.matmul %5, %7, %cst {dimension_numbers = #tpu.dot_dimension_numbers<[1], [0], [0], [1], [0, 0, 1, 1], [], []>} : vector<144x4xf32>, vector<4x128xf32>, vector<144x128xf32> -> vector<144x128xf32>
    %9 = vector.extract_strided_slice %4 {offsets = [1, 0], sizes = [144, 4], strides = [1, 1]} : vector<182x4xf32> to vector<144x4xf32>
    %c1 = arith.constant 1 : index
    %c0_4 = arith.constant 0 : index
    %c0_5 = arith.constant 0 : index
    %10 = vector.load %arg3[%c1, %c0_4, %c0_5] : memref<9x4x128xf32, #tpu.memory_space<vmem>>, vector<1x4x128xf32>
    %11 = vector.shape_cast %10 : vector<1x4x128xf32> to vector<4x128xf32>
    %cst_6 = arith.constant dense<0.000000e+00> : vector<144x128xf32>
    %12 = tpu.matmul %9, %11, %cst_6 {dimension_numbers = #tpu.dot_dimension_numbers<[1], [0], [0], [1], [0, 0, 1, 1], [], []>} : vector<144x4xf32>, vector<4x128xf32>, vector<144x128xf32> -> vector<144x128xf32>
    %13 = arith.addf %8, %12 : vector<144x128xf32>
    %14 = vector.extract_strided_slice %4 {offsets = [2, 0], sizes = [144, 4], strides = [1, 1]} : vector<182x4xf32> to vector<144x4xf32>
    %c2 = arith.constant 2 : index
    %c0_7 = arith.constant 0 : index
    %c0_8 = arith.constant 0 : index
    %15 = vector.load %arg3[%c2, %c0_7, %c0_8] : memref<9x4x128xf32, #tpu.memory_space<vmem>>, vector<1x4x128xf32>
    %16 = vector.shape_cast %15 : vector<1x4x128xf32> to vector<4x128xf32>
    %cst_9 = arith.constant dense<0.000000e+00> : vector<144x128xf32>
    %17 = tpu.matmul %14, %16, %cst_9 {dimension_numbers = #tpu.dot_dimension_numbers<[1], [0], [0], [1], [0, 0, 1, 1], [], []>} : vector<144x4xf32>, vector<4x128xf32>, vector<144x128xf32> -> vector<144x128xf32>
    %18 = arith.addf %13, %17 : vector<144x128xf32>
    %19 = vector.extract_strided_slice %4 {offsets = [18, 0], sizes = [144, 4], strides = [1, 1]} : vector<182x4xf32> to vector<144x4xf32>
    %c3 = arith.constant 3 : index
    %c0_10 = arith.constant 0 : index
    %c0_11 = arith.constant 0 : index
    %20 = vector.load %arg3[%c3, %c0_10, %c0_11] : memref<9x4x128xf32, #tpu.memory_space<vmem>>, vector<1x4x128xf32>
    %21 = vector.shape_cast %20 : vector<1x4x128xf32> to vector<4x128xf32>
    %cst_12 = arith.constant dense<0.000000e+00> : vector<144x128xf32>
    %22 = tpu.matmul %19, %21, %cst_12 {dimension_numbers = #tpu.dot_dimension_numbers<[1], [0], [0], [1], [0, 0, 1, 1], [], []>} : vector<144x4xf32>, vector<4x128xf32>, vector<144x128xf32> -> vector<144x128xf32>
    %23 = arith.addf %18, %22 : vector<144x128xf32>
    %24 = vector.extract_strided_slice %4 {offsets = [19, 0], sizes = [144, 4], strides = [1, 1]} : vector<182x4xf32> to vector<144x4xf32>
    %c4 = arith.constant 4 : index
    %c0_13 = arith.constant 0 : index
    %c0_14 = arith.constant 0 : index
    %25 = vector.load %arg3[%c4, %c0_13, %c0_14] : memref<9x4x128xf32, #tpu.memory_space<vmem>>, vector<1x4x128xf32>
    %26 = vector.shape_cast %25 : vector<1x4x128xf32> to vector<4x128xf32>
    %cst_15 = arith.constant dense<0.000000e+00> : vector<144x128xf32>
    %27 = tpu.matmul %24, %26, %cst_15 {dimension_numbers = #tpu.dot_dimension_numbers<[1], [0], [0], [1], [0, 0, 1, 1], [], []>} : vector<144x4xf32>, vector<4x128xf32>, vector<144x128xf32> -> vector<144x128xf32>
    %28 = arith.addf %23, %27 : vector<144x128xf32>
    %29 = vector.extract_strided_slice %4 {offsets = [20, 0], sizes = [144, 4], strides = [1, 1]} : vector<182x4xf32> to vector<144x4xf32>
    %c5 = arith.constant 5 : index
    %c0_16 = arith.constant 0 : index
    %c0_17 = arith.constant 0 : index
    %30 = vector.load %arg3[%c5, %c0_16, %c0_17] : memref<9x4x128xf32, #tpu.memory_space<vmem>>, vector<1x4x128xf32>
    %31 = vector.shape_cast %30 : vector<1x4x128xf32> to vector<4x128xf32>
    %cst_18 = arith.constant dense<0.000000e+00> : vector<144x128xf32>
    %32 = tpu.matmul %29, %31, %cst_18 {dimension_numbers = #tpu.dot_dimension_numbers<[1], [0], [0], [1], [0, 0, 1, 1], [], []>} : vector<144x4xf32>, vector<4x128xf32>, vector<144x128xf32> -> vector<144x128xf32>
    %33 = arith.addf %28, %32 : vector<144x128xf32>
    %34 = vector.extract_strided_slice %4 {offsets = [36, 0], sizes = [144, 4], strides = [1, 1]} : vector<182x4xf32> to vector<144x4xf32>
    %c6 = arith.constant 6 : index
    %c0_19 = arith.constant 0 : index
    %c0_20 = arith.constant 0 : index
    %35 = vector.load %arg3[%c6, %c0_19, %c0_20] : memref<9x4x128xf32, #tpu.memory_space<vmem>>, vector<1x4x128xf32>
    %36 = vector.shape_cast %35 : vector<1x4x128xf32> to vector<4x128xf32>
    %cst_21 = arith.constant dense<0.000000e+00> : vector<144x128xf32>
    %37 = tpu.matmul %34, %36, %cst_21 {dimension_numbers = #tpu.dot_dimension_numbers<[1], [0], [0], [1], [0, 0, 1, 1], [], []>} : vector<144x4xf32>, vector<4x128xf32>, vector<144x128xf32> -> vector<144x128xf32>
    %38 = arith.addf %33, %37 : vector<144x128xf32>
    %39 = vector.extract_strided_slice %4 {offsets = [37, 0], sizes = [144, 4], strides = [1, 1]} : vector<182x4xf32> to vector<144x4xf32>
    %c7 = arith.constant 7 : index
    %c0_22 = arith.constant 0 : index
    %c0_23 = arith.constant 0 : index
    %40 = vector.load %arg3[%c7, %c0_22, %c0_23] : memref<9x4x128xf32, #tpu.memory_space<vmem>>, vector<1x4x128xf32>
    %41 = vector.shape_cast %40 : vector<1x4x128xf32> to vector<4x128xf32>
    %cst_24 = arith.constant dense<0.000000e+00> : vector<144x128xf32>
    %42 = tpu.matmul %39, %41, %cst_24 {dimension_numbers = #tpu.dot_dimension_numbers<[1], [0], [0], [1], [0, 0, 1, 1], [], []>} : vector<144x4xf32>, vector<4x128xf32>, vector<144x128xf32> -> vector<144x128xf32>
    %43 = arith.addf %38, %42 : vector<144x128xf32>
    %44 = vector.extract_strided_slice %4 {offsets = [38, 0], sizes = [144, 4], strides = [1, 1]} : vector<182x4xf32> to vector<144x4xf32>
    %c8 = arith.constant 8 : index
    %c0_25 = arith.constant 0 : index
    %c0_26 = arith.constant 0 : index
    %45 = vector.load %arg3[%c8, %c0_25, %c0_26] : memref<9x4x128xf32, #tpu.memory_space<vmem>>, vector<1x4x128xf32>
    %46 = vector.shape_cast %45 : vector<1x4x128xf32> to vector<4x128xf32>
    %cst_27 = arith.constant dense<0.000000e+00> : vector<144x128xf32>
    %47 = tpu.matmul %44, %46, %cst_27 {dimension_numbers = #tpu.dot_dimension_numbers<[1], [0], [0], [1], [0, 0, 1, 1], [], []>} : vector<144x4xf32>, vector<4x128xf32>, vector<144x128xf32> -> vector<144x128xf32>
    %48 = arith.addf %43, %47 : vector<144x128xf32>
    %c0_28 = arith.constant 0 : index
    %c0_29 = arith.constant 0 : index
    %49 = vector.load %arg4[%c0_28, %c0_29] : memref<144x1xf32, #tpu.memory_space<vmem>>, vector<144x1xf32>
    %50 = vector.broadcast %49 : vector<144x1xf32> to vector<144x128xf32>
    %51 = arith.mulf %48, %50 : vector<144x128xf32>
    %cst_30 = arith.constant dense<0.000000e+00> : vector<128xf32>
    %52 = vector.multi_reduction <add>, %51, %cst_30 [0] : vector<144x128xf32> to vector<128xf32>
    %53 = vector.shape_cast %52 : vector<128xf32> to vector<1x128xf32>
    %cst_31 = arith.constant 7.812500e-03 : f32
    %54 = vector.broadcast %cst_31 : f32 to vector<1x128xf32>
    %55 = arith.mulf %53, %54 : vector<1x128xf32>
    %56 = vector.broadcast %55 : vector<1x128xf32> to vector<144x128xf32>
    %57 = arith.subf %48, %56 : vector<144x128xf32>
    %58 = vector.broadcast %49 : vector<144x1xf32> to vector<144x128xf32>
    %59 = arith.mulf %57, %58 : vector<144x128xf32>
    %60 = arith.mulf %59, %59 : vector<144x128xf32>
    %cst_32 = arith.constant dense<0.000000e+00> : vector<128xf32>
    %61 = vector.multi_reduction <add>, %60, %cst_32 [0] : vector<144x128xf32> to vector<128xf32>
    %62 = vector.shape_cast %61 : vector<128xf32> to vector<1x128xf32>
    %c0_33 = arith.constant 0 : index
    %c0_34 = arith.constant 0 : index
    %c0_35 = arith.constant 0 : index
    %63 = vector.load %arg5[%c0_33, %c0_34, %c0_35] : memref<1x8x128xf32, #tpu.memory_space<vmem>>, vector<1x1x128xf32>
    %64 = vector.shape_cast %63 : vector<1x1x128xf32> to vector<1x128xf32>
    %65 = vector.shape_cast %53 : vector<1x128xf32> to vector<1x1x128xf32>
    tpu.vector_store %arg5[%c0_33, %c0_34, %c0_35], %65 {strides = array<i32>} : memref<1x8x128xf32, #tpu.memory_space<vmem>>, vector<1x1x128xf32>,
    %c0_36 = arith.constant 0 : index
    %c1_37 = arith.constant 1 : index
    %c0_38 = arith.constant 0 : index
    %66 = vector.load %arg5[%c0_36, %c1_37, %c0_38] : memref<1x8x128xf32, #tpu.memory_space<vmem>>, vector<1x1x128xf32>
    %67 = vector.shape_cast %66 : vector<1x1x128xf32> to vector<1x128xf32>
    %68 = vector.shape_cast %62 : vector<1x128xf32> to vector<1x1x128xf32>
    tpu.vector_store %arg5[%c0_36, %c1_37, %c0_38], %68 {strides = array<i32>} : memref<1x8x128xf32, #tpu.memory_space<vmem>>, vector<1x1x128xf32>,
    %cst_39 = arith.constant 0.000000e+00 : f32
    %69 = vector.broadcast %cst_39 : f32 to vector<6x128xf32>
    %c0_40 = arith.constant 0 : index
    %c2_41 = arith.constant 2 : index
    %c0_42 = arith.constant 0 : index
    %70 = vector.load %arg5[%c0_40, %c2_41, %c0_42] : memref<1x8x128xf32, #tpu.memory_space<vmem>>, vector<1x6x128xf32>
    %71 = vector.shape_cast %70 : vector<1x6x128xf32> to vector<6x128xf32>
    %72 = vector.shape_cast %69 : vector<6x128xf32> to vector<1x6x128xf32>
    tpu.vector_store %arg5[%c0_40, %c2_41, %c0_42], %72 {strides = array<i32>} : memref<1x8x128xf32, #tpu.memory_space<vmem>>, vector<1x6x128xf32>,
    return
  }
  func.func @transform_0(%arg0: i32, %arg1: i32) -> (i32, i32, i32) {
    %c0_i32 = arith.constant 0 : i32
    %c0_i32_0 = arith.constant 0 : i32
    %c0_i32_1 = arith.constant 0 : i32
    return %arg0, %c0_i32, %c0_i32_0 : i32, i32, i32
  }
  func.func @transform_1(%arg0: i32, %arg1: i32) -> (i32, i32, i32) {
    %c0_i32 = arith.constant 0 : i32
    %c0_i32_0 = arith.constant 0 : i32
    %c0_i32_1 = arith.constant 0 : i32
    %c0_i32_2 = arith.constant 0 : i32
    return %c0_i32, %c0_i32_0, %c0_i32_1 : i32, i32, i32
  }
  func.func @transform_2(%arg0: i32, %arg1: i32) -> (i32, i32) {
    %c0_i32 = arith.constant 0 : i32
    %c0_i32_0 = arith.constant 0 : i32
    %c0_i32_1 = arith.constant 0 : i32
    return %c0_i32, %c0_i32_0 : i32, i32
  }
  func.func @transform_3(%arg0: i32, %arg1: i32) -> (i32, i32, i32) {
    %c0_i32 = arith.constant 0 : i32
    %c0_i32_0 = arith.constant 0 : i32
    return %arg0, %arg1, %c0_i32 : i32, i32, i32
  }
}

module attributes {stable_mosaic.version = 11 : i64} {
  func.func @_out_kernel(%arg0: i32, %arg1: i32, %arg2: memref<1x326x4xf32, #tpu.memory_space<vmem>>, %arg3: memref<9x4x128xf32, #tpu.memory_space<vmem>>, %arg4: memref<1x128xf32, #tpu.memory_space<vmem>>, %arg5: memref<1x128xf32, #tpu.memory_space<vmem>>, %arg6: memref<1x144x128xf32, #tpu.memory_space<vmem>>) attributes {dimension_semantics = [#tpu.dimension_semantics<parallel>, #tpu.dimension_semantics<parallel>], iteration_bounds = array<i64: 2, 2>, scalar_prefetch = 0 : i64, scratch_operands = 0 : i64, tpu.core_type = #tpu.core_type<tc>, window_params = [{transform_indices = @transform_0, window_bounds = array<i64: 1, 326, 4>}, {pipeline_mode = #tpu.pipeline_mode<synchronous>, transform_indices = @transform_1, window_bounds = array<i64: 9, 4, 128>}, {pipeline_mode = #tpu.pipeline_mode<synchronous>, transform_indices = @transform_2, window_bounds = array<i64: 1, 128>}, {pipeline_mode = #tpu.pipeline_mode<synchronous>, transform_indices = @transform_3, window_bounds = array<i64: 1, 128>}, {transform_indices = @transform_4, window_bounds = array<i64: 1, 144, 128>}]} {
    %c144_i32 = arith.constant 144 : i32
    %0 = arith.muli %arg1, %c144_i32 : i32
    %1 = tpu.assume_multiple %0, 8 : i32
    %c0 = arith.constant 0 : index
    %2 = arith.index_cast %1 : i32 to index
    %c0_0 = arith.constant 0 : index
    %3 = vector.load %arg2[%c0, %2, %c0_0] : memref<1x326x4xf32, #tpu.memory_space<vmem>>, vector<1x182x4xf32>
    %4 = vector.shape_cast %3 : vector<1x182x4xf32> to vector<182x4xf32>
    %5 = vector.extract_strided_slice %4 {offsets = [0, 0], sizes = [144, 4], strides = [1, 1]} : vector<182x4xf32> to vector<144x4xf32>
    %c0_1 = arith.constant 0 : index
    %c0_2 = arith.constant 0 : index
    %c0_3 = arith.constant 0 : index
    %6 = vector.load %arg3[%c0_1, %c0_2, %c0_3] : memref<9x4x128xf32, #tpu.memory_space<vmem>>, vector<1x4x128xf32>
    %7 = vector.shape_cast %6 : vector<1x4x128xf32> to vector<4x128xf32>
    %cst = arith.constant dense<0.000000e+00> : vector<144x128xf32>
    %8 = tpu.matmul %5, %7, %cst {dimension_numbers = #tpu.dot_dimension_numbers<[1], [0], [0], [1], [0, 0, 1, 1], [], []>} : vector<144x4xf32>, vector<4x128xf32>, vector<144x128xf32> -> vector<144x128xf32>
    %9 = vector.extract_strided_slice %4 {offsets = [1, 0], sizes = [144, 4], strides = [1, 1]} : vector<182x4xf32> to vector<144x4xf32>
    %c1 = arith.constant 1 : index
    %c0_4 = arith.constant 0 : index
    %c0_5 = arith.constant 0 : index
    %10 = vector.load %arg3[%c1, %c0_4, %c0_5] : memref<9x4x128xf32, #tpu.memory_space<vmem>>, vector<1x4x128xf32>
    %11 = vector.shape_cast %10 : vector<1x4x128xf32> to vector<4x128xf32>
    %cst_6 = arith.constant dense<0.000000e+00> : vector<144x128xf32>
    %12 = tpu.matmul %9, %11, %cst_6 {dimension_numbers = #tpu.dot_dimension_numbers<[1], [0], [0], [1], [0, 0, 1, 1], [], []>} : vector<144x4xf32>, vector<4x128xf32>, vector<144x128xf32> -> vector<144x128xf32>
    %13 = arith.addf %8, %12 : vector<144x128xf32>
    %14 = vector.extract_strided_slice %4 {offsets = [2, 0], sizes = [144, 4], strides = [1, 1]} : vector<182x4xf32> to vector<144x4xf32>
    %c2 = arith.constant 2 : index
    %c0_7 = arith.constant 0 : index
    %c0_8 = arith.constant 0 : index
    %15 = vector.load %arg3[%c2, %c0_7, %c0_8] : memref<9x4x128xf32, #tpu.memory_space<vmem>>, vector<1x4x128xf32>
    %16 = vector.shape_cast %15 : vector<1x4x128xf32> to vector<4x128xf32>
    %cst_9 = arith.constant dense<0.000000e+00> : vector<144x128xf32>
    %17 = tpu.matmul %14, %16, %cst_9 {dimension_numbers = #tpu.dot_dimension_numbers<[1], [0], [0], [1], [0, 0, 1, 1], [], []>} : vector<144x4xf32>, vector<4x128xf32>, vector<144x128xf32> -> vector<144x128xf32>
    %18 = arith.addf %13, %17 : vector<144x128xf32>
    %19 = vector.extract_strided_slice %4 {offsets = [18, 0], sizes = [144, 4], strides = [1, 1]} : vector<182x4xf32> to vector<144x4xf32>
    %c3 = arith.constant 3 : index
    %c0_10 = arith.constant 0 : index
    %c0_11 = arith.constant 0 : index
    %20 = vector.load %arg3[%c3, %c0_10, %c0_11] : memref<9x4x128xf32, #tpu.memory_space<vmem>>, vector<1x4x128xf32>
    %21 = vector.shape_cast %20 : vector<1x4x128xf32> to vector<4x128xf32>
    %cst_12 = arith.constant dense<0.000000e+00> : vector<144x128xf32>
    %22 = tpu.matmul %19, %21, %cst_12 {dimension_numbers = #tpu.dot_dimension_numbers<[1], [0], [0], [1], [0, 0, 1, 1], [], []>} : vector<144x4xf32>, vector<4x128xf32>, vector<144x128xf32> -> vector<144x128xf32>
    %23 = arith.addf %18, %22 : vector<144x128xf32>
    %24 = vector.extract_strided_slice %4 {offsets = [19, 0], sizes = [144, 4], strides = [1, 1]} : vector<182x4xf32> to vector<144x4xf32>
    %c4 = arith.constant 4 : index
    %c0_13 = arith.constant 0 : index
    %c0_14 = arith.constant 0 : index
    %25 = vector.load %arg3[%c4, %c0_13, %c0_14] : memref<9x4x128xf32, #tpu.memory_space<vmem>>, vector<1x4x128xf32>
    %26 = vector.shape_cast %25 : vector<1x4x128xf32> to vector<4x128xf32>
    %cst_15 = arith.constant dense<0.000000e+00> : vector<144x128xf32>
    %27 = tpu.matmul %24, %26, %cst_15 {dimension_numbers = #tpu.dot_dimension_numbers<[1], [0], [0], [1], [0, 0, 1, 1], [], []>} : vector<144x4xf32>, vector<4x128xf32>, vector<144x128xf32> -> vector<144x128xf32>
    %28 = arith.addf %23, %27 : vector<144x128xf32>
    %29 = vector.extract_strided_slice %4 {offsets = [20, 0], sizes = [144, 4], strides = [1, 1]} : vector<182x4xf32> to vector<144x4xf32>
    %c5 = arith.constant 5 : index
    %c0_16 = arith.constant 0 : index
    %c0_17 = arith.constant 0 : index
    %30 = vector.load %arg3[%c5, %c0_16, %c0_17] : memref<9x4x128xf32, #tpu.memory_space<vmem>>, vector<1x4x128xf32>
    %31 = vector.shape_cast %30 : vector<1x4x128xf32> to vector<4x128xf32>
    %cst_18 = arith.constant dense<0.000000e+00> : vector<144x128xf32>
    %32 = tpu.matmul %29, %31, %cst_18 {dimension_numbers = #tpu.dot_dimension_numbers<[1], [0], [0], [1], [0, 0, 1, 1], [], []>} : vector<144x4xf32>, vector<4x128xf32>, vector<144x128xf32> -> vector<144x128xf32>
    %33 = arith.addf %28, %32 : vector<144x128xf32>
    %34 = vector.extract_strided_slice %4 {offsets = [36, 0], sizes = [144, 4], strides = [1, 1]} : vector<182x4xf32> to vector<144x4xf32>
    %c6 = arith.constant 6 : index
    %c0_19 = arith.constant 0 : index
    %c0_20 = arith.constant 0 : index
    %35 = vector.load %arg3[%c6, %c0_19, %c0_20] : memref<9x4x128xf32, #tpu.memory_space<vmem>>, vector<1x4x128xf32>
    %36 = vector.shape_cast %35 : vector<1x4x128xf32> to vector<4x128xf32>
    %cst_21 = arith.constant dense<0.000000e+00> : vector<144x128xf32>
    %37 = tpu.matmul %34, %36, %cst_21 {dimension_numbers = #tpu.dot_dimension_numbers<[1], [0], [0], [1], [0, 0, 1, 1], [], []>} : vector<144x4xf32>, vector<4x128xf32>, vector<144x128xf32> -> vector<144x128xf32>
    %38 = arith.addf %33, %37 : vector<144x128xf32>
    %39 = vector.extract_strided_slice %4 {offsets = [37, 0], sizes = [144, 4], strides = [1, 1]} : vector<182x4xf32> to vector<144x4xf32>
    %c7 = arith.constant 7 : index
    %c0_22 = arith.constant 0 : index
    %c0_23 = arith.constant 0 : index
    %40 = vector.load %arg3[%c7, %c0_22, %c0_23] : memref<9x4x128xf32, #tpu.memory_space<vmem>>, vector<1x4x128xf32>
    %41 = vector.shape_cast %40 : vector<1x4x128xf32> to vector<4x128xf32>
    %cst_24 = arith.constant dense<0.000000e+00> : vector<144x128xf32>
    %42 = tpu.matmul %39, %41, %cst_24 {dimension_numbers = #tpu.dot_dimension_numbers<[1], [0], [0], [1], [0, 0, 1, 1], [], []>} : vector<144x4xf32>, vector<4x128xf32>, vector<144x128xf32> -> vector<144x128xf32>
    %43 = arith.addf %38, %42 : vector<144x128xf32>
    %44 = vector.extract_strided_slice %4 {offsets = [38, 0], sizes = [144, 4], strides = [1, 1]} : vector<182x4xf32> to vector<144x4xf32>
    %c8 = arith.constant 8 : index
    %c0_25 = arith.constant 0 : index
    %c0_26 = arith.constant 0 : index
    %45 = vector.load %arg3[%c8, %c0_25, %c0_26] : memref<9x4x128xf32, #tpu.memory_space<vmem>>, vector<1x4x128xf32>
    %46 = vector.shape_cast %45 : vector<1x4x128xf32> to vector<4x128xf32>
    %cst_27 = arith.constant dense<0.000000e+00> : vector<144x128xf32>
    %47 = tpu.matmul %44, %46, %cst_27 {dimension_numbers = #tpu.dot_dimension_numbers<[1], [0], [0], [1], [0, 0, 1, 1], [], []>} : vector<144x4xf32>, vector<4x128xf32>, vector<144x128xf32> -> vector<144x128xf32>
    %48 = arith.addf %43, %47 : vector<144x128xf32>
    %c0_28 = arith.constant 0 : index
    %c0_29 = arith.constant 0 : index
    %49 = vector.load %arg4[%c0_28, %c0_29] : memref<1x128xf32, #tpu.memory_space<vmem>>, vector<1x128xf32>
    %50 = vector.broadcast %49 : vector<1x128xf32> to vector<144x128xf32>
    %51 = arith.mulf %48, %50 : vector<144x128xf32>
    %c0_30 = arith.constant 0 : index
    %c0_31 = arith.constant 0 : index
    %52 = vector.load %arg5[%c0_30, %c0_31] : memref<1x128xf32, #tpu.memory_space<vmem>>, vector<1x128xf32>
    %53 = vector.broadcast %52 : vector<1x128xf32> to vector<144x128xf32>
    %54 = arith.addf %51, %53 : vector<144x128xf32>
    %cst_32 = arith.constant 0.000000e+00 : f32
    %55 = vector.broadcast %cst_32 : f32 to vector<144x128xf32>
    %56 = arith.cmpf oge, %54, %55 : vector<144x128xf32>
    %cst_33 = arith.constant 2.000000e-01 : f32
    %57 = vector.broadcast %cst_33 : f32 to vector<144x128xf32>
    %58 = arith.mulf %57, %54 : vector<144x128xf32>
    %59 = arith.select %56, %54, %58 : vector<144x128xi1>, vector<144x128xf32>
    %c0_34 = arith.constant 0 : index
    %c0_35 = arith.constant 0 : index
    %c0_36 = arith.constant 0 : index
    %60 = vector.load %arg6[%c0_34, %c0_35, %c0_36] : memref<1x144x128xf32, #tpu.memory_space<vmem>>, vector<1x144x128xf32>
    %61 = vector.shape_cast %60 : vector<1x144x128xf32> to vector<144x128xf32>
    %62 = vector.shape_cast %59 : vector<144x128xf32> to vector<1x144x128xf32>
    tpu.vector_store %arg6[%c0_34, %c0_35, %c0_36], %62 {strides = array<i32>} : memref<1x144x128xf32, #tpu.memory_space<vmem>>, vector<1x144x128xf32>,
    return
  }
  func.func @transform_0(%arg0: i32, %arg1: i32) -> (i32, i32, i32) {
    %c0_i32 = arith.constant 0 : i32
    %c0_i32_0 = arith.constant 0 : i32
    %c0_i32_1 = arith.constant 0 : i32
    return %arg0, %c0_i32, %c0_i32_0 : i32, i32, i32
  }
  func.func @transform_1(%arg0: i32, %arg1: i32) -> (i32, i32, i32) {
    %c0_i32 = arith.constant 0 : i32
    %c0_i32_0 = arith.constant 0 : i32
    %c0_i32_1 = arith.constant 0 : i32
    %c0_i32_2 = arith.constant 0 : i32
    return %c0_i32, %c0_i32_0, %c0_i32_1 : i32, i32, i32
  }
  func.func @transform_2(%arg0: i32, %arg1: i32) -> (i32, i32) {
    %c0_i32 = arith.constant 0 : i32
    %c0_i32_0 = arith.constant 0 : i32
    %c0_i32_1 = arith.constant 0 : i32
    return %c0_i32, %c0_i32_0 : i32, i32
  }
  func.func @transform_3(%arg0: i32, %arg1: i32) -> (i32, i32) {
    %c0_i32 = arith.constant 0 : i32
    %c0_i32_0 = arith.constant 0 : i32
    %c0_i32_1 = arith.constant 0 : i32
    return %c0_i32, %c0_i32_0 : i32, i32
  }
  func.func @transform_4(%arg0: i32, %arg1: i32) -> (i32, i32, i32) {
    %c0_i32 = arith.constant 0 : i32
    %c0_i32_0 = arith.constant 0 : i32
    return %arg0, %arg1, %c0_i32 : i32, i32, i32
  }
}

</mosaic_0001>

<llo_original>
// kernel: tile.18
$region0: #{tile.18}
  #allocation0 [shape = 's32[1]{0}', space=sflag, size = 0x4, scoped, tag = 'scoped memory for tile.18']
  %s0 = inlined_call_operand.vmem [shape: f32[8], index: 0, kind: input, shape index: {}]
  %s1 = inlined_call_operand.vmem [shape: f32[4,8], index: 1, kind: output, shape index: {}]
  // Predicated region
  $region2: #{tile.18} parent=0 // pred_check
    _
  $region3: #{tile.18} parent=0 // pred_check_branch
    %3 = sbr.rel (0) target = $region5
  $region4: #{tile.18} parent=0 // pred_region
    _
  $region5: #{tile.18} parent=0 // pred_fallthru
    _
  %v4 = vld [vmem:[%s0] ss:$0 sm:$0xff]
  %5 = vst [vmem:[%s1] sm:$0xf] %v4

// kernel: tile.19
$region0: #{tile.19}
  %s0 = inlined_call_operand.vmem [shape: f32[4,8], index: 0, kind: input, shape index: {}]
  %s1 = inlined_call_operand.vmem [shape: f32[32], index: 1, kind: output, shape index: {}]
  $region1: #{tile.19} parent=0
    #allocation0 [shape = 'u8[4096]{0}', space=vmem, size = 0x1000, scoped, tag = 'scoped mem for output reshape']
    #allocation1 [shape = 'u8[4096]{0}', space=vmem, size = 0x1000, scoped, tag = 'scoped mem for input reshape']
    %s3 = sshllo.u32 0, 4
    %v4 = vld [vmem:[%s0] sm:%s3]
    %5 = vst [vmem:[#allocation1] sm:%s3] %v4
    %v6 = vld [vmem:[#allocation1] sm:$0x1]
    %vm7 = vcmask 64512
    %8 = vst.msk [vmem:[#allocation0] sm:$0x1] %vm7, %v6
    %s9 = scalar_lea.vmem [#allocation1], 3
    %v10 = vld [vmem:[%s9] sm:$0x1]
    %11 = vrot.lane.b32.xlu0 %v10, 24
    %v12 = vpop.permute.xlu0 %11
    %vm13 = vcmask 261312
    %14 = vst.msk [vmem:[#allocation0] sm:$0x1] %vm13, %v12
    %s15 = scalar_lea.vmem [#allocation1], 2
    %v16 = vld [vmem:[%s15] sm:$0x1]
    %17 = vrot.lane.b32.xlu0 %v16, 16
    %v18 = vpop.permute.xlu0 %17
    %vm19 = vcmask 195712
    %20 = vst.msk [vmem:[#allocation0] sm:$0x1] %vm19, %v18
    %s21 = scalar_lea.vmem [#allocation1], 1
    %v22 = vld [vmem:[%s21] sm:$0x1]
    %23 = vrot.lane.b32.xlu0 %v22, 8
    %v24 = vpop.permute.xlu0 %23
    %vm25 = vcmask 130112
    %26 = vst.msk [vmem:[#allocation0] sm:$0x1] %vm25, %v24
    %s28 = sshllo.u32 0, 1
    %v30 = vld [vmem:[#allocation0] sm:%s28]
    %s31 = sshllo.u32 0, 1
    %32 = vst [vmem:[%s1] sm:%s31] %v30

// kernel: upblock_forward.2
$region0: #{upblock_forward.2}
  #allocation0 [shape = 'u32[]', space=smem, size = 0x4, offset = 0x4, fixed_abs, tag = 'smem constant byte address 0x4 - core index']
  #allocation1 [shape = 'u32[144,128]{1,0:T(1,128)}', space=vmem, size = 0x12000, scoped, tag = 'internal scratch']
  %s0 = inlined_call_operand.vmem [shape: f32[2,326,4], index: 0, kind: input, shape index: {}]
  %s1 = inlined_call_operand.vmem [shape: f32[9,4,128], index: 1, kind: input, shape index: {}]
  %s2 = inlined_call_operand.vmem [shape: f32[144,1], index: 2, kind: input, shape index: {}]
  %s3 = inlined_call_operand.vmem [shape: f32[2,16,128], index: 3, kind: output, shape index: {}]
  %s4 = sld [smem:[#allocation0]]
  $region45: #{upblock_forward.2} parent=0
    _
  %s6 = ssub.s32 1, %s4
  %s7 = scalar_select 0, %s6, %s4
  loop: start=0, step=1, limit=6
  $region2: #{upblock_forward.2} parent=0 // loop_pre_header
    _
  $region3: #{upblock_forward.2} parent=0 // loop_header
    %s9 = sphi 0, %s13
    %p10 = scmp.ge.s32.totalorder %s9, 6
    %s16 = sphi 0, %s28
    %s17 = sphi 0, %s24
    %s18 = sphi 0, %s16
    %s19 = sphi 0, %s17
    %s20 = sphi 0, %s18
    %s21 = sphi 0, %s19
    %s31 = sphi 0, %s33
    %s34 = sphi 0, %s31
    %s35 = sphi 0, %s34
    %s51 = sphi 0, %s35
    %s55 = sphi 0, %s55
    %s57 = sphi 0, %s55
    %s58 = sphi 0, %s57
    %s72 = sphi 0, %s58
    %s76 = sphi 0, %s76
    %s78 = sphi 0, %s76
    %s79 = sphi 0, %s78
    %s93 = sphi 0, %s79
    %s101 = sphi 0, %s103
    %s104 = sphi 0, %s101
    %s105 = sphi 0, %s104
    %s121 = sphi 0, %s105
  $region4: #{upblock_forward.2} parent=0 // loop_header_branch
    %12 = sbr.rel (%p10) target = $region8
  $region5: #{upblock_forward.2} parent=0 // loop_body
    %s14 = ssub.s32 %s9, 1
    %s15 = ssub.s32 %s9, 2
    %s22 = sadd.s32 1, %s17
    %p23 = scmp.ge.s32.totalorder %s22, 2
    %s24 = scalar_select %p23, 0, %s22
    %s25 = sadd.s32 1, %s16
    %s26 = scalar_select %p23, %s25, %s16
    %p27 = scmp.ge.s32.totalorder %s26, 2
    %s28 = scalar_select %p27, 0, %s26
    %s29 = ssub.s32 %s16, %s28
    %p30 = scmp.eq.s32.totalorder %s29, 0
    %s32 = sadd.s32 %s31, 1
    %s33 = scalar_select %p30, %s31, %s32
    %p36 = pneg %p30
    %p37 = scmp.eq.s32.totalorder %s9, 3
    %p38 = por %p36, %p37
    %p39 = scmp.ne.s32.totalorder %s31, %s34
    %p40 = scmp.eq.s32.totalorder %s9, 0
    %p41 = por %p39, %p40
    %p42 = scmp.ne.s32.totalorder %s31, %s34
    %p43 = scmp.eq.s32.totalorder %s14, 3
    %p44 = por %p42, %p43
    %p45 = scmp.ne.s32.totalorder %s34, %s35
    %p46 = scmp.eq.s32.totalorder %s14, 0
    %p47 = por %p45, %p46
    %p48 = scmp.ne.s32.totalorder %s34, %s35
    %p49 = scmp.eq.s32.totalorder %s15, 3
    %p50 = por %p48, %p49
    %p52 = scmp.ne.s32.totalorder %s35, %s51
    %p53 = scmp.eq.s32.totalorder %s15, 0
    %p54 = por %p52, %p53
    %s56 = sadd.s32 %s55, 1
    %p59 = scmp.eq.s32.totalorder %s9, 3
    %p60 = scmp.ne.s32.totalorder %s55, %s57
    %p61 = scmp.eq.s32.totalorder %s9, 0
    %p62 = por %p60, %p61
    %p63 = scmp.ne.s32.totalorder %s55, %s57
    %p64 = scmp.eq.s32.totalorder %s14, 3
    %p65 = por %p63, %p64
    %p66 = scmp.ne.s32.totalorder %s57, %s58
    %p67 = scmp.eq.s32.totalorder %s14, 0
    %p68 = por %p66, %p67
    %p69 = scmp.ne.s32.totalorder %s57, %s58
    %p70 = scmp.eq.s32.totalorder %s15, 3
    %p71 = por %p69, %p70
    %p73 = scmp.ne.s32.totalorder %s58, %s72
    %p74 = scmp.eq.s32.totalorder %s15, 0
    %p75 = por %p73, %p74
    %s77 = sadd.s32 %s76, 1
    %p80 = scmp.eq.s32.totalorder %s9, 3
    %p81 = scmp.ne.s32.totalorder %s76, %s78
    %p82 = scmp.eq.s32.totalorder %s9, 0
    %p83 = por %p81, %p82
    %p84 = scmp.ne.s32.totalorder %s76, %s78
    %p85 = scmp.eq.s32.totalorder %s14, 3
    %p86 = por %p84, %p85
    %p87 = scmp.ne.s32.totalorder %s78, %s79
    %p88 = scmp.eq.s32.totalorder %s14, 0
    %p89 = por %p87, %p88
    %p90 = scmp.ne.s32.totalorder %s78, %s79
    %p91 = scmp.eq.s32.totalorder %s15, 3
    %p92 = por %p90, %p91
    %p94 = scmp.ne.s32.totalorder %s79, %s93
    %p95 = scmp.eq.s32.totalorder %s15, 0
    %p96 = por %p94, %p95
    %s97 = ssub.s32 %s16, %s28
    %s98 = ssub.s32 %s17, %s24
    %s99 = sor.u32 %s97, %s98
    %p100 = scmp.eq.s32.totalorder %s99, 0
    %s102 = sadd.s32 %s101, 1
    %s103 = scalar_select %p100, %s101, %s102
    %p106 = pneg %p100
    %p107 = scmp.eq.s32.totalorder %s9, 3
    %p108 = por %p106, %p107
    %p109 = scmp.ne.s32.totalorder %s101, %s104
    %p110 = scmp.eq.s32.totalorder %s9, 0
    %p111 = por %p109, %p110
    %p112 = scmp.ne.s32.totalorder %s101, %s104
    %p113 = scmp.eq.s32.totalorder %s14, 3
    %p114 = por %p112, %p113
    %p115 = scmp.ne.s32.totalorder %s104, %s105
    %p116 = scmp.eq.s32.totalorder %s14, 0
    %p117 = por %p115, %p116
    %p118 = scmp.ne.s32.totalorder %s104, %s105
    %p119 = scmp.eq.s32.totalorder %s15, 3
    %p120 = por %p118, %p119
    %p122 = scmp.ne.s32.totalorder %s105, %s121
    %p123 = scmp.eq.s32.totalorder %s15, 0
    %p124 = por %p122, %p123
    %p125 = scmp.le.s32.totalorder 1, %s9
    %p126 = scmp.lt.s32.totalorder %s9, 5
    %p127 = pnand %p125, %p126
    %p128 = pneg %p127
    // Predicated region
    $region9: #{upblock_forward.2} parent=5 // pred_check
      _
    $region10: #{upblock_forward.2} parent=5 // pred_check_branch
      %130 = sbr.rel (%p127) target = $region12
    $region11: #{upblock_forward.2} parent=5 // pred_region
      %s131 = ssub.s32 %s9, 1
      // Predicated region
      $region13: #{upblock_forward.2} parent=11 // pred_check
        %p132 = pneg %p68
      $region14: #{upblock_forward.2} parent=11 // pred_check_branch
        %134 = sbr.rel (%p132) target = $region16
      $region15: #{upblock_forward.2} parent=11 // pred_region
        _
      $region16: #{upblock_forward.2} parent=11 // pred_fallthru
        _
      // Predicated region
      $region17: #{upblock_forward.2} parent=11 // pred_check
        %p135 = pneg %p89
      $region18: #{upblock_forward.2} parent=11 // pred_check_branch
        %137 = sbr.rel (%p135) target = $region20
      $region19: #{upblock_forward.2} parent=11 // pred_region
        _
      $region20: #{upblock_forward.2} parent=11 // pred_fallthru
        _
    $region12: #{upblock_forward.2} parent=5 // pred_fallthru
      _
    %p138 = scmp.lt.s32.totalorder %s9, 4
    // Predicated region
    $region21: #{upblock_forward.2} parent=5 // pred_check
      %p139 = pneg %p138
    $region22: #{upblock_forward.2} parent=5 // pred_check_branch
      %141 = sbr.rel (%p139) target = $region24
    $region23: #{upblock_forward.2} parent=5 // pred_region
      // Predicated region
      $region25: #{upblock_forward.2} parent=23 // pred_check
        %p142 = pneg %p41
      $region26: #{upblock_forward.2} parent=23 // pred_check_branch
        %144 = sbr.rel (%p142) target = $region28
      $region27: #{upblock_forward.2} parent=23 // pred_region
        %p145 = scmp.lt.s32.totalorder %s16, 1
        %s146 = scalar_select %p145, %s16, 1
        %s147 = smul.addr %s146, 41
        %s148 = smul.addr %s147, 8
        %s149 = scalar_lea.vmem %s0, %s148
      $region28: #{upblock_forward.2} parent=23 // pred_fallthru
        _
    $region24: #{upblock_forward.2} parent=5 // pred_fallthru
      _
    %p150 = scmp.le.s32.totalorder 1, %s9
    %p151 = scmp.lt.s32.totalorder %s9, 5
    %p152 = pnand %p150, %p151
    %p153 = pneg %p152
    // Predicated region
    $region29: #{upblock_forward.2} parent=5 // pred_check
      _
    $region30: #{upblock_forward.2} parent=5 // pred_check_branch
      %155 = sbr.rel (%p152) target = $region32
    $region31: #{upblock_forward.2} parent=5 // pred_region
      %s156 = ssub.s32 %s9, 1
      %p157 = scmp.lt.s32.totalorder %s18, 1
      %s158 = scalar_select %p157, %s18, 1
      %s159 = smul.addr %s158, 41
      %s160 = smul.addr %s159, 8
      %s161 = scalar_lea.vmem %s0, %s160
      %p162 = pneg %p47
      %p163 = pneg %p44
      %p164 = pneg %p68
      %p165 = pneg %p65
      %p166 = pneg %p89
      %p167 = pneg %p86
      %p168 = pneg %p117
      %p169 = pneg %p114
      %p170 = scmp.lt.s32.totalorder %s18, 1
      %s171 = scalar_select %p170, %s18, 1
      %p172 = scmp.lt.s32.totalorder %s19, 1
      %s173 = scalar_select %p172, %s19, 1
      %s174 = smul.addr %s171, 2
      %s175 = sadd.s32 %s173, %s174
      %s176 = smul.addr %s175, 8
      %s177 = scalar_lea.vmem %s3, %s176
      %p178 = scmp.lt.s32.totalorder %s18, 1
      %s179 = scalar_select %p178, %s18, 1
      %s180 = smul.addr %s179, 41
      %s181 = smul.addr %s180, 8
      %s182 = scalar_lea.vmem %s0, %s181
      %p183 = scmp.lt.s32.totalorder %s18, 1
      %s184 = scalar_select %p183, %s18, 1
      %p185 = scmp.lt.s32.totalorder %s19, 1
      %s186 = scalar_select %p185, %s19, 1
      %s187 = smul.addr %s184, 2
      %s188 = sadd.s32 %s186, %s187
      %s189 = smul.addr %s188, 8
      %s190 = scalar_lea.vmem %s3, %s189
      %s191 = smul.u32 %s19, 144
      %s192 = scalar_lea.vmem %s182, %s191
      %v193 = vld [vmem:[%s192] sm:$0xff]
      %v194 = vld [vmem:[%s192 + $0x8] sm:$0xff]
      %v195 = vld [vmem:[%s192 + $0x10] sm:$0xff]
      %v196 = vld [vmem:[%s192 + $0x18] sm:$0xff]
      %v197 = vld [vmem:[%s192 + $0x20] sm:$0xff]
      %v198 = vld [vmem:[%s192 + $0x28] sm:$0xff]
      %v199 = vld [vmem:[%s192 + $0x30] sm:$0xff]
      %v200 = vld [vmem:[%s192 + $0x38] sm:$0xff]
      %v201 = vld [vmem:[%s192 + $0x40] sm:$0xff]
      %v202 = vld [vmem:[%s192 + $0x48] sm:$0xff]
      %v203 = vld [vmem:[%s192 + $0x50] sm:$0xff]
      %v204 = vld [vmem:[%s192 + $0x58] sm:$0xff]
      %v205 = vld [vmem:[%s192 + $0x60] sm:$0xff]
      %v206 = vld [vmem:[%s192 + $0x68] sm:$0xff]
      %v207 = vld [vmem:[%s192 + $0x70] sm:$0xff]
      %v208 = vld [vmem:[%s192 + $0x78] sm:$0xff]
      %v209 = vld [vmem:[%s192 + $0x80] sm:$0xff]
      %v210 = vld [vmem:[%s192 + $0x88] sm:$0xff]
      %v211 = vld [vmem:[%s192 + $0x90] sm:$0xff]
      %v212 = vld [vmem:[%s192 + $0x98] sm:$0xff]
      %v213 = vld [vmem:[%s192 + $0xa0] sm:$0xff]
      %v214 = vld [vmem:[%s192 + $0xa8] sm:$0xff]
      %v215 = vld [vmem:[%s192 + $0xb0] sm:$0x3f]
      %v216 = vld [vmem:[%s1] sm:$0xf]
      %s217 = scalar_lea.vmem %s1, 4
      %v218 = vld [vmem:[%s217] sm:$0xf]
      %vm238 = vcmask 1046528
      %v239 = vrot.slane %v193, 1
      %v240 = vrot.slane %v194, 1
      %v241 = vsel %vm238, %v239, %v240
      %v242 = vrot.slane %v195, 1
      %v243 = vsel %vm238, %v240, %v242
      %v244 = vrot.slane %v196, 1
      %v245 = vsel %vm238, %v242, %v244
      %v246 = vrot.slane %v197, 1
      %v247 = vsel %vm238, %v244, %v246
      %v248 = vrot.slane %v198, 1
      %v249 = vsel %vm238, %v246, %v248
      %v250 = vrot.slane %v199, 1
      %v251 = vsel %vm238, %v248, %v250
      %v252 = vrot.slane %v200, 1
      %v253 = vsel %vm238, %v250, %v252
      %v254 = vrot.slane %v201, 1
      %v255 = vsel %vm238, %v252, %v254
      %v256 = vrot.slane %v202, 1
      %v257 = vsel %vm238, %v254, %v256
      %v258 = vrot.slane %v203, 1
      %v259 = vsel %vm238, %v256, %v258
      %v260 = vrot.slane %v204, 1
      %v261 = vsel %vm238, %v258, %v260
      %v262 = vrot.slane %v205, 1
      %v263 = vsel %vm238, %v260, %v262
      %v264 = vrot.slane %v206, 1
      %v265 = vsel %vm238, %v262, %v264
      %v266 = vrot.slane %v207, 1
      %v267 = vsel %vm238, %v264, %v266
      %v268 = vrot.slane %v208, 1
      %v269 = vsel %vm238, %v266, %v268
      %v270 = vrot.slane %v209, 1
      %v271 = vsel %vm238, %v268, %v270
      %v272 = vrot.slane %v210, 1
      %v273 = vsel %vm238, %v270, %v272
      %v274 = vrot.slane %v211, 1
      %v275 = vsel %vm238, %v272, %v274
      %vm276 = vcmask 31744
      %v277 = vsel %vm276, %v241, 0
      %v279 = vsel %vm276, %v243, 0
      %v281 = vsel %vm276, %v245, 0
      %v283 = vsel %vm276, %v247, 0
      %v285 = vsel %vm276, %v249, 0
      %v287 = vsel %vm276, %v251, 0
      %v289 = vsel %vm276, %v253, 0
      %v291 = vsel %vm276, %v255, 0
      %v293 = vsel %vm276, %v257, 0
      %v295 = vsel %vm276, %v259, 0
      %v297 = vsel %vm276, %v261, 0
      %v299 = vsel %vm276, %v263, 0
      %v301 = vsel %vm276, %v265, 0
      %v303 = vsel %vm276, %v267, 0
      %v305 = vsel %vm276, %v269, 0
      %v307 = vsel %vm276, %v271, 0
      %v309 = vsel %vm276, %v273, 0
      %v311 = vsel %vm276, %v275, 0
      %vm313 = vcmask 1043456
      %v315 = vsel %vm313, %v218, 0
      %317 = vmatprep.subr.mxu0 0.0
      %318 = vmatpush1.msra.mxu0 %v315
      %319 = vmatprep.subr.mxu0 0.0
      %320 = vmatpush1.msra.mxu0 0.0
      %321 = vmatprep.subr.mxu0 0.0
      %322 = vmatpush1.msra.mxu0 0.0
      %323 = vmatprep.subr.mxu0 0.0
      %324 = vmatpush1.msra.mxu0 0.0
      %325 = vmatprep.subr.mxu0 0.0
      %326 = vmatpush1.msra.mxu0 0.0
      %327 = vmatprep.subr.mxu0 0.0
      %328 = vmatpush1.msra.mxu0 0.0
      %329 = vmatprep.subr.mxu0 0.0
      %330 = vmatpush1.msra.mxu0 0.0
      %331 = vmatprep.subr.mxu0 0.0
      %332 = vmatpush1.msra.mxu0 0.0
      %333 = vmatprep.subr.mxu0 0.0
      %334 = vmatpush1.msra.mxu0 0.0
      %335 = vmatprep.subr.mxu0 0.0
      %336 = vmatpush1.msra.mxu0 0.0
      %337 = vmatprep.subr.mxu0 0.0
      %338 = vmatpush1.msra.mxu0 0.0
      %339 = vmatprep.subr.mxu0 0.0
      %340 = vmatpush1.msra.mxu0 0.0
      %341 = vmatprep.subr.mxu0 0.0
      %342 = vmatpush1.msra.mxu0 0.0
      %343 = vmatprep.subr.mxu0 0.0
      %344 = vmatpush1.msra.mxu0 0.0
      %345 = vmatprep.subr.mxu0 0.0
      %346 = vmatpush1.msra.mxu0 0.0
      %347 = vmatprep.subr.mxu0 0.0
      %348 = vmatpush1.msra.mxu0 0.0
      %349 = vmatprep.subr.mxu0 0.0
      %350 = vmatpush1.msra.mxu0 0.0
      %351 = vmatprep.subr.mxu0 0.0
      %352 = vmatpush1.msra.mxu0 0.0
      %353 = vmatprep.subr.mxu0 0.0
      %354 = vmatpush1.msra.mxu0 0.0
      %355 = vmatprep.subr.mxu0 0.0
      %356 = vmatpush1.msra.mxu0 0.0
      %357 = vmatprep.subr.mxu0 0.0
      %358 = vmatpush1.msra.mxu0 0.0
      %359 = vmatprep.subr.mxu0 0.0
      %360 = vmatpush1.msra.mxu0 0.0
      %361 = vmatprep.subr.mxu0 0.0
      %362 = vmatpush1.msra.mxu0 0.0
      %363 = vmatprep.subr.mxu0 0.0
      %364 = vmatpush1.msra.mxu0 0.0
      %365 = vmatprep.subr.mxu0 0.0
      %366 = vmatpush1.msra.mxu0 0.0
      %367 = vmatprep.subr.mxu0 0.0
      %368 = vmatpush1.msra.mxu0 0.0
      %369 = vmatprep.subr.mxu0 0.0
      %370 = vmatpush1.msra.mxu0 0.0
      %371 = vmatprep.subr.mxu0 0.0
      %372 = vmatpush1.msra.mxu0 0.0
      %373 = vmatprep.subr.mxu0 0.0
      %374 = vmatpush1.msra.mxu0 0.0
      %375 = vmatprep.subr.mxu0 0.0
      %376 = vmatpush1.msra.mxu0 0.0
      %377 = vmatprep.subr.mxu0 0.0
      %378 = vmatpush1.msra.mxu0 0.0
      %379 = vmatprep.subr.mxu0 0.0
      %380 = vmatpush1.msra.mxu0 0.0
      %381 = vmatprep.mubr.f32.mxu0 0.0
      %382 = vmatmul.mubr.f32.gmra.mrb[0].mxu0 %v277
      %v383 = vpop.f32.mrb[0].mxu0
      %v384 = vadd.f32 0.0, %v383
      %v385 = vpop.f32.mrb[0].mxu0
      %386 = vmatprep.mubr.f32.mxu0 0.0
      %387 = vmatmul.mubr.f32.gmra.mrb[0].mxu0 %v279
      %v388 = vpop.f32.mrb[0].mxu0
      %v389 = vadd.f32 0.0, %v388
      %v390 = vpop.f32.mrb[0].mxu0
      %391 = vmatprep.mubr.f32.mxu0 0.0
      %392 = vmatmul.mubr.f32.gmra.mrb[0].mxu0 %v281
      %v393 = vpop.f32.mrb[0].mxu0
      %v394 = vadd.f32 0.0, %v393
      %v395 = vpop.f32.mrb[0].mxu0
      %396 = vmatprep.mubr.f32.mxu0 0.0
      %397 = vmatmul.mubr.f32.gmra.mrb[0].mxu0 %v283
      %v398 = vpop.f32.mrb[0].mxu0
      %v399 = vadd.f32 0.0, %v398
      %v400 = vpop.f32.mrb[0].mxu0
      %401 = vmatprep.mubr.f32.mxu0 0.0
      %402 = vmatmul.mubr.f32.gmra.mrb[0].mxu0 %v285
      %v403 = vpop.f32.mrb[0].mxu0
      %v404 = vadd.f32 0.0, %v403
      %v405 = vpop.f32.mrb[0].mxu0
      %406 = vmatprep.mubr.f32.mxu0 0.0
      %407 = vmatmul.mubr.f32.gmra.mrb[0].mxu0 %v287
      %v408 = vpop.f32.mrb[0].mxu0
      %v409 = vadd.f32 0.0, %v408
      %v410 = vpop.f32.mrb[0].mxu0
      %411 = vmatprep.mubr.f32.mxu0 0.0
      %412 = vmatmul.mubr.f32.gmra.mrb[0].mxu0 %v289
      %v413 = vpop.f32.mrb[0].mxu0
      %v414 = vadd.f32 0.0, %v413
      %v415 = vpop.f32.mrb[0].mxu0
      %416 = vmatprep.mubr.f32.mxu0 0.0
      %417 = vmatmul.mubr.f32.gmra.mrb[0].mxu0 %v291
      %v418 = vpop.f32.mrb[0].mxu0
      %v419 = vadd.f32 0.0, %v418
      %v420 = vpop.f32.mrb[0].mxu0
      %421 = vmatprep.mubr.f32.mxu0 0.0
      %422 = vmatmul.mubr.f32.gmra.mrb[0].mxu0 %v293
      %v423 = vpop.f32.mrb[0].mxu0
      %v424 = vadd.f32 0.0, %v423
      %v425 = vpop.f32.mrb[0].mxu0
      %426 = vmatprep.mubr.f32.mxu0 0.0
      %427 = vmatmul.mubr.f32.gmra.mrb[0].mxu0 %v295
      %v428 = vpop.f32.mrb[0].mxu0
      %v429 = vadd.f32 0.0, %v428
      %v430 = vpop.f32.mrb[0].mxu0
      %431 = vmatprep.mubr.f32.mxu0 0.0
      %432 = vmatmul.mubr.f32.gmra.mrb[0].mxu0 %v297
      %v433 = vpop.f32.mrb[0].mxu0
      %v434 = vadd.f32 0.0, %v433
      %v435 = vpop.f32.mrb[0].mxu0
      %436 = vmatprep.mubr.f32.mxu0 0.0
      %437 = vmatmul.mubr.f32.gmra.mrb[0].mxu0 %v299
      %v438 = vpop.f32.mrb[0].mxu0
      %v439 = vadd.f32 0.0, %v438
      %v440 = vpop.f32.mrb[0].mxu0
      %441 = vmatprep.mubr.f32.mxu0 0.0
      %442 = vmatmul.mubr.f32.gmra.mrb[0].mxu0 %v301
      %v443 = vpop.f32.mrb[0].mxu0
      %v444 = vadd.f32 0.0, %v443
      %v445 = vpop.f32.mrb[0].mxu0
      %446 = vmatprep.mubr.f32.mxu0 0.0
      %447 = vmatmul.mubr.f32.gmra.mrb[0].mxu0 %v303
      %v448 = vpop.f32.mrb[0].mxu0
      %v449 = vadd.f32 0.0, %v448
      %v450 = vpop.f32.mrb[0].mxu0
      %451 = vmatprep.mubr.f32.mxu0 0.0
      %452 = vmatmul.mubr.f32.gmra.mrb[0].mxu0 %v305
      %v453 = vpop.f32.mrb[0].mxu0
      %v454 = vadd.f32 0.0, %v453
      %v455 = vpop.f32.mrb[0].mxu0
      %456 = vmatprep.mubr.f32.mxu0 0.0
      %457 = vmatmul.mubr.f32.gmra.mrb[0].mxu0 %v307
      %v458 = vpop.f32.mrb[0].mxu0
      %v459 = vadd.f32 0.0, %v458
      %v460 = vpop.f32.mrb[0].mxu0
      %461 = vmatprep.mubr.f32.mxu0 0.0
      %462 = vmatmul.mubr.f32.gmra.mrb[0].mxu0 %v309
      %v463 = vpop.f32.mrb[0].mxu0
      %v464 = vadd.f32 0.0, %v463
      %v465 = vpop.f32.mrb[0].mxu0
      %466 = vmatprep.mubr.f32.mxu0 0.0
      %467 = vmatmul.mubr.f32.gmra.mrb[0].mxu0 %v311
      %v468 = vpop.f32.mrb[0].mxu0
      %v469 = vadd.f32 0.0, %v468
      %v470 = vpop.f32.mrb[0].mxu0
      %471 = vdwg.mxu0
      %v472 = vsel %vm276, %v193, 0
      %v474 = vsel %vm276, %v194, 0
      %v476 = vsel %vm276, %v195, 0
      %v478 = vsel %vm276, %v196, 0
      %v480 = vsel %vm276, %v197, 0
      %v482 = vsel %vm276, %v198, 0
      %v484 = vsel %vm276, %v199, 0
      %v486 = vsel %vm276, %v200, 0
      %v488 = vsel %vm276, %v201, 0
      %v490 = vsel %vm276, %v202, 0
      %v492 = vsel %vm276, %v203, 0
      %v494 = vsel %vm276, %v204, 0
      %v496 = vsel %vm276, %v205, 0
      %v498 = vsel %vm276, %v206, 0
      %v500 = vsel %vm276, %v207, 0
      %v502 = vsel %vm276, %v208, 0
      %v504 = vsel %vm276, %v209, 0
      %v506 = vsel %vm276, %v210, 0
      %v509 = vsel %vm313, %v216, 0
      %511 = vmatprep.subr.mxu0 0.0
      %512 = vmatpush1.msra.mxu0 %v509
      %513 = vmatprep.subr.mxu0 0.0
      %514 = vmatpush1.msra.mxu0 0.0
      %515 = vmatprep.subr.mxu0 0.0
      %516 = vmatpush1.msra.mxu0 0.0
      %517 = vmatprep.subr.mxu0 0.0
      %518 = vmatpush1.msra.mxu0 0.0
      %519 = vmatprep.subr.mxu0 0.0
      %520 = vmatpush1.msra.mxu0 0.0
      %521 = vmatprep.subr.mxu0 0.0
      %522 = vmatpush1.msra.mxu0 0.0
      %523 = vmatprep.subr.mxu0 0.0
      %524 = vmatpush1.msra.mxu0 0.0
      %525 = vmatprep.subr.mxu0 0.0
      %526 = vmatpush1.msra.mxu0 0.0
      %527 = vmatprep.subr.mxu0 0.0
      %528 = vmatpush1.msra.mxu0 0.0
      %529 = vmatprep.subr.mxu0 0.0
      %530 = vmatpush1.msra.mxu0 0.0
      %531 = vmatprep.subr.mxu0 0.0
      %532 = vmatpush1.msra.mxu0 0.0
      %533 = vmatprep.subr.mxu0 0.0
      %534 = vmatpush1.msra.mxu0 0.0
      %535 = vmatprep.subr.mxu0 0.0
      %536 = vmatpush1.msra.mxu0 0.0
      %537 = vmatprep.subr.mxu0 0.0
      %538 = vmatpush1.msra.mxu0 0.0
      %539 = vmatprep.subr.mxu0 0.0
      %540 = vmatpush1.msra.mxu0 0.0
      %541 = vmatprep.subr.mxu0 0.0
      %542 = vmatpush1.msra.mxu0 0.0
      %543 = vmatprep.subr.mxu0 0.0
      %544 = vmatpush1.msra.mxu0 0.0
      %545 = vmatprep.subr.mxu0 0.0
      %546 = vmatpush1.msra.mxu0 0.0
      %547 = vmatprep.subr.mxu0 0.0
      %548 = vmatpush1.msra.mxu0 0.0
      %549 = vmatprep.subr.mxu0 0.0
      %550 = vmatpush1.msra.mxu0 0.0
      %551 = vmatprep.subr.mxu0 0.0
      %552 = vmatpush1.msra.mxu0 0.0
      %553 = vmatprep.subr.mxu0 0.0
      %554 = vmatpush1.msra.mxu0 0.0
      %555 = vmatprep.subr.mxu0 0.0
      %556 = vmatpush1.msra.mxu0 0.0
      %557 = vmatprep.subr.mxu0 0.0
      %558 = vmatpush1.msra.mxu0 0.0
      %559 = vmatprep.subr.mxu0 0.0
      %560 = vmatpush1.msra.mxu0 0.0
      %561 = vmatprep.subr.mxu0 0.0
      %562 = vmatpush1.msra.mxu0 0.0
      %563 = vmatprep.subr.mxu0 0.0
      %564 = vmatpush1.msra.mxu0 0.0
      %565 = vmatprep.subr.mxu0 0.0
      %566 = vmatpush1.msra.mxu0 0.0
      %567 = vmatprep.subr.mxu0 0.0
      %568 = vmatpush1.msra.mxu0 0.0
      %569 = vmatprep.subr.mxu0 0.0
      %570 = vmatpush1.msra.mxu0 0.0
      %571 = vmatprep.subr.mxu0 0.0
      %572 = vmatpush1.msra.mxu0 0.0
      %573 = vmatprep.subr.mxu0 0.0
      %574 = vmatpush1.msra.mxu0 0.0
      %575 = vmatprep.mubr.f32.mxu0 0.0
      %576 = vmatmul.mubr.f32.gmra.mrb[0].mxu0 %v472
      %v577 = vpop.f32.mrb[0].mxu0
      %v578 = vadd.f32 %v384, %v577
      %v579 = vpop.f32.mrb[0].mxu0
      %580 = vmatprep.mubr.f32.mxu0 0.0
      %581 = vmatmul.mubr.f32.gmra.mrb[0].mxu0 %v474
      %v582 = vpop.f32.mrb[0].mxu0
      %v583 = vadd.f32 %v389, %v582
      %v584 = vpop.f32.mrb[0].mxu0
      %585 = vmatprep.mubr.f32.mxu0 0.0
      %586 = vmatmul.mubr.f32.gmra.mrb[0].mxu0 %v476
      %v587 = vpop.f32.mrb[0].mxu0
      %v588 = vadd.f32 %v394, %v587
      %v589 = vpop.f32.mrb[0].mxu0
      %590 = vmatprep.mubr.f32.mxu0 0.0
      %591 = vmatmul.mubr.f32.gmra.mrb[0].mxu0 %v478
      %v592 = vpop.f32.mrb[0].mxu0
      %v593 = vadd.f32 %v399, %v592
      %v594 = vpop.f32.mrb[0].mxu0
      %595 = vmatprep.mubr.f32.mxu0 0.0
      %596 = vmatmul.mubr.f32.gmra.mrb[0].mxu0 %v480
      %v597 = vpop.f32.mrb[0].mxu0
      %v598 = vadd.f32 %v404, %v597
      %v599 = vpop.f32.mrb[0].mxu0
      %600 = vmatprep.mubr.f32.mxu0 0.0
      %601 = vmatmul.mubr.f32.gmra.mrb[0].mxu0 %v482
      %v602 = vpop.f32.mrb[0].mxu0
      %v603 = vadd.f32 %v409, %v602
      %v604 = vpop.f32.mrb[0].mxu0
      %605 = vmatprep.mubr.f32.mxu0 0.0
      %606 = vmatmul.mubr.f32.gmra.mrb[0].mxu0 %v484
      %v607 = vpop.f32.mrb[0].mxu0
      %v608 = vadd.f32 %v414, %v607
      %v609 = vpop.f32.mrb[0].mxu0
      %610 = vmatprep.mubr.f32.mxu0 0.0
      %611 = vmatmul.mubr.f32.gmra.mrb[0].mxu0 %v486
      %v612 = vpop.f32.mrb[0].mxu0
      %v613 = vadd.f32 %v419, %v612
      %v614 = vpop.f32.mrb[0].mxu0
      %615 = vmatprep.mubr.f32.mxu0 0.0
      %616 = vmatmul.mubr.f32.gmra.mrb[0].mxu0 %v488
      %v617 = vpop.f32.mrb[0].mxu0
      %v618 = vadd.f32 %v424, %v617
      %v619 = vpop.f32.mrb[0].mxu0
      %620 = vmatprep.mubr.f32.mxu0 0.0
      %621 = vmatmul.mubr.f32.gmra.mrb[0].mxu0 %v490
      %v622 = vpop.f32.mrb[0].mxu0
      %v623 = vadd.f32 %v429, %v622
      %v624 = vpop.f32.mrb[0].mxu0
      %625 = vmatprep.mubr.f32.mxu0 0.0
      %626 = vmatmul.mubr.f32.gmra.mrb[0].mxu0 %v492
      %v627 = vpop.f32.mrb[0].mxu0
      %v628 = vadd.f32 %v434, %v627
      %v629 = vpop.f32.mrb[0].mxu0
      %630 = vmatprep.mubr.f32.mxu0 0.0
      %631 = vmatmul.mubr.f32.gmra.mrb[0].mxu0 %v494
      %v632 = vpop.f32.mrb[0].mxu0
      %v633 = vadd.f32 %v439, %v632
      %v634 = vpop.f32.mrb[0].mxu0
      %635 = vmatprep.mubr.f32.mxu0 0.0
      %636 = vmatmul.mubr.f32.gmra.mrb[0].mxu0 %v496
      %v637 = vpop.f32.mrb[0].mxu0
      %v638 = vadd.f32 %v444, %v637
      %v639 = vpop.f32.mrb[0].mxu0
      %640 = vmatprep.mubr.f32.mxu0 0.0
      %641 = vmatmul.mubr.f32.gmra.mrb[0].mxu0 %v498
      %v642 = vpop.f32.mrb[0].mxu0
      %v643 = vadd.f32 %v449, %v642
      %v644 = vpop.f32.mrb[0].mxu0
      %645 = vmatprep.mubr.f32.mxu0 0.0
      %646 = vmatmul.mubr.f32.gmra.mrb[0].mxu0 %v500
      %v647 = vpop.f32.mrb[0].mxu0
      %v648 = vadd.f32 %v454, %v647
      %v649 = vpop.f32.mrb[0].mxu0
      %650 = vmatprep.mubr.f32.mxu0 0.0
      %651 = vmatmul.mubr.f32.gmra.mrb[0].mxu0 %v502
      %v652 = vpop.f32.mrb[0].mxu0
      %v653 = vadd.f32 %v459, %v652
      %v654 = vpop.f32.mrb[0].mxu0
      %655 = vmatprep.mubr.f32.mxu0 0.0
      %656 = vmatmul.mubr.f32.gmra.mrb[0].mxu0 %v504
      %v657 = vpop.f32.mrb[0].mxu0
      %v658 = vadd.f32 %v464, %v657
      %v659 = vpop.f32.mrb[0].mxu0
      %660 = vmatprep.mubr.f32.mxu0 0.0
      %661 = vmatmul.mubr.f32.gmra.mrb[0].mxu0 %v506
      %v662 = vpop.f32.mrb[0].mxu0
      %v663 = vadd.f32 %v469, %v662
      %v664 = vpop.f32.mrb[0].mxu0
      %665 = vdwg.mxu0
      %s666 = scalar_lea.vmem %s1, 8
      %v667 = vld [vmem:[%s666] sm:$0xf]
      %vm668 = vcmask 1045504
      %v669 = vrot.slane %v193, 2
      %v670 = vrot.slane %v194, 2
      %v671 = vsel %vm668, %v669, %v670
      %v672 = vrot.slane %v195, 2
      %v673 = vsel %vm668, %v670, %v672
      %v674 = vrot.slane %v196, 2
      %v675 = vsel %vm668, %v672, %v674
      %v676 = vrot.slane %v197, 2
      %v677 = vsel %vm668, %v674, %v676
      %v678 = vrot.slane %v198, 2
      %v679 = vsel %vm668, %v676, %v678
      %v680 = vrot.slane %v199, 2
      %v681 = vsel %vm668, %v678, %v680
      %v682 = vrot.slane %v200, 2
      %v683 = vsel %vm668, %v680, %v682
      %v684 = vrot.slane %v201, 2
      %v685 = vsel %vm668, %v682, %v684
      %v686 = vrot.slane %v202, 2
      %v687 = vsel %vm668, %v684, %v686
      %v688 = vrot.slane %v203, 2
      %v689 = vsel %vm668, %v686, %v688
      %v690 = vrot.slane %v204, 2
      %v691 = vsel %vm668, %v688, %v690
      %v692 = vrot.slane %v205, 2
      %v693 = vsel %vm668, %v690, %v692
      %v694 = vrot.slane %v206, 2
      %v695 = vsel %vm668, %v692, %v694
      %v696 = vrot.slane %v207, 2
      %v697 = vsel %vm668, %v694, %v696
      %v698 = vrot.slane %v208, 2
      %v699 = vsel %vm668, %v696, %v698
      %v700 = vrot.slane %v209, 2
      %v701 = vsel %vm668, %v698, %v700
      %v702 = vrot.slane %v210, 2
      %v703 = vsel %vm668, %v700, %v702
      %v704 = vrot.slane %v211, 2
      %v705 = vsel %vm668, %v702, %v704
      %v706 = vsel %vm276, %v671, 0
      %v708 = vsel %vm276, %v673, 0
      %v710 = vsel %vm276, %v675, 0
      %v712 = vsel %vm276, %v677, 0
      %v714 = vsel %vm276, %v679, 0
      %v716 = vsel %vm276, %v681, 0
      %v718 = vsel %vm276, %v683, 0
      %v720 = vsel %vm276, %v685, 0
      %v722 = vsel %vm276, %v687, 0
      %v724 = vsel %vm276, %v689, 0
      %v726 = vsel %vm276, %v691, 0
      %v728 = vsel %vm276, %v693, 0
      %v730 = vsel %vm276, %v695, 0
      %v732 = vsel %vm276, %v697, 0
      %v734 = vsel %vm276, %v699, 0
      %v736 = vsel %vm276, %v701, 0
      %v738 = vsel %vm276, %v703, 0
      %v740 = vsel %vm276, %v705, 0
      %v743 = vsel %vm313, %v667, 0
      %745 = vmatprep.subr.mxu0 0.0
      %746 = vmatpush1.msra.mxu0 %v743
      %747 = vmatprep.subr.mxu0 0.0
      %748 = vmatpush1.msra.mxu0 0.0
      %749 = vmatprep.subr.mxu0 0.0
      %750 = vmatpush1.msra.mxu0 0.0
      %751 = vmatprep.subr.mxu0 0.0
      %752 = vmatpush1.msra.mxu0 0.0
      %753 = vmatprep.subr.mxu0 0.0
      %754 = vmatpush1.msra.mxu0 0.0
      %755 = vmatprep.subr.mxu0 0.0
      %756 = vmatpush1.msra.mxu0 0.0
      %757 = vmatprep.subr.mxu0 0.0
      %758 = vmatpush1.msra.mxu0 0.0
      %759 = vmatprep.subr.mxu0 0.0
      %760 = vmatpush1.msra.mxu0 0.0
      %761 = vmatprep.subr.mxu0 0.0
      %762 = vmatpush1.msra.mxu0 0.0
      %763 = vmatprep.subr.mxu0 0.0
      %764 = vmatpush1.msra.mxu0 0.0
      %765 = vmatprep.subr.mxu0 0.0
      %766 = vmatpush1.msra.mxu0 0.0
      %767 = vmatprep.subr.mxu0 0.0
      %768 = vmatpush1.msra.mxu0 0.0
      %769 = vmatprep.subr.mxu0 0.0
      %770 = vmatpush1.msra.mxu0 0.0
      %771 = vmatprep.subr.mxu0 0.0
      %772 = vmatpush1.msra.mxu0 0.0
      %773 = vmatprep.subr.mxu0 0.0
      %774 = vmatpush1.msra.mxu0 0.0
      %775 = vmatprep.subr.mxu0 0.0
      %776 = vmatpush1.msra.mxu0 0.0
      %777 = vmatprep.subr.mxu0 0.0
      %778 = vmatpush1.msra.mxu0 0.0
      %779 = vmatprep.subr.mxu0 0.0
      %780 = vmatpush1.msra.mxu0 0.0
      %781 = vmatprep.subr.mxu0 0.0
      %782 = vmatpush1.msra.mxu0 0.0
      %783 = vmatprep.subr.mxu0 0.0
      %784 = vmatpush1.msra.mxu0 0.0
      %785 = vmatprep.subr.mxu0 0.0
      %786 = vmatpush1.msra.mxu0 0.0
      %787 = vmatprep.subr.mxu0 0.0
      %788 = vmatpush1.msra.mxu0 0.0
      %789 = vmatprep.subr.mxu0 0.0
      %790 = vmatpush1.msra.mxu0 0.0
      %791 = vmatprep.subr.mxu0 0.0
      %792 = vmatpush1.msra.mxu0 0.0
      %793 = vmatprep.subr.mxu0 0.0
      %794 = vmatpush1.msra.mxu0 0.0
      %795 = vmatprep.subr.mxu0 0.0
      %796 = vmatpush1.msra.mxu0 0.0
      %797 = vmatprep.subr.mxu0 0.0
      %798 = vmatpush1.msra.mxu0 0.0
      %799 = vmatprep.subr.mxu0 0.0
      %800 = vmatpush1.msra.mxu0 0.0
      %801 = vmatprep.subr.mxu0 0.0
      %802 = vmatpush1.msra.mxu0 0.0
      %803 = vmatprep.subr.mxu0 0.0
      %804 = vmatpush1.msra.mxu0 0.0
      %805 = vmatprep.subr.mxu0 0.0
      %806 = vmatpush1.msra.mxu0 0.0
      %807 = vmatprep.subr.mxu0 0.0
      %808 = vmatpush1.msra.mxu0 0.0
      %809 = vmatprep.mubr.f32.mxu0 0.0
      %810 = vmatmul.mubr.f32.gmra.mrb[0].mxu0 %v706
      %v811 = vpop.f32.mrb[0].mxu0
      %v812 = vadd.f32 0.0, %v811
      %v813 = vpop.f32.mrb[0].mxu0
      %814 = vmatprep.mubr.f32.mxu0 0.0
      %815 = vmatmul.mubr.f32.gmra.mrb[0].mxu0 %v708
      %v816 = vpop.f32.mrb[0].mxu0
      %v817 = vadd.f32 0.0, %v816
      %v818 = vpop.f32.mrb[0].mxu0
      %819 = vmatprep.mubr.f32.mxu0 0.0
      %820 = vmatmul.mubr.f32.gmra.mrb[0].mxu0 %v710
      %v821 = vpop.f32.mrb[0].mxu0
      %v822 = vadd.f32 0.0, %v821
      %v823 = vpop.f32.mrb[0].mxu0
      %824 = vmatprep.mubr.f32.mxu0 0.0
      %825 = vmatmul.mubr.f32.gmra.mrb[0].mxu0 %v712
      %v826 = vpop.f32.mrb[0].mxu0
      %v827 = vadd.f32 0.0, %v826
      %v828 = vpop.f32.mrb[0].mxu0
      %829 = vmatprep.mubr.f32.mxu0 0.0
      %830 = vmatmul.mubr.f32.gmra.mrb[0].mxu0 %v714
      %v831 = vpop.f32.mrb[0].mxu0
      %v832 = vadd.f32 0.0, %v831
      %v833 = vpop.f32.mrb[0].mxu0
      %834 = vmatprep.mubr.f32.mxu0 0.0
      %835 = vmatmul.mubr.f32.gmra.mrb[0].mxu0 %v716
      %v836 = vpop.f32.mrb[0].mxu0
      %v837 = vadd.f32 0.0, %v836
      %v838 = vpop.f32.mrb[0].mxu0
      %839 = vmatprep.mubr.f32.mxu0 0.0
      %840 = vmatmul.mubr.f32.gmra.mrb[0].mxu0 %v718
      %v841 = vpop.f32.mrb[0].mxu0
      %v842 = vadd.f32 0.0, %v841
      %v843 = vpop.f32.mrb[0].mxu0
      %844 = vmatprep.mubr.f32.mxu0 0.0
      %845 = vmatmul.mubr.f32.gmra.mrb[0].mxu0 %v720
      %v846 = vpop.f32.mrb[0].mxu0
      %v847 = vadd.f32 0.0, %v846
      %v848 = vpop.f32.mrb[0].mxu0
      %849 = vmatprep.mubr.f32.mxu0 0.0
      %850 = vmatmul.mubr.f32.gmra.mrb[0].mxu0 %v722
      %v851 = vpop.f32.mrb[0].mxu0
      %v852 = vadd.f32 0.0, %v851
      %v853 = vpop.f32.mrb[0].mxu0
      %854 = vmatprep.mubr.f32.mxu0 0.0
      %855 = vmatmul.mubr.f32.gmra.mrb[0].mxu0 %v724
      %v856 = vpop.f32.mrb[0].mxu0
      %v857 = vadd.f32 0.0, %v856
      %v858 = vpop.f32.mrb[0].mxu0
      %859 = vmatprep.mubr.f32.mxu0 0.0
      %860 = vmatmul.mubr.f32.gmra.mrb[0].mxu0 %v726
      %v861 = vpop.f32.mrb[0].mxu0
      %v862 = vadd.f32 0.0, %v861
      %v863 = vpop.f32.mrb[0].mxu0
      %864 = vmatprep.mubr.f32.mxu0 0.0
      %865 = vmatmul.mubr.f32.gmra.mrb[0].mxu0 %v728
      %v866 = vpop.f32.mrb[0].mxu0
      %v867 = vadd.f32 0.0, %v866
      %v868 = vpop.f32.mrb[0].mxu0
      %869 = vmatprep.mubr.f32.mxu0 0.0
      %870 = vmatmul.mubr.f32.gmra.mrb[0].mxu0 %v730
      %v871 = vpop.f32.mrb[0].mxu0
      %v872 = vadd.f32 0.0, %v871
      %v873 = vpop.f32.mrb[0].mxu0
      %874 = vmatprep.mubr.f32.mxu0 0.0
      %875 = vmatmul.mubr.f32.gmra.mrb[0].mxu0 %v732
      %v876 = vpop.f32.mrb[0].mxu0
      %v877 = vadd.f32 0.0, %v876
      %v878 = vpop.f32.mrb[0].mxu0
      %879 = vmatprep.mubr.f32.mxu0 0.0
      %880 = vmatmul.mubr.f32.gmra.mrb[0].mxu0 %v734
      %v881 = vpop.f32.mrb[0].mxu0
      %v882 = vadd.f32 0.0, %v881
      %v883 = vpop.f32.mrb[0].mxu0
      %884 = vmatprep.mubr.f32.mxu0 0.0
      %885 = vmatmul.mubr.f32.gmra.mrb[0].mxu0 %v736
      %v886 = vpop.f32.mrb[0].mxu0
      %v887 = vadd.f32 0.0, %v886
      %v888 = vpop.f32.mrb[0].mxu0
      %889 = vmatprep.mubr.f32.mxu0 0.0
      %890 = vmatmul.mubr.f32.gmra.mrb[0].mxu0 %v738
      %v891 = vpop.f32.mrb[0].mxu0
      %v892 = vadd.f32 0.0, %v891
      %v893 = vpop.f32.mrb[0].mxu0
      %894 = vmatprep.mubr.f32.mxu0 0.0
      %895 = vmatmul.mubr.f32.gmra.mrb[0].mxu0 %v740
      %v896 = vpop.f32.mrb[0].mxu0
      %v897 = vadd.f32 0.0, %v896
      %v898 = vpop.f32.mrb[0].mxu0
      %899 = vdwg.mxu0
      %v900 = vadd.f32 %v578, %v812
      %v901 = vadd.f32 %v583, %v817
      %v902 = vadd.f32 %v588, %v822
      %v903 = vadd.f32 %v593, %v827
      %v904 = vadd.f32 %v598, %v832
      %v905 = vadd.f32 %v603, %v837
      %v906 = vadd.f32 %v608, %v842
      %v907 = vadd.f32 %v613, %v847
      %v908 = vadd.f32 %v618, %v852
      %v909 = vadd.f32 %v623, %v857
      %v910 = vadd.f32 %v628, %v862
      %v911 = vadd.f32 %v633, %v867
      %v912 = vadd.f32 %v638, %v872
      %v913 = vadd.f32 %v643, %v877
      %v914 = vadd.f32 %v648, %v882
      %v915 = vadd.f32 %v653, %v887
      %v916 = vadd.f32 %v658, %v892
      %v917 = vadd.f32 %v663, %v897
      %s918 = scalar_lea.vmem %s1, 12
      %v919 = vld [vmem:[%s918] sm:$0xf]
      %v922 = vrot.slane %v212, 2
      %v923 = vsel %vm668, %v704, %v922
      %v924 = vrot.slane %v213, 2
      %v925 = vsel %vm668, %v922, %v924
      %v926 = vsel %vm276, %v923, 0
      %v928 = vsel %vm276, %v925, 0
      %v931 = vsel %vm313, %v919, 0
      %933 = vmatprep.subr.mxu0 0.0
      %934 = vmatpush1.msra.mxu0 %v931
      %935 = vmatprep.subr.mxu0 0.0
      %936 = vmatpush1.msra.mxu0 0.0
      %937 = vmatprep.subr.mxu0 0.0
      %938 = vmatpush1.msra.mxu0 0.0
      %939 = vmatprep.subr.mxu0 0.0
      %940 = vmatpush1.msra.mxu0 0.0
      %941 = vmatprep.subr.mxu0 0.0
      %942 = vmatpush1.msra.mxu0 0.0
      %943 = vmatprep.subr.mxu0 0.0
      %944 = vmatpush1.msra.mxu0 0.0
      %945 = vmatprep.subr.mxu0 0.0
      %946 = vmatpush1.msra.mxu0 0.0
      %947 = vmatprep.subr.mxu0 0.0
      %948 = vmatpush1.msra.mxu0 0.0
      %949 = vmatprep.subr.mxu0 0.0
      %950 = vmatpush1.msra.mxu0 0.0
      %951 = vmatprep.subr.mxu0 0.0
      %952 = vmatpush1.msra.mxu0 0.0
      %953 = vmatprep.subr.mxu0 0.0
      %954 = vmatpush1.msra.mxu0 0.0
      %955 = vmatprep.subr.mxu0 0.0
      %956 = vmatpush1.msra.mxu0 0.0
      %957 = vmatprep.subr.mxu0 0.0
      %958 = vmatpush1.msra.mxu0 0.0
      %959 = vmatprep.subr.mxu0 0.0
      %960 = vmatpush1.msra.mxu0 0.0
      %961 = vmatprep.subr.mxu0 0.0
      %962 = vmatpush1.msra.mxu0 0.0
      %963 = vmatprep.subr.mxu0 0.0
      %964 = vmatpush1.msra.mxu0 0.0
      %965 = vmatprep.subr.mxu0 0.0
      %966 = vmatpush1.msra.mxu0 0.0
      %967 = vmatprep.subr.mxu0 0.0
      %968 = vmatpush1.msra.mxu0 0.0
      %969 = vmatprep.subr.mxu0 0.0
      %970 = vmatpush1.msra.mxu0 0.0
      %971 = vmatprep.subr.mxu0 0.0
      %972 = vmatpush1.msra.mxu0 0.0
      %973 = vmatprep.subr.mxu0 0.0
      %974 = vmatpush1.msra.mxu0 0.0
      %975 = vmatprep.subr.mxu0 0.0
      %976 = vmatpush1.msra.mxu0 0.0
      %977 = vmatprep.subr.mxu0 0.0
      %978 = vmatpush1.msra.mxu0 0.0
      %979 = vmatprep.subr.mxu0 0.0
      %980 = vmatpush1.msra.mxu0 0.0
      %981 = vmatprep.subr.mxu0 0.0
      %982 = vmatpush1.msra.mxu0 0.0
      %983 = vmatprep.subr.mxu0 0.0
      %984 = vmatpush1.msra.mxu0 0.0
      %985 = vmatprep.subr.mxu0 0.0
      %986 = vmatpush1.msra.mxu0 0.0
      %987 = vmatprep.subr.mxu0 0.0
      %988 = vmatpush1.msra.mxu0 0.0
      %989 = vmatprep.subr.mxu0 0.0
      %990 = vmatpush1.msra.mxu0 0.0
      %991 = vmatprep.subr.mxu0 0.0
      %992 = vmatpush1.msra.mxu0 0.0
      %993 = vmatprep.subr.mxu0 0.0
      %994 = vmatpush1.msra.mxu0 0.0
      %995 = vmatprep.subr.mxu0 0.0
      %996 = vmatpush1.msra.mxu0 0.0
      %997 = vmatprep.mubr.f32.mxu0 0.0
      %998 = vmatmul.mubr.f32.gmra.mrb[0].mxu0 %v710
      %v999 = vpop.f32.mrb[0].mxu0
      %v1000 = vadd.f32 0.0, %v999
      %v1001 = vpop.f32.mrb[0].mxu0
      %1002 = vmatprep.mubr.f32.mxu0 0.0
      %1003 = vmatmul.mubr.f32.gmra.mrb[0].mxu0 %v712
      %v1004 = vpop.f32.mrb[0].mxu0
      %v1005 = vadd.f32 0.0, %v1004
      %v1006 = vpop.f32.mrb[0].mxu0
      %1007 = vmatprep.mubr.f32.mxu0 0.0
      %1008 = vmatmul.mubr.f32.gmra.mrb[0].mxu0 %v714
      %v1009 = vpop.f32.mrb[0].mxu0
      %v1010 = vadd.f32 0.0, %v1009
      %v1011 = vpop.f32.mrb[0].mxu0
      %1012 = vmatprep.mubr.f32.mxu0 0.0
      %1013 = vmatmul.mubr.f32.gmra.mrb[0].mxu0 %v716
      %v1014 = vpop.f32.mrb[0].mxu0
      %v1015 = vadd.f32 0.0, %v1014
      %v1016 = vpop.f32.mrb[0].mxu0
      %1017 = vmatprep.mubr.f32.mxu0 0.0
      %1018 = vmatmul.mubr.f32.gmra.mrb[0].mxu0 %v718
      %v1019 = vpop.f32.mrb[0].mxu0
      %v1020 = vadd.f32 0.0, %v1019
      %v1021 = vpop.f32.mrb[0].mxu0
      %1022 = vmatprep.mubr.f32.mxu0 0.0
      %1023 = vmatmul.mubr.f32.gmra.mrb[0].mxu0 %v720
      %v1024 = vpop.f32.mrb[0].mxu0
      %v1025 = vadd.f32 0.0, %v1024
      %v1026 = vpop.f32.mrb[0].mxu0
      %1027 = vmatprep.mubr.f32.mxu0 0.0
      %1028 = vmatmul.mubr.f32.gmra.mrb[0].mxu0 %v722
      %v1029 = vpop.f32.mrb[0].mxu0
      %v1030 = vadd.f32 0.0, %v1029
      %v1031 = vpop.f32.mrb[0].mxu0
      %1032 = vmatprep.mubr.f32.mxu0 0.0
      %1033 = vmatmul.mubr.f32.gmra.mrb[0].mxu0 %v724
      %v1034 = vpop.f32.mrb[0].mxu0
      %v1035 = vadd.f32 0.0, %v1034
      %v1036 = vpop.f32.mrb[0].mxu0
      %1037 = vmatprep.mubr.f32.mxu0 0.0
      %1038 = vmatmul.mubr.f32.gmra.mrb[0].mxu0 %v726
      %v1039 = vpop.f32.mrb[0].mxu0
      %v1040 = vadd.f32 0.0, %v1039
      %v1041 = vpop.f32.mrb[0].mxu0
      %1042 = vmatprep.mubr.f32.mxu0 0.0
      %1043 = vmatmul.mubr.f32.gmra.mrb[0].mxu0 %v728
      %v1044 = vpop.f32.mrb[0].mxu0
      %v1045 = vadd.f32 0.0, %v1044
      %v1046 = vpop.f32.mrb[0].mxu0
      %1047 = vmatprep.mubr.f32.mxu0 0.0
      %1048 = vmatmul.mubr.f32.gmra.mrb[0].mxu0 %v730
      %v1049 = vpop.f32.mrb[0].mxu0
      %v1050 = vadd.f32 0.0, %v1049
      %v1051 = vpop.f32.mrb[0].mxu0
      %1052 = vmatprep.mubr.f32.mxu0 0.0
      %1053 = vmatmul.mubr.f32.gmra.mrb[0].mxu0 %v732
      %v1054 = vpop.f32.mrb[0].mxu0
      %v1055 = vadd.f32 0.0, %v1054
      %v1056 = vpop.f32.mrb[0].mxu0
      %1057 = vmatprep.mubr.f32.mxu0 0.0
      %1058 = vmatmul.mubr.f32.gmra.mrb[0].mxu0 %v734
      %v1059 = vpop.f32.mrb[0].mxu0
      %v1060 = vadd.f32 0.0, %v1059
      %v1061 = vpop.f32.mrb[0].mxu0
      %1062 = vmatprep.mubr.f32.mxu0 0.0
      %1063 = vmatmul.mubr.f32.gmra.mrb[0].mxu0 %v736
      %v1064 = vpop.f32.mrb[0].mxu0
      %v1065 = vadd.f32 0.0, %v1064
      %v1066 = vpop.f32.mrb[0].mxu0
      %1067 = vmatprep.mubr.f32.mxu0 0.0
      %1068 = vmatmul.mubr.f32.gmra.mrb[0].mxu0 %v738
      %v1069 = vpop.f32.mrb[0].mxu0
      %v1070 = vadd.f32 0.0, %v1069
      %v1071 = vpop.f32.mrb[0].mxu0
      %1072 = vmatprep.mubr.f32.mxu0 0.0
      %1073 = vmatmul.mubr.f32.gmra.mrb[0].mxu0 %v740
      %v1074 = vpop.f32.mrb[0].mxu0
      %v1075 = vadd.f32 0.0, %v1074
      %v1076 = vpop.f32.mrb[0].mxu0
      %1077 = vmatprep.mubr.f32.mxu0 0.0
      %1078 = vmatmul.mubr.f32.gmra.mrb[0].mxu0 %v926
      %v1079 = vpop.f32.mrb[0].mxu0
      %v1080 = vadd.f32 0.0, %v1079
      %v1081 = vpop.f32.mrb[0].mxu0
      %1082 = vmatprep.mubr.f32.mxu0 0.0
      %1083 = vmatmul.mubr.f32.gmra.mrb[0].mxu0 %v928
      %v1084 = vpop.f32.mrb[0].mxu0
      %v1085 = vadd.f32 0.0, %v1084
      %v1086 = vpop.f32.mrb[0].mxu0
      %1087 = vdwg.mxu0
      %v1088 = vadd.f32 %v900, %v1000
      %v1089 = vadd.f32 %v901, %v1005
      %v1090 = vadd.f32 %v902, %v1010
      %v1091 = vadd.f32 %v903, %v1015
      %v1092 = vadd.f32 %v904, %v1020
      %v1093 = vadd.f32 %v905, %v1025
      %v1094 = vadd.f32 %v906, %v1030
      %v1095 = vadd.f32 %v907, %v1035
      %v1096 = vadd.f32 %v908, %v1040
      %v1097 = vadd.f32 %v909, %v1045
      %v1098 = vadd.f32 %v910, %v1050
      %v1099 = vadd.f32 %v911, %v1055
      %v1100 = vadd.f32 %v912, %v1060
      %v1101 = vadd.f32 %v913, %v1065
      %v1102 = vadd.f32 %v914, %v1070
      %v1103 = vadd.f32 %v915, %v1075
      %v1104 = vadd.f32 %v916, %v1080
      %v1105 = vadd.f32 %v917, %v1085
      %s1106 = scalar_lea.vmem %s1, 16
      %v1107 = vld [vmem:[%s1106] sm:$0xf]
      %vm1108 = vcmask 1044480
      %v1109 = vrot.slane %v195, 3
      %v1110 = vrot.slane %v196, 3
      %v1111 = vsel %vm1108, %v1109, %v1110
      %v1112 = vrot.slane %v197, 3
      %v1113 = vsel %vm1108, %v1110, %v1112
      %v1114 = vrot.slane %v198, 3
      %v1115 = vsel %vm1108, %v1112, %v1114
      %v1116 = vrot.slane %v199, 3
      %v1117 = vsel %vm1108, %v1114, %v1116
      %v1118 = vrot.slane %v200, 3
      %v1119 = vsel %vm1108, %v1116, %v1118
      %v1120 = vrot.slane %v201, 3
      %v1121 = vsel %vm1108, %v1118, %v1120
      %v1122 = vrot.slane %v202, 3
      %v1123 = vsel %vm1108, %v1120, %v1122
      %v1124 = vrot.slane %v203, 3
      %v1125 = vsel %vm1108, %v1122, %v1124
      %v1126 = vrot.slane %v204, 3
      %v1127 = vsel %vm1108, %v1124, %v1126
      %v1128 = vrot.slane %v205, 3
      %v1129 = vsel %vm1108, %v1126, %v1128
      %v1130 = vrot.slane %v206, 3
      %v1131 = vsel %vm1108, %v1128, %v1130
      %v1132 = vrot.slane %v207, 3
      %v1133 = vsel %vm1108, %v1130, %v1132
      %v1134 = vrot.slane %v208, 3
      %v1135 = vsel %vm1108, %v1132, %v1134
      %v1136 = vrot.slane %v209, 3
      %v1137 = vsel %vm1108, %v1134, %v1136
      %v1138 = vrot.slane %v210, 3
      %v1139 = vsel %vm1108, %v1136, %v1138
      %v1140 = vrot.slane %v211, 3
      %v1141 = vsel %vm1108, %v1138, %v1140
      %v1142 = vrot.slane %v212, 3
      %v1143 = vsel %vm1108, %v1140, %v1142
      %v1144 = vrot.slane %v213, 3
      %v1145 = vsel %vm1108, %v1142, %v1144
      %v1146 = vsel %vm276, %v1111, 0
      %v1148 = vsel %vm276, %v1113, 0
      %v1150 = vsel %vm276, %v1115, 0
      %v1152 = vsel %vm276, %v1117, 0
      %v1154 = vsel %vm276, %v1119, 0
      %v1156 = vsel %vm276, %v1121, 0
      %v1158 = vsel %vm276, %v1123, 0
      %v1160 = vsel %vm276, %v1125, 0
      %v1162 = vsel %vm276, %v1127, 0
      %v1164 = vsel %vm276, %v1129, 0
      %v1166 = vsel %vm276, %v1131, 0
      %v1168 = vsel %vm276, %v1133, 0
      %v1170 = vsel %vm276, %v1135, 0
      %v1172 = vsel %vm276, %v1137, 0
      %v1174 = vsel %vm276, %v1139, 0
      %v1176 = vsel %vm276, %v1141, 0
      %v1178 = vsel %vm276, %v1143, 0
      %v1180 = vsel %vm276, %v1145, 0
      %v1183 = vsel %vm313, %v1107, 0
      %1185 = vmatprep.subr.mxu0 0.0
      %1186 = vmatpush1.msra.mxu0 %v1183
      %1187 = vmatprep.subr.mxu0 0.0
      %1188 = vmatpush1.msra.mxu0 0.0
      %1189 = vmatprep.subr.mxu0 0.0
      %1190 = vmatpush1.msra.mxu0 0.0
      %1191 = vmatprep.subr.mxu0 0.0
      %1192 = vmatpush1.msra.mxu0 0.0
      %1193 = vmatprep.subr.mxu0 0.0
      %1194 = vmatpush1.msra.mxu0 0.0
      %1195 = vmatprep.subr.mxu0 0.0
      %1196 = vmatpush1.msra.mxu0 0.0
      %1197 = vmatprep.subr.mxu0 0.0
      %1198 = vmatpush1.msra.mxu0 0.0
      %1199 = vmatprep.subr.mxu0 0.0
      %1200 = vmatpush1.msra.mxu0 0.0
      %1201 = vmatprep.subr.mxu0 0.0
      %1202 = vmatpush1.msra.mxu0 0.0
      %1203 = vmatprep.subr.mxu0 0.0
      %1204 = vmatpush1.msra.mxu0 0.0
      %1205 = vmatprep.subr.mxu0 0.0
      %1206 = vmatpush1.msra.mxu0 0.0
      %1207 = vmatprep.subr.mxu0 0.0
      %1208 = vmatpush1.msra.mxu0 0.0
      %1209 = vmatprep.subr.mxu0 0.0
      %1210 = vmatpush1.msra.mxu0 0.0
      %1211 = vmatprep.subr.mxu0 0.0
      %1212 = vmatpush1.msra.mxu0 0.0
      %1213 = vmatprep.subr.mxu0 0.0
      %1214 = vmatpush1.msra.mxu0 0.0
      %1215 = vmatprep.subr.mxu0 0.0
      %1216 = vmatpush1.msra.mxu0 0.0
      %1217 = vmatprep.subr.mxu0 0.0
      %1218 = vmatpush1.msra.mxu0 0.0
      %1219 = vmatprep.subr.mxu0 0.0
      %1220 = vmatpush1.msra.mxu0 0.0
      %1221 = vmatprep.subr.mxu0 0.0
      %1222 = vmatpush1.msra.mxu0 0.0
      %1223 = vmatprep.subr.mxu0 0.0
      %1224 = vmatpush1.msra.mxu0 0.0
      %1225 = vmatprep.subr.mxu0 0.0
      %1226 = vmatpush1.msra.mxu0 0.0
      %1227 = vmatprep.subr.mxu0 0.0
      %1228 = vmatpush1.msra.mxu0 0.0
      %1229 = vmatprep.subr.mxu0 0.0
      %1230 = vmatpush1.msra.mxu0 0.0
      %1231 = vmatprep.subr.mxu0 0.0
      %1232 = vmatpush1.msra.mxu0 0.0
      %1233 = vmatprep.subr.mxu0 0.0
      %1234 = vmatpush1.msra.mxu0 0.0
      %1235 = vmatprep.subr.mxu0 0.0
      %1236 = vmatpush1.msra.mxu0 0.0
      %1237 = vmatprep.subr.mxu0 0.0
      %1238 = vmatpush1.msra.mxu0 0.0
      %1239 = vmatprep.subr.mxu0 0.0
      %1240 = vmatpush1.msra.mxu0 0.0
      %1241 = vmatprep.subr.mxu0 0.0
      %1242 = vmatpush1.msra.mxu0 0.0
      %1243 = vmatprep.subr.mxu0 0.0
      %1244 = vmatpush1.msra.mxu0 0.0
      %1245 = vmatprep.subr.mxu0 0.0
      %1246 = vmatpush1.msra.mxu0 0.0
      %1247 = vmatprep.subr.mxu0 0.0
      %1248 = vmatpush1.msra.mxu0 0.0
      %1249 = vmatprep.mubr.f32.mxu0 0.0
      %1250 = vmatmul.mubr.f32.gmra.mrb[0].mxu0 %v1146
      %v1251 = vpop.f32.mrb[0].mxu0
      %v1252 = vadd.f32 0.0, %v1251
      %v1253 = vpop.f32.mrb[0].mxu0
      %1254 = vmatprep.mubr.f32.mxu0 0.0
      %1255 = vmatmul.mubr.f32.gmra.mrb[0].mxu0 %v1148
      %v1256 = vpop.f32.mrb[0].mxu0
      %v1257 = vadd.f32 0.0, %v1256
      %v1258 = vpop.f32.mrb[0].mxu0
      %1259 = vmatprep.mubr.f32.mxu0 0.0
      %1260 = vmatmul.mubr.f32.gmra.mrb[0].mxu0 %v1150
      %v1261 = vpop.f32.mrb[0].mxu0
      %v1262 = vadd.f32 0.0, %v1261
      %v1263 = vpop.f32.mrb[0].mxu0
      %1264 = vmatprep.mubr.f32.mxu0 0.0
      %1265 = vmatmul.mubr.f32.gmra.mrb[0].mxu0 %v1152
      %v1266 = vpop.f32.mrb[0].mxu0
      %v1267 = vadd.f32 0.0, %v1266
      %v1268 = vpop.f32.mrb[0].mxu0
      %1269 = vmatprep.mubr.f32.mxu0 0.0
      %1270 = vmatmul.mubr.f32.gmra.mrb[0].mxu0 %v1154
      %v1271 = vpop.f32.mrb[0].mxu0
      %v1272 = vadd.f32 0.0, %v1271
      %v1273 = vpop.f32.mrb[0].mxu0
      %1274 = vmatprep.mubr.f32.mxu0 0.0
      %1275 = vmatmul.mubr.f32.gmra.mrb[0].mxu0 %v1156
      %v1276 = vpop.f32.mrb[0].mxu0
      %v1277 = vadd.f32 0.0, %v1276
      %v1278 = vpop.f32.mrb[0].mxu0
      %1279 = vmatprep.mubr.f32.mxu0 0.0
      %1280 = vmatmul.mubr.f32.gmra.mrb[0].mxu0 %v1158
      %v1281 = vpop.f32.mrb[0].mxu0
      %v1282 = vadd.f32 0.0, %v1281
      %v1283 = vpop.f32.mrb[0].mxu0
      %1284 = vmatprep.mubr.f32.mxu0 0.0
      %1285 = vmatmul.mubr.f32.gmra.mrb[0].mxu0 %v1160
      %v1286 = vpop.f32.mrb[0].mxu0
      %v1287 = vadd.f32 0.0, %v1286
      %v1288 = vpop.f32.mrb[0].mxu0
      %1289 = vmatprep.mubr.f32.mxu0 0.0
      %1290 = vmatmul.mubr.f32.gmra.mrb[0].mxu0 %v1162
      %v1291 = vpop.f32.mrb[0].mxu0
      %v1292 = vadd.f32 0.0, %v1291
      %v1293 = vpop.f32.mrb[0].mxu0
      %1294 = vmatprep.mubr.f32.mxu0 0.0
      %1295 = vmatmul.mubr.f32.gmra.mrb[0].mxu0 %v1164
      %v1296 = vpop.f32.mrb[0].mxu0
      %v1297 = vadd.f32 0.0, %v1296
      %v1298 = vpop.f32.mrb[0].mxu0
      %1299 = vmatprep.mubr.f32.mxu0 0.0
      %1300 = vmatmul.mubr.f32.gmra.mrb[0].mxu0 %v1166
      %v1301 = vpop.f32.mrb[0].mxu0
      %v1302 = vadd.f32 0.0, %v1301
      %v1303 = vpop.f32.mrb[0].mxu0
      %1304 = vmatprep.mubr.f32.mxu0 0.0
      %1305 = vmatmul.mubr.f32.gmra.mrb[0].mxu0 %v1168
      %v1306 = vpop.f32.mrb[0].mxu0
      %v1307 = vadd.f32 0.0, %v1306
      %v1308 = vpop.f32.mrb[0].mxu0
      %1309 = vmatprep.mubr.f32.mxu0 0.0
      %1310 = vmatmul.mubr.f32.gmra.mrb[0].mxu0 %v1170
      %v1311 = vpop.f32.mrb[0].mxu0
      %v1312 = vadd.f32 0.0, %v1311
      %v1313 = vpop.f32.mrb[0].mxu0
      %1314 = vmatprep.mubr.f32.mxu0 0.0
      %1315 = vmatmul.mubr.f32.gmra.mrb[0].mxu0 %v1172
      %v1316 = vpop.f32.mrb[0].mxu0
      %v1317 = vadd.f32 0.0, %v1316
      %v1318 = vpop.f32.mrb[0].mxu0
      %1319 = vmatprep.mubr.f32.mxu0 0.0
      %1320 = vmatmul.mubr.f32.gmra.mrb[0].mxu0 %v1174
      %v1321 = vpop.f32.mrb[0].mxu0
      %v1322 = vadd.f32 0.0, %v1321
      %v1323 = vpop.f32.mrb[0].mxu0
      %1324 = vmatprep.mubr.f32.mxu0 0.0
      %1325 = vmatmul.mubr.f32.gmra.mrb[0].mxu0 %v1176
      %v1326 = vpop.f32.mrb[0].mxu0
      %v1327 = vadd.f32 0.0, %v1326
      %v1328 = vpop.f32.mrb[0].mxu0
      %1329 = vmatprep.mubr.f32.mxu0 0.0
      %1330 = vmatmul.mubr.f32.gmra.mrb[0].mxu0 %v1178
      %v1331 = vpop.f32.mrb[0].mxu0
      %v1332 = vadd.f32 0.0, %v1331
      %v1333 = vpop.f32.mrb[0].mxu0
      %1334 = vmatprep.mubr.f32.mxu0 0.0
      %1335 = vmatmul.mubr.f32.gmra.mrb[0].mxu0 %v1180
      %v1336 = vpop.f32.mrb[0].mxu0
      %v1337 = vadd.f32 0.0, %v1336
      %v1338 = vpop.f32.mrb[0].mxu0
      %1339 = vdwg.mxu0
      %v1340 = vadd.f32 %v1088, %v1252
      %v1341 = vadd.f32 %v1089, %v1257
      %v1342 = vadd.f32 %v1090, %v1262
      %v1343 = vadd.f32 %v1091, %v1267
      %v1344 = vadd.f32 %v1092, %v1272
      %v1345 = vadd.f32 %v1093, %v1277
      %v1346 = vadd.f32 %v1094, %v1282
      %v1347 = vadd.f32 %v1095, %v1287
      %v1348 = vadd.f32 %v1096, %v1292
      %v1349 = vadd.f32 %v1097, %v1297
      %v1350 = vadd.f32 %v1098, %v1302
      %v1351 = vadd.f32 %v1099, %v1307
      %v1352 = vadd.f32 %v1100, %v1312
      %v1353 = vadd.f32 %v1101, %v1317
      %v1354 = vadd.f32 %v1102, %v1322
      %v1355 = vadd.f32 %v1103, %v1327
      %v1356 = vadd.f32 %v1104, %v1332
      %v1357 = vadd.f32 %v1105, %v1337
      %s1358 = scalar_lea.vmem %s1, 20
      %v1359 = vld [vmem:[%s1358] sm:$0xf]
      %v1360 = vrot.slane %v195, 4
      %v1361 = vrot.slane %v196, 4
      %v1362 = vsel %vm313, %v1360, %v1361
      %v1363 = vrot.slane %v197, 4
      %v1364 = vsel %vm313, %v1361, %v1363
      %v1365 = vrot.slane %v198, 4
      %v1366 = vsel %vm313, %v1363, %v1365
      %v1367 = vrot.slane %v199, 4
      %v1368 = vsel %vm313, %v1365, %v1367
      %v1369 = vrot.slane %v200, 4
      %v1370 = vsel %vm313, %v1367, %v1369
      %v1371 = vrot.slane %v201, 4
      %v1372 = vsel %vm313, %v1369, %v1371
      %v1373 = vrot.slane %v202, 4
      %v1374 = vsel %vm313, %v1371, %v1373
      %v1375 = vrot.slane %v203, 4
      %v1376 = vsel %vm313, %v1373, %v1375
      %v1377 = vrot.slane %v204, 4
      %v1378 = vsel %vm313, %v1375, %v1377
      %v1379 = vrot.slane %v205, 4
      %v1380 = vsel %vm313, %v1377, %v1379
      %v1381 = vrot.slane %v206, 4
      %v1382 = vsel %vm313, %v1379, %v1381
      %v1383 = vrot.slane %v207, 4
      %v1384 = vsel %vm313, %v1381, %v1383
      %v1385 = vrot.slane %v208, 4
      %v1386 = vsel %vm313, %v1383, %v1385
      %v1387 = vrot.slane %v209, 4
      %v1388 = vsel %vm313, %v1385, %v1387
      %v1389 = vrot.slane %v210, 4
      %v1390 = vsel %vm313, %v1387, %v1389
      %v1391 = vrot.slane %v211, 4
      %v1392 = vsel %vm313, %v1389, %v1391
      %v1393 = vrot.slane %v212, 4
      %v1394 = vsel %vm313, %v1391, %v1393
      %v1395 = vrot.slane %v213, 4
      %v1396 = vsel %vm313, %v1393, %v1395
      %v1397 = vsel %vm276, %v1362, 0
      %v1399 = vsel %vm276, %v1364, 0
      %v1401 = vsel %vm276, %v1366, 0
      %v1403 = vsel %vm276, %v1368, 0
      %v1405 = vsel %vm276, %v1370, 0
      %v1407 = vsel %vm276, %v1372, 0
      %v1409 = vsel %vm276, %v1374, 0
      %v1411 = vsel %vm276, %v1376, 0
      %v1413 = vsel %vm276, %v1378, 0
      %v1415 = vsel %vm276, %v1380, 0
      %v1417 = vsel %vm276, %v1382, 0
      %v1419 = vsel %vm276, %v1384, 0
      %v1421 = vsel %vm276, %v1386, 0
      %v1423 = vsel %vm276, %v1388, 0
      %v1425 = vsel %vm276, %v1390, 0
      %v1427 = vsel %vm276, %v1392, 0
      %v1429 = vsel %vm276, %v1394, 0
      %v1431 = vsel %vm276, %v1396, 0
      %v1434 = vsel %vm313, %v1359, 0
      %1436 = vmatprep.subr.mxu0 0.0
      %1437 = vmatpush1.msra.mxu0 %v1434
      %1438 = vmatprep.subr.mxu0 0.0
      %1439 = vmatpush1.msra.mxu0 0.0
      %1440 = vmatprep.subr.mxu0 0.0
      %1441 = vmatpush1.msra.mxu0 0.0
      %1442 = vmatprep.subr.mxu0 0.0
      %1443 = vmatpush1.msra.mxu0 0.0
      %1444 = vmatprep.subr.mxu0 0.0
      %1445 = vmatpush1.msra.mxu0 0.0
      %1446 = vmatprep.subr.mxu0 0.0
      %1447 = vmatpush1.msra.mxu0 0.0
      %1448 = vmatprep.subr.mxu0 0.0
      %1449 = vmatpush1.msra.mxu0 0.0
      %1450 = vmatprep.subr.mxu0 0.0
      %1451 = vmatpush1.msra.mxu0 0.0
      %1452 = vmatprep.subr.mxu0 0.0
      %1453 = vmatpush1.msra.mxu0 0.0
      %1454 = vmatprep.subr.mxu0 0.0
      %1455 = vmatpush1.msra.mxu0 0.0
      %1456 = vmatprep.subr.mxu0 0.0
      %1457 = vmatpush1.msra.mxu0 0.0
      %1458 = vmatprep.subr.mxu0 0.0
      %1459 = vmatpush1.msra.mxu0 0.0
      %1460 = vmatprep.subr.mxu0 0.0
      %1461 = vmatpush1.msra.mxu0 0.0
      %1462 = vmatprep.subr.mxu0 0.0
      %1463 = vmatpush1.msra.mxu0 0.0
      %1464 = vmatprep.subr.mxu0 0.0
      %1465 = vmatpush1.msra.mxu0 0.0
      %1466 = vmatprep.subr.mxu0 0.0
      %1467 = vmatpush1.msra.mxu0 0.0
      %1468 = vmatprep.subr.mxu0 0.0
      %1469 = vmatpush1.msra.mxu0 0.0
      %1470 = vmatprep.subr.mxu0 0.0
      %1471 = vmatpush1.msra.mxu0 0.0
      %1472 = vmatprep.subr.mxu0 0.0
      %1473 = vmatpush1.msra.mxu0 0.0
      %1474 = vmatprep.subr.mxu0 0.0
      %1475 = vmatpush1.msra.mxu0 0.0
      %1476 = vmatprep.subr.mxu0 0.0
      %1477 = vmatpush1.msra.mxu0 0.0
      %1478 = vmatprep.subr.mxu0 0.0
      %1479 = vmatpush1.msra.mxu0 0.0
      %1480 = vmatprep.subr.mxu0 0.0
      %1481 = vmatpush1.msra.mxu0 0.0
      %1482 = vmatprep.subr.mxu0 0.0
      %1483 = vmatpush1.msra.mxu0 0.0
      %1484 = vmatprep.subr.mxu0 0.0
      %1485 = vmatpush1.msra.mxu0 0.0
      %1486 = vmatprep.subr.mxu0 0.0
      %1487 = vmatpush1.msra.mxu0 0.0
      %1488 = vmatprep.subr.mxu0 0.0
      %1489 = vmatpush1.msra.mxu0 0.0
      %1490 = vmatprep.subr.mxu0 0.0
      %1491 = vmatpush1.msra.mxu0 0.0
      %1492 = vmatprep.subr.mxu0 0.0
      %1493 = vmatpush1.msra.mxu0 0.0
      %1494 = vmatprep.subr.mxu0 0.0
      %1495 = vmatpush1.msra.mxu0 0.0
      %1496 = vmatprep.subr.mxu0 0.0
      %1497 = vmatpush1.msra.mxu0 0.0
      %1498 = vmatprep.subr.mxu0 0.0
      %1499 = vmatpush1.msra.mxu0 0.0
      %1500 = vmatprep.mubr.f32.mxu0 0.0
      %1501 = vmatmul.mubr.f32.gmra.mrb[0].mxu0 %v1397
      %v1502 = vpop.f32.mrb[0].mxu0
      %v1503 = vadd.f32 0.0, %v1502
      %v1504 = vpop.f32.mrb[0].mxu0
      %1505 = vmatprep.mubr.f32.mxu0 0.0
      %1506 = vmatmul.mubr.f32.gmra.mrb[0].mxu0 %v1399
      %v1507 = vpop.f32.mrb[0].mxu0
      %v1508 = vadd.f32 0.0, %v1507
      %v1509 = vpop.f32.mrb[0].mxu0
      %1510 = vmatprep.mubr.f32.mxu0 0.0
      %1511 = vmatmul.mubr.f32.gmra.mrb[0].mxu0 %v1401
      %v1512 = vpop.f32.mrb[0].mxu0
      %v1513 = vadd.f32 0.0, %v1512
      %v1514 = vpop.f32.mrb[0].mxu0
      %1515 = vmatprep.mubr.f32.mxu0 0.0
      %1516 = vmatmul.mubr.f32.gmra.mrb[0].mxu0 %v1403
      %v1517 = vpop.f32.mrb[0].mxu0
      %v1518 = vadd.f32 0.0, %v1517
      %v1519 = vpop.f32.mrb[0].mxu0
      %1520 = vmatprep.mubr.f32.mxu0 0.0
      %1521 = vmatmul.mubr.f32.gmra.mrb[0].mxu0 %v1405
      %v1522 = vpop.f32.mrb[0].mxu0
      %v1523 = vadd.f32 0.0, %v1522
      %v1524 = vpop.f32.mrb[0].mxu0
      %1525 = vmatprep.mubr.f32.mxu0 0.0
      %1526 = vmatmul.mubr.f32.gmra.mrb[0].mxu0 %v1407
      %v1527 = vpop.f32.mrb[0].mxu0
      %v1528 = vadd.f32 0.0, %v1527
      %v1529 = vpop.f32.mrb[0].mxu0
      %1530 = vmatprep.mubr.f32.mxu0 0.0
      %1531 = vmatmul.mubr.f32.gmra.mrb[0].mxu0 %v1409
      %v1532 = vpop.f32.mrb[0].mxu0
      %v1533 = vadd.f32 0.0, %v1532
      %v1534 = vpop.f32.mrb[0].mxu0
      %1535 = vmatprep.mubr.f32.mxu0 0.0
      %1536 = vmatmul.mubr.f32.gmra.mrb[0].mxu0 %v1411
      %v1537 = vpop.f32.mrb[0].mxu0
      %v1538 = vadd.f32 0.0, %v1537
      %v1539 = vpop.f32.mrb[0].mxu0
      %1540 = vmatprep.mubr.f32.mxu0 0.0
      %1541 = vmatmul.mubr.f32.gmra.mrb[0].mxu0 %v1413
      %v1542 = vpop.f32.mrb[0].mxu0
      %v1543 = vadd.f32 0.0, %v1542
      %v1544 = vpop.f32.mrb[0].mxu0
      %1545 = vmatprep.mubr.f32.mxu0 0.0
      %1546 = vmatmul.mubr.f32.gmra.mrb[0].mxu0 %v1415
      %v1547 = vpop.f32.mrb[0].mxu0
      %v1548 = vadd.f32 0.0, %v1547
      %v1549 = vpop.f32.mrb[0].mxu0
      %1550 = vmatprep.mubr.f32.mxu0 0.0
      %1551 = vmatmul.mubr.f32.gmra.mrb[0].mxu0 %v1417
      %v1552 = vpop.f32.mrb[0].mxu0
      %v1553 = vadd.f32 0.0, %v1552
      %v1554 = vpop.f32.mrb[0].mxu0
      %1555 = vmatprep.mubr.f32.mxu0 0.0
      %1556 = vmatmul.mubr.f32.gmra.mrb[0].mxu0 %v1419
      %v1557 = vpop.f32.mrb[0].mxu0
      %v1558 = vadd.f32 0.0, %v1557
      %v1559 = vpop.f32.mrb[0].mxu0
      %1560 = vmatprep.mubr.f32.mxu0 0.0
      %1561 = vmatmul.mubr.f32.gmra.mrb[0].mxu0 %v1421
      %v1562 = vpop.f32.mrb[0].mxu0
      %v1563 = vadd.f32 0.0, %v1562
      %v1564 = vpop.f32.mrb[0].mxu0
      %1565 = vmatprep.mubr.f32.mxu0 0.0
      %1566 = vmatmul.mubr.f32.gmra.mrb[0].mxu0 %v1423
      %v1567 = vpop.f32.mrb[0].mxu0
      %v1568 = vadd.f32 0.0, %v1567
      %v1569 = vpop.f32.mrb[0].mxu0
      %1570 = vmatprep.mubr.f32.mxu0 0.0
      %1571 = vmatmul.mubr.f32.gmra.mrb[0].mxu0 %v1425
      %v1572 = vpop.f32.mrb[0].mxu0
      %v1573 = vadd.f32 0.0, %v1572
      %v1574 = vpop.f32.mrb[0].mxu0
      %1575 = vmatprep.mubr.f32.mxu0 0.0
      %1576 = vmatmul.mubr.f32.gmra.mrb[0].mxu0 %v1427
      %v1577 = vpop.f32.mrb[0].mxu0
      %v1578 = vadd.f32 0.0, %v1577
      %v1579 = vpop.f32.mrb[0].mxu0
      %1580 = vmatprep.mubr.f32.mxu0 0.0
      %1581 = vmatmul.mubr.f32.gmra.mrb[0].mxu0 %v1429
      %v1582 = vpop.f32.mrb[0].mxu0
      %v1583 = vadd.f32 0.0, %v1582
      %v1584 = vpop.f32.mrb[0].mxu0
      %1585 = vmatprep.mubr.f32.mxu0 0.0
      %1586 = vmatmul.mubr.f32.gmra.mrb[0].mxu0 %v1431
      %v1587 = vpop.f32.mrb[0].mxu0
      %v1588 = vadd.f32 0.0, %v1587
      %v1589 = vpop.f32.mrb[0].mxu0
      %1590 = vdwg.mxu0
      %v1591 = vadd.f32 %v1340, %v1503
      %v1592 = vadd.f32 %v1341, %v1508
      %v1593 = vadd.f32 %v1342, %v1513
      %v1594 = vadd.f32 %v1343, %v1518
      %v1595 = vadd.f32 %v1344, %v1523
      %v1596 = vadd.f32 %v1345, %v1528
      %v1597 = vadd.f32 %v1346, %v1533
      %v1598 = vadd.f32 %v1347, %v1538
      %v1599 = vadd.f32 %v1348, %v1543
      %v1600 = vadd.f32 %v1349, %v1548
      %v1601 = vadd.f32 %v1350, %v1553
      %v1602 = vadd.f32 %v1351, %v1558
      %v1603 = vadd.f32 %v1352, %v1563
      %v1604 = vadd.f32 %v1353, %v1568
      %v1605 = vadd.f32 %v1354, %v1573
      %v1606 = vadd.f32 %v1355, %v1578
      %v1607 = vadd.f32 %v1356, %v1583
      %v1608 = vadd.f32 %v1357, %v1588
      %s1609 = scalar_lea.vmem %s1, 24
      %v1610 = vld [vmem:[%s1609] sm:$0xf]
      %v1613 = vrot.slane %v214, 4
      %v1614 = vsel %vm313, %v1395, %v1613
      %v1615 = vrot.slane %v215, 4
      %v1616 = vsel %vm313, %v1613, %v1615
      %v1617 = vsel %vm276, %v1614, 0
      %v1619 = vsel %vm276, %v1616, 0
      %v1622 = vsel %vm313, %v1610, 0
      %1624 = vmatprep.subr.mxu0 0.0
      %1625 = vmatpush1.msra.mxu0 %v1622
      %1626 = vmatprep.subr.mxu0 0.0
      %1627 = vmatpush1.msra.mxu0 0.0
      %1628 = vmatprep.subr.mxu0 0.0
      %1629 = vmatpush1.msra.mxu0 0.0
      %1630 = vmatprep.subr.mxu0 0.0
      %1631 = vmatpush1.msra.mxu0 0.0
      %1632 = vmatprep.subr.mxu0 0.0
      %1633 = vmatpush1.msra.mxu0 0.0
      %1634 = vmatprep.subr.mxu0 0.0
      %1635 = vmatpush1.msra.mxu0 0.0
      %1636 = vmatprep.subr.mxu0 0.0
      %1637 = vmatpush1.msra.mxu0 0.0
      %1638 = vmatprep.subr.mxu0 0.0
      %1639 = vmatpush1.msra.mxu0 0.0
      %1640 = vmatprep.subr.mxu0 0.0
      %1641 = vmatpush1.msra.mxu0 0.0
      %1642 = vmatprep.subr.mxu0 0.0
      %1643 = vmatpush1.msra.mxu0 0.0
      %1644 = vmatprep.subr.mxu0 0.0
      %1645 = vmatpush1.msra.mxu0 0.0
      %1646 = vmatprep.subr.mxu0 0.0
      %1647 = vmatpush1.msra.mxu0 0.0
      %1648 = vmatprep.subr.mxu0 0.0
      %1649 = vmatpush1.msra.mxu0 0.0
      %1650 = vmatprep.subr.mxu0 0.0
      %1651 = vmatpush1.msra.mxu0 0.0
      %1652 = vmatprep.subr.mxu0 0.0
      %1653 = vmatpush1.msra.mxu0 0.0
      %1654 = vmatprep.subr.mxu0 0.0
      %1655 = vmatpush1.msra.mxu0 0.0
      %1656 = vmatprep.subr.mxu0 0.0
      %1657 = vmatpush1.msra.mxu0 0.0
      %1658 = vmatprep.subr.mxu0 0.0
      %1659 = vmatpush1.msra.mxu0 0.0
      %1660 = vmatprep.subr.mxu0 0.0
      %1661 = vmatpush1.msra.mxu0 0.0
      %1662 = vmatprep.subr.mxu0 0.0
      %1663 = vmatpush1.msra.mxu0 0.0
      %1664 = vmatprep.subr.mxu0 0.0
      %1665 = vmatpush1.msra.mxu0 0.0
      %1666 = vmatprep.subr.mxu0 0.0
      %1667 = vmatpush1.msra.mxu0 0.0
      %1668 = vmatprep.subr.mxu0 0.0
      %1669 = vmatpush1.msra.mxu0 0.0
      %1670 = vmatprep.subr.mxu0 0.0
      %1671 = vmatpush1.msra.mxu0 0.0
      %1672 = vmatprep.subr.mxu0 0.0
      %1673 = vmatpush1.msra.mxu0 0.0
      %1674 = vmatprep.subr.mxu0 0.0
      %1675 = vmatpush1.msra.mxu0 0.0
      %1676 = vmatprep.subr.mxu0 0.0
      %1677 = vmatpush1.msra.mxu0 0.0
      %1678 = vmatprep.subr.mxu0 0.0
      %1679 = vmatpush1.msra.mxu0 0.0
      %1680 = vmatprep.subr.mxu0 0.0
      %1681 = vmatpush1.msra.mxu0 0.0
      %1682 = vmatprep.subr.mxu0 0.0
      %1683 = vmatpush1.msra.mxu0 0.0
      %1684 = vmatprep.subr.mxu0 0.0
      %1685 = vmatpush1.msra.mxu0 0.0
      %1686 = vmatprep.subr.mxu0 0.0
      %1687 = vmatpush1.msra.mxu0 0.0
      %1688 = vmatprep.mubr.f32.mxu0 0.0
      %1689 = vmatmul.mubr.f32.gmra.mrb[0].mxu0 %v1401
      %v1690 = vpop.f32.mrb[0].mxu0
      %v1691 = vadd.f32 0.0, %v1690
      %v1692 = vpop.f32.mrb[0].mxu0
      %1693 = vmatprep.mubr.f32.mxu0 0.0
      %1694 = vmatmul.mubr.f32.gmra.mrb[0].mxu0 %v1403
      %v1695 = vpop.f32.mrb[0].mxu0
      %v1696 = vadd.f32 0.0, %v1695
      %v1697 = vpop.f32.mrb[0].mxu0
      %1698 = vmatprep.mubr.f32.mxu0 0.0
      %1699 = vmatmul.mubr.f32.gmra.mrb[0].mxu0 %v1405
      %v1700 = vpop.f32.mrb[0].mxu0
      %v1701 = vadd.f32 0.0, %v1700
      %v1702 = vpop.f32.mrb[0].mxu0
      %1703 = vmatprep.mubr.f32.mxu0 0.0
      %1704 = vmatmul.mubr.f32.gmra.mrb[0].mxu0 %v1407
      %v1705 = vpop.f32.mrb[0].mxu0
      %v1706 = vadd.f32 0.0, %v1705
      %v1707 = vpop.f32.mrb[0].mxu0
      %1708 = vmatprep.mubr.f32.mxu0 0.0
      %1709 = vmatmul.mubr.f32.gmra.mrb[0].mxu0 %v1409
      %v1710 = vpop.f32.mrb[0].mxu0
      %v1711 = vadd.f32 0.0, %v1710
      %v1712 = vpop.f32.mrb[0].mxu0
      %1713 = vmatprep.mubr.f32.mxu0 0.0
      %1714 = vmatmul.mubr.f32.gmra.mrb[0].mxu0 %v1411
      %v1715 = vpop.f32.mrb[0].mxu0
      %v1716 = vadd.f32 0.0, %v1715
      %v1717 = vpop.f32.mrb[0].mxu0
      %1718 = vmatprep.mubr.f32.mxu0 0.0
      %1719 = vmatmul.mubr.f32.gmra.mrb[0].mxu0 %v1413
      %v1720 = vpop.f32.mrb[0].mxu0
      %v1721 = vadd.f32 0.0, %v1720
      %v1722 = vpop.f32.mrb[0].mxu0
      %1723 = vmatprep.mubr.f32.mxu0 0.0
      %1724 = vmatmul.mubr.f32.gmra.mrb[0].mxu0 %v1415
      %v1725 = vpop.f32.mrb[0].mxu0
      %v1726 = vadd.f32 0.0, %v1725
      %v1727 = vpop.f32.mrb[0].mxu0
      %1728 = vmatprep.mubr.f32.mxu0 0.0
      %1729 = vmatmul.mubr.f32.gmra.mrb[0].mxu0 %v1417
      %v1730 = vpop.f32.mrb[0].mxu0
      %v1731 = vadd.f32 0.0, %v1730
      %v1732 = vpop.f32.mrb[0].mxu0
      %1733 = vmatprep.mubr.f32.mxu0 0.0
      %1734 = vmatmul.mubr.f32.gmra.mrb[0].mxu0 %v1419
      %v1735 = vpop.f32.mrb[0].mxu0
      %v1736 = vadd.f32 0.0, %v1735
      %v1737 = vpop.f32.mrb[0].mxu0
      %1738 = vmatprep.mubr.f32.mxu0 0.0
      %1739 = vmatmul.mubr.f32.gmra.mrb[0].mxu0 %v1421
      %v1740 = vpop.f32.mrb[0].mxu0
      %v1741 = vadd.f32 0.0, %v1740
      %v1742 = vpop.f32.mrb[0].mxu0
      %1743 = vmatprep.mubr.f32.mxu0 0.0
      %1744 = vmatmul.mubr.f32.gmra.mrb[0].mxu0 %v1423
      %v1745 = vpop.f32.mrb[0].mxu0
      %v1746 = vadd.f32 0.0, %v1745
      %v1747 = vpop.f32.mrb[0].mxu0
      %1748 = vmatprep.mubr.f32.mxu0 0.0
      %1749 = vmatmul.mubr.f32.gmra.mrb[0].mxu0 %v1425
      %v1750 = vpop.f32.mrb[0].mxu0
      %v1751 = vadd.f32 0.0, %v1750
      %v1752 = vpop.f32.mrb[0].mxu0
      %1753 = vmatprep.mubr.f32.mxu0 0.0
      %1754 = vmatmul.mubr.f32.gmra.mrb[0].mxu0 %v1427
      %v1755 = vpop.f32.mrb[0].mxu0
      %v1756 = vadd.f32 0.0, %v1755
      %v1757 = vpop.f32.mrb[0].mxu0
      %1758 = vmatprep.mubr.f32.mxu0 0.0
      %1759 = vmatmul.mubr.f32.gmra.mrb[0].mxu0 %v1429
      %v1760 = vpop.f32.mrb[0].mxu0
      %v1761 = vadd.f32 0.0, %v1760
      %v1762 = vpop.f32.mrb[0].mxu0
      %1763 = vmatprep.mubr.f32.mxu0 0.0
      %1764 = vmatmul.mubr.f32.gmra.mrb[0].mxu0 %v1431
      %v1765 = vpop.f32.mrb[0].mxu0
      %v1766 = vadd.f32 0.0, %v1765
      %v1767 = vpop.f32.mrb[0].mxu0
      %1768 = vmatprep.mubr.f32.mxu0 0.0
      %1769 = vmatmul.mubr.f32.gmra.mrb[0].mxu0 %v1617
      %v1770 = vpop.f32.mrb[0].mxu0
      %v1771 = vadd.f32 0.0, %v1770
      %v1772 = vpop.f32.mrb[0].mxu0
      %1773 = vmatprep.mubr.f32.mxu0 0.0
      %1774 = vmatmul.mubr.f32.gmra.mrb[0].mxu0 %v1619
      %v1775 = vpop.f32.mrb[0].mxu0
      %v1776 = vadd.f32 0.0, %v1775
      %v1777 = vpop.f32.mrb[0].mxu0
      %1778 = vdwg.mxu0
      %v1779 = vadd.f32 %v1591, %v1691
      %v1780 = vadd.f32 %v1592, %v1696
      %v1781 = vadd.f32 %v1593, %v1701
      %v1782 = vadd.f32 %v1594, %v1706
      %v1783 = vadd.f32 %v1595, %v1711
      %v1784 = vadd.f32 %v1596, %v1716
      %v1785 = vadd.f32 %v1597, %v1721
      %v1786 = vadd.f32 %v1598, %v1726
      %v1787 = vadd.f32 %v1599, %v1731
      %v1788 = vadd.f32 %v1600, %v1736
      %v1789 = vadd.f32 %v1601, %v1741
      %v1790 = vadd.f32 %v1602, %v1746
      %v1791 = vadd.f32 %v1603, %v1751
      %v1792 = vadd.f32 %v1604, %v1756
      %v1793 = vadd.f32 %v1605, %v1761
      %v1794 = vadd.f32 %v1606, %v1766
      %v1795 = vadd.f32 %v1607, %v1771
      %v1796 = vadd.f32 %v1608, %v1776
      %s1797 = scalar_lea.vmem %s1, 28
      %v1798 = vld [vmem:[%s1797] sm:$0xf]
      %vm1799 = vcmask 1042432
      %v1800 = vrot.slane %v197, 5
      %v1801 = vrot.slane %v198, 5
      %v1802 = vsel %vm1799, %v1800, %v1801
      %v1803 = vrot.slane %v199, 5
      %v1804 = vsel %vm1799, %v1801, %v1803
      %v1805 = vrot.slane %v200, 5
      %v1806 = vsel %vm1799, %v1803, %v1805
      %v1807 = vrot.slane %v201, 5
      %v1808 = vsel %vm1799, %v1805, %v1807
      %v1809 = vrot.slane %v202, 5
      %v1810 = vsel %vm1799, %v1807, %v1809
      %v1811 = vrot.slane %v203, 5
      %v1812 = vsel %vm1799, %v1809, %v1811
      %v1813 = vrot.slane %v204, 5
      %v1814 = vsel %vm1799, %v1811, %v1813
      %v1815 = vrot.slane %v205, 5
      %v1816 = vsel %vm1799, %v1813, %v1815
      %v1817 = vrot.slane %v206, 5
      %v1818 = vsel %vm1799, %v1815, %v1817
      %v1819 = vrot.slane %v207, 5
      %v1820 = vsel %vm1799, %v1817, %v1819
      %v1821 = vrot.slane %v208, 5
      %v1822 = vsel %vm1799, %v1819, %v1821
      %v1823 = vrot.slane %v209, 5
      %v1824 = vsel %vm1799, %v1821, %v1823
      %v1825 = vrot.slane %v210, 5
      %v1826 = vsel %vm1799, %v1823, %v1825
      %v1827 = vrot.slane %v211, 5
      %v1828 = vsel %vm1799, %v1825, %v1827
      %v1829 = vrot.slane %v212, 5
      %v1830 = vsel %vm1799, %v1827, %v1829
      %v1831 = vrot.slane %v213, 5
      %v1832 = vsel %vm1799, %v1829, %v1831
      %v1833 = vrot.slane %v214, 5
      %v1834 = vsel %vm1799, %v1831, %v1833
      %v1835 = vrot.slane %v215, 5
      %v1836 = vsel %vm1799, %v1833, %v1835
      %v1837 = vsel %vm276, %v1802, 0
      %v1839 = vsel %vm276, %v1804, 0
      %v1841 = vsel %vm276, %v1806, 0
      %v1843 = vsel %vm276, %v1808, 0
      %v1845 = vsel %vm276, %v1810, 0
      %v1847 = vsel %vm276, %v1812, 0
      %v1849 = vsel %vm276, %v1814, 0
      %v1851 = vsel %vm276, %v1816, 0
      %v1853 = vsel %vm276, %v1818, 0
      %v1855 = vsel %vm276, %v1820, 0
      %v1857 = vsel %vm276, %v1822, 0
      %v1859 = vsel %vm276, %v1824, 0
      %v1861 = vsel %vm276, %v1826, 0
      %v1863 = vsel %vm276, %v1828, 0
      %v1865 = vsel %vm276, %v1830, 0
      %v1867 = vsel %vm276, %v1832, 0
      %v1869 = vsel %vm276, %v1834, 0
      %v1871 = vsel %vm276, %v1836, 0
      %v1874 = vsel %vm313, %v1798, 0
      %1876 = vmatprep.subr.mxu0 0.0
      %1877 = vmatpush1.msra.mxu0 %v1874
      %1878 = vmatprep.subr.mxu0 0.0
      %1879 = vmatpush1.msra.mxu0 0.0
      %1880 = vmatprep.subr.mxu0 0.0
      %1881 = vmatpush1.msra.mxu0 0.0
      %1882 = vmatprep.subr.mxu0 0.0
      %1883 = vmatpush1.msra.mxu0 0.0
      %1884 = vmatprep.subr.mxu0 0.0
      %1885 = vmatpush1.msra.mxu0 0.0
      %1886 = vmatprep.subr.mxu0 0.0
      %1887 = vmatpush1.msra.mxu0 0.0
      %1888 = vmatprep.subr.mxu0 0.0
      %1889 = vmatpush1.msra.mxu0 0.0
      %1890 = vmatprep.subr.mxu0 0.0
      %1891 = vmatpush1.msra.mxu0 0.0
      %1892 = vmatprep.subr.mxu0 0.0
      %1893 = vmatpush1.msra.mxu0 0.0
      %1894 = vmatprep.subr.mxu0 0.0
      %1895 = vmatpush1.msra.mxu0 0.0
      %1896 = vmatprep.subr.mxu0 0.0
      %1897 = vmatpush1.msra.mxu0 0.0
      %1898 = vmatprep.subr.mxu0 0.0
      %1899 = vmatpush1.msra.mxu0 0.0
      %1900 = vmatprep.subr.mxu0 0.0
      %1901 = vmatpush1.msra.mxu0 0.0
      %1902 = vmatprep.subr.mxu0 0.0
      %1903 = vmatpush1.msra.mxu0 0.0
      %1904 = vmatprep.subr.mxu0 0.0
      %1905 = vmatpush1.msra.mxu0 0.0
      %1906 = vmatprep.subr.mxu0 0.0
      %1907 = vmatpush1.msra.mxu0 0.0
      %1908 = vmatprep.subr.mxu0 0.0
      %1909 = vmatpush1.msra.mxu0 0.0
      %1910 = vmatprep.subr.mxu0 0.0
      %1911 = vmatpush1.msra.mxu0 0.0
      %1912 = vmatprep.subr.mxu0 0.0
      %1913 = vmatpush1.msra.mxu0 0.0
      %1914 = vmatprep.subr.mxu0 0.0
      %1915 = vmatpush1.msra.mxu0 0.0
      %1916 = vmatprep.subr.mxu0 0.0
      %1917 = vmatpush1.msra.mxu0 0.0
      %1918 = vmatprep.subr.mxu0 0.0
      %1919 = vmatpush1.msra.mxu0 0.0
      %1920 = vmatprep.subr.mxu0 0.0
      %1921 = vmatpush1.msra.mxu0 0.0
      %1922 = vmatprep.subr.mxu0 0.0
      %1923 = vmatpush1.msra.mxu0 0.0
      %1924 = vmatprep.subr.mxu0 0.0
      %1925 = vmatpush1.msra.mxu0 0.0
      %1926 = vmatprep.subr.mxu0 0.0
      %1927 = vmatpush1.msra.mxu0 0.0
      %1928 = vmatprep.subr.mxu0 0.0
      %1929 = vmatpush1.msra.mxu0 0.0
      %1930 = vmatprep.subr.mxu0 0.0
      %1931 = vmatpush1.msra.mxu0 0.0
      %1932 = vmatprep.subr.mxu0 0.0
      %1933 = vmatpush1.msra.mxu0 0.0
      %1934 = vmatprep.subr.mxu0 0.0
      %1935 = vmatpush1.msra.mxu0 0.0
      %1936 = vmatprep.subr.mxu0 0.0
      %1937 = vmatpush1.msra.mxu0 0.0
      %1938 = vmatprep.subr.mxu0 0.0
      %1939 = vmatpush1.msra.mxu0 0.0
      %1940 = vmatprep.mubr.f32.mxu0 0.0
      %1941 = vmatmul.mubr.f32.gmra.mrb[0].mxu0 %v1837
      %v1942 = vpop.f32.mrb[0].mxu0
      %v1943 = vadd.f32 0.0, %v1942
      %v1944 = vpop.f32.mrb[0].mxu0
      %1945 = vmatprep.mubr.f32.mxu0 0.0
      %1946 = vmatmul.mubr.f32.gmra.mrb[0].mxu0 %v1839
      %v1947 = vpop.f32.mrb[0].mxu0
      %v1948 = vadd.f32 0.0, %v1947
      %v1949 = vpop.f32.mrb[0].mxu0
      %1950 = vmatprep.mubr.f32.mxu0 0.0
      %1951 = vmatmul.mubr.f32.gmra.mrb[0].mxu0 %v1841
      %v1952 = vpop.f32.mrb[0].mxu0
      %v1953 = vadd.f32 0.0, %v1952
      %v1954 = vpop.f32.mrb[0].mxu0
      %1955 = vmatprep.mubr.f32.mxu0 0.0
      %1956 = vmatmul.mubr.f32.gmra.mrb[0].mxu0 %v1843
      %v1957 = vpop.f32.mrb[0].mxu0
      %v1958 = vadd.f32 0.0, %v1957
      %v1959 = vpop.f32.mrb[0].mxu0
      %1960 = vmatprep.mubr.f32.mxu0 0.0
      %1961 = vmatmul.mubr.f32.gmra.mrb[0].mxu0 %v1845
      %v1962 = vpop.f32.mrb[0].mxu0
      %v1963 = vadd.f32 0.0, %v1962
      %v1964 = vpop.f32.mrb[0].mxu0
      %1965 = vmatprep.mubr.f32.mxu0 0.0
      %1966 = vmatmul.mubr.f32.gmra.mrb[0].mxu0 %v1847
      %v1967 = vpop.f32.mrb[0].mxu0
      %v1968 = vadd.f32 0.0, %v1967
      %v1969 = vpop.f32.mrb[0].mxu0
      %1970 = vmatprep.mubr.f32.mxu0 0.0
      %1971 = vmatmul.mubr.f32.gmra.mrb[0].mxu0 %v1849
      %v1972 = vpop.f32.mrb[0].mxu0
      %v1973 = vadd.f32 0.0, %v1972
      %v1974 = vpop.f32.mrb[0].mxu0
      %1975 = vmatprep.mubr.f32.mxu0 0.0
      %1976 = vmatmul.mubr.f32.gmra.mrb[0].mxu0 %v1851
      %v1977 = vpop.f32.mrb[0].mxu0
      %v1978 = vadd.f32 0.0, %v1977
      %v1979 = vpop.f32.mrb[0].mxu0
      %1980 = vmatprep.mubr.f32.mxu0 0.0
      %1981 = vmatmul.mubr.f32.gmra.mrb[0].mxu0 %v1853
      %v1982 = vpop.f32.mrb[0].mxu0
      %v1983 = vadd.f32 0.0, %v1982
      %v1984 = vpop.f32.mrb[0].mxu0
      %1985 = vmatprep.mubr.f32.mxu0 0.0
      %1986 = vmatmul.mubr.f32.gmra.mrb[0].mxu0 %v1855
      %v1987 = vpop.f32.mrb[0].mxu0
      %v1988 = vadd.f32 0.0, %v1987
      %v1989 = vpop.f32.mrb[0].mxu0
      %1990 = vmatprep.mubr.f32.mxu0 0.0
      %1991 = vmatmul.mubr.f32.gmra.mrb[0].mxu0 %v1857
      %v1992 = vpop.f32.mrb[0].mxu0
      %v1993 = vadd.f32 0.0, %v1992
      %v1994 = vpop.f32.mrb[0].mxu0
      %1995 = vmatprep.mubr.f32.mxu0 0.0
      %1996 = vmatmul.mubr.f32.gmra.mrb[0].mxu0 %v1859
      %v1997 = vpop.f32.mrb[0].mxu0
      %v1998 = vadd.f32 0.0, %v1997
      %v1999 = vpop.f32.mrb[0].mxu0
      %2000 = vmatprep.mubr.f32.mxu0 0.0
      %2001 = vmatmul.mubr.f32.gmra.mrb[0].mxu0 %v1861
      %v2002 = vpop.f32.mrb[0].mxu0
      %v2003 = vadd.f32 0.0, %v2002
      %v2004 = vpop.f32.mrb[0].mxu0
      %2005 = vmatprep.mubr.f32.mxu0 0.0
      %2006 = vmatmul.mubr.f32.gmra.mrb[0].mxu0 %v1863
      %v2007 = vpop.f32.mrb[0].mxu0
      %v2008 = vadd.f32 0.0, %v2007
      %v2009 = vpop.f32.mrb[0].mxu0
      %2010 = vmatprep.mubr.f32.mxu0 0.0
      %2011 = vmatmul.mubr.f32.gmra.mrb[0].mxu0 %v1865
      %v2012 = vpop.f32.mrb[0].mxu0
      %v2013 = vadd.f32 0.0, %v2012
      %v2014 = vpop.f32.mrb[0].mxu0
      %2015 = vmatprep.mubr.f32.mxu0 0.0
      %2016 = vmatmul.mubr.f32.gmra.mrb[0].mxu0 %v1867
      %v2017 = vpop.f32.mrb[0].mxu0
      %v2018 = vadd.f32 0.0, %v2017
      %v2019 = vpop.f32.mrb[0].mxu0
      %2020 = vmatprep.mubr.f32.mxu0 0.0
      %2021 = vmatmul.mubr.f32.gmra.mrb[0].mxu0 %v1869
      %v2022 = vpop.f32.mrb[0].mxu0
      %v2023 = vadd.f32 0.0, %v2022
      %v2024 = vpop.f32.mrb[0].mxu0
      %2025 = vmatprep.mubr.f32.mxu0 0.0
      %2026 = vmatmul.mubr.f32.gmra.mrb[0].mxu0 %v1871
      %v2027 = vpop.f32.mrb[0].mxu0
      %v2028 = vadd.f32 0.0, %v2027
      %v2029 = vpop.f32.mrb[0].mxu0
      %2030 = vdwg.mxu0
      %v2031 = vadd.f32 %v1779, %v1943
      %v2032 = vadd.f32 %v1780, %v1948
      %v2033 = vadd.f32 %v1781, %v1953
      %v2034 = vadd.f32 %v1782, %v1958
      %v2035 = vadd.f32 %v1783, %v1963
      %v2036 = vadd.f32 %v1784, %v1968
      %v2037 = vadd.f32 %v1785, %v1973
      %v2038 = vadd.f32 %v1786, %v1978
      %v2039 = vadd.f32 %v1787, %v1983
      %v2040 = vadd.f32 %v1788, %v1988
      %v2041 = vadd.f32 %v1789, %v1993
      %v2042 = vadd.f32 %v1790, %v1998
      %v2043 = vadd.f32 %v1791, %v2003
      %v2044 = vadd.f32 %v1792, %v2008
      %v2045 = vadd.f32 %v1793, %v2013
      %v2046 = vadd.f32 %v1794, %v2018
      %v2047 = vadd.f32 %v1795, %v2023
      %v2048 = vadd.f32 %v1796, %v2028
      %s2049 = scalar_lea.vmem %s1, 32
      %v2050 = vld [vmem:[%s2049] sm:$0xf]
      %vm2051 = vcmask 1041408
      %v2052 = vrot.slane %v197, 6
      %v2053 = vrot.slane %v198, 6
      %v2054 = vsel %vm2051, %v2052, %v2053
      %v2055 = vrot.slane %v199, 6
      %v2056 = vsel %vm2051, %v2053, %v2055
      %v2057 = vrot.slane %v200, 6
      %v2058 = vsel %vm2051, %v2055, %v2057
      %v2059 = vrot.slane %v201, 6
      %v2060 = vsel %vm2051, %v2057, %v2059
      %v2061 = vrot.slane %v202, 6
      %v2062 = vsel %vm2051, %v2059, %v2061
      %v2063 = vrot.slane %v203, 6
      %v2064 = vsel %vm2051, %v2061, %v2063
      %v2065 = vrot.slane %v204, 6
      %v2066 = vsel %vm2051, %v2063, %v2065
      %v2067 = vrot.slane %v205, 6
      %v2068 = vsel %vm2051, %v2065, %v2067
      %v2069 = vrot.slane %v206, 6
      %v2070 = vsel %vm2051, %v2067, %v2069
      %v2071 = vrot.slane %v207, 6
      %v2072 = vsel %vm2051, %v2069, %v2071
      %v2073 = vrot.slane %v208, 6
      %v2074 = vsel %vm2051, %v2071, %v2073
      %v2075 = vrot.slane %v209, 6
      %v2076 = vsel %vm2051, %v2073, %v2075
      %v2077 = vrot.slane %v210, 6
      %v2078 = vsel %vm2051, %v2075, %v2077
      %v2079 = vrot.slane %v211, 6
      %v2080 = vsel %vm2051, %v2077, %v2079
      %v2081 = vrot.slane %v212, 6
      %v2082 = vsel %vm2051, %v2079, %v2081
      %v2083 = vrot.slane %v213, 6
      %v2084 = vsel %vm2051, %v2081, %v2083
      %v2085 = vrot.slane %v214, 6
      %v2086 = vsel %vm2051, %v2083, %v2085
      %v2087 = vrot.slane %v215, 6
      %v2088 = vsel %vm2051, %v2085, %v2087
      %v2089 = vsel %vm276, %v2054, 0
      %v2091 = vsel %vm276, %v2056, 0
      %v2093 = vsel %vm276, %v2058, 0
      %v2095 = vsel %vm276, %v2060, 0
      %v2097 = vsel %vm276, %v2062, 0
      %v2099 = vsel %vm276, %v2064, 0
      %v2101 = vsel %vm276, %v2066, 0
      %v2103 = vsel %vm276, %v2068, 0
      %v2105 = vsel %vm276, %v2070, 0
      %v2107 = vsel %vm276, %v2072, 0
      %v2109 = vsel %vm276, %v2074, 0
      %v2111 = vsel %vm276, %v2076, 0
      %v2113 = vsel %vm276, %v2078, 0
      %v2115 = vsel %vm276, %v2080, 0
      %v2117 = vsel %vm276, %v2082, 0
      %v2119 = vsel %vm276, %v2084, 0
      %v2121 = vsel %vm276, %v2086, 0
      %v2123 = vsel %vm276, %v2088, 0
      %v2126 = vsel %vm313, %v2050, 0
      %2128 = vmatprep.subr.mxu0 0.0
      %2129 = vmatpush1.msra.mxu0 %v2126
      %2130 = vmatprep.subr.mxu0 0.0
      %2131 = vmatpush1.msra.mxu0 0.0
      %2132 = vmatprep.subr.mxu0 0.0
      %2133 = vmatpush1.msra.mxu0 0.0
      %2134 = vmatprep.subr.mxu0 0.0
      %2135 = vmatpush1.msra.mxu0 0.0
      %2136 = vmatprep.subr.mxu0 0.0
      %2137 = vmatpush1.msra.mxu0 0.0
      %2138 = vmatprep.subr.mxu0 0.0
      %2139 = vmatpush1.msra.mxu0 0.0
      %2140 = vmatprep.subr.mxu0 0.0
      %2141 = vmatpush1.msra.mxu0 0.0
      %2142 = vmatprep.subr.mxu0 0.0
      %2143 = vmatpush1.msra.mxu0 0.0
      %2144 = vmatprep.subr.mxu0 0.0
      %2145 = vmatpush1.msra.mxu0 0.0
      %2146 = vmatprep.subr.mxu0 0.0
      %2147 = vmatpush1.msra.mxu0 0.0
      %2148 = vmatprep.subr.mxu0 0.0
      %2149 = vmatpush1.msra.mxu0 0.0
      %2150 = vmatprep.subr.mxu0 0.0
      %2151 = vmatpush1.msra.mxu0 0.0
      %2152 = vmatprep.subr.mxu0 0.0
      %2153 = vmatpush1.msra.mxu0 0.0
      %2154 = vmatprep.subr.mxu0 0.0
      %2155 = vmatpush1.msra.mxu0 0.0
      %2156 = vmatprep.subr.mxu0 0.0
      %2157 = vmatpush1.msra.mxu0 0.0
      %2158 = vmatprep.subr.mxu0 0.0
      %2159 = vmatpush1.msra.mxu0 0.0
      %2160 = vmatprep.subr.mxu0 0.0
      %2161 = vmatpush1.msra.mxu0 0.0
      %2162 = vmatprep.subr.mxu0 0.0
      %2163 = vmatpush1.msra.mxu0 0.0
      %2164 = vmatprep.subr.mxu0 0.0
      %2165 = vmatpush1.msra.mxu0 0.0
      %2166 = vmatprep.subr.mxu0 0.0
      %2167 = vmatpush1.msra.mxu0 0.0
      %2168 = vmatprep.subr.mxu0 0.0
      %2169 = vmatpush1.msra.mxu0 0.0
      %2170 = vmatprep.subr.mxu0 0.0
      %2171 = vmatpush1.msra.mxu0 0.0
      %2172 = vmatprep.subr.mxu0 0.0
      %2173 = vmatpush1.msra.mxu0 0.0
      %2174 = vmatprep.subr.mxu0 0.0
      %2175 = vmatpush1.msra.mxu0 0.0
      %2176 = vmatprep.subr.mxu0 0.0
      %2177 = vmatpush1.msra.mxu0 0.0
      %2178 = vmatprep.subr.mxu0 0.0
      %2179 = vmatpush1.msra.mxu0 0.0
      %2180 = vmatprep.subr.mxu0 0.0
      %2181 = vmatpush1.msra.mxu0 0.0
      %2182 = vmatprep.subr.mxu0 0.0
      %2183 = vmatpush1.msra.mxu0 0.0
      %2184 = vmatprep.subr.mxu0 0.0
      %2185 = vmatpush1.msra.mxu0 0.0
      %2186 = vmatprep.subr.mxu0 0.0
      %2187 = vmatpush1.msra.mxu0 0.0
      %2188 = vmatprep.subr.mxu0 0.0
      %2189 = vmatpush1.msra.mxu0 0.0
      %2190 = vmatprep.subr.mxu0 0.0
      %2191 = vmatpush1.msra.mxu0 0.0
      %2192 = vmatprep.mubr.f32.mxu0 0.0
      %2193 = vmatmul.mubr.f32.gmra.mrb[0].mxu0 %v2089
      %v2194 = vpop.f32.mrb[0].mxu0
      %v2195 = vadd.f32 0.0, %v2194
      %v2196 = vpop.f32.mrb[0].mxu0
      %2197 = vmatprep.mubr.f32.mxu0 0.0
      %2198 = vmatmul.mubr.f32.gmra.mrb[0].mxu0 %v2091
      %v2199 = vpop.f32.mrb[0].mxu0
      %v2200 = vadd.f32 0.0, %v2199
      %v2201 = vpop.f32.mrb[0].mxu0
      %2202 = vmatprep.mubr.f32.mxu0 0.0
      %2203 = vmatmul.mubr.f32.gmra.mrb[0].mxu0 %v2093
      %v2204 = vpop.f32.mrb[0].mxu0
      %v2205 = vadd.f32 0.0, %v2204
      %v2206 = vpop.f32.mrb[0].mxu0
      %2207 = vmatprep.mubr.f32.mxu0 0.0
      %2208 = vmatmul.mubr.f32.gmra.mrb[0].mxu0 %v2095
      %v2209 = vpop.f32.mrb[0].mxu0
      %v2210 = vadd.f32 0.0, %v2209
      %v2211 = vpop.f32.mrb[0].mxu0
      %2212 = vmatprep.mubr.f32.mxu0 0.0
      %2213 = vmatmul.mubr.f32.gmra.mrb[0].mxu0 %v2097
      %v2214 = vpop.f32.mrb[0].mxu0
      %v2215 = vadd.f32 0.0, %v2214
      %v2216 = vpop.f32.mrb[0].mxu0
      %2217 = vmatprep.mubr.f32.mxu0 0.0
      %2218 = vmatmul.mubr.f32.gmra.mrb[0].mxu0 %v2099
      %v2219 = vpop.f32.mrb[0].mxu0
      %v2220 = vadd.f32 0.0, %v2219
      %v2221 = vpop.f32.mrb[0].mxu0
      %2222 = vmatprep.mubr.f32.mxu0 0.0
      %2223 = vmatmul.mubr.f32.gmra.mrb[0].mxu0 %v2101
      %v2224 = vpop.f32.mrb[0].mxu0
      %v2225 = vadd.f32 0.0, %v2224
      %v2226 = vpop.f32.mrb[0].mxu0
      %2227 = vmatprep.mubr.f32.mxu0 0.0
      %2228 = vmatmul.mubr.f32.gmra.mrb[0].mxu0 %v2103
      %v2229 = vpop.f32.mrb[0].mxu0
      %v2230 = vadd.f32 0.0, %v2229
      %v2231 = vpop.f32.mrb[0].mxu0
      %2232 = vmatprep.mubr.f32.mxu0 0.0
      %2233 = vmatmul.mubr.f32.gmra.mrb[0].mxu0 %v2105
      %v2234 = vpop.f32.mrb[0].mxu0
      %v2235 = vadd.f32 0.0, %v2234
      %v2236 = vpop.f32.mrb[0].mxu0
      %2237 = vmatprep.mubr.f32.mxu0 0.0
      %2238 = vmatmul.mubr.f32.gmra.mrb[0].mxu0 %v2107
      %v2239 = vpop.f32.mrb[0].mxu0
      %v2240 = vadd.f32 0.0, %v2239
      %v2241 = vpop.f32.mrb[0].mxu0
      %2242 = vmatprep.mubr.f32.mxu0 0.0
      %2243 = vmatmul.mubr.f32.gmra.mrb[0].mxu0 %v2109
      %v2244 = vpop.f32.mrb[0].mxu0
      %v2245 = vadd.f32 0.0, %v2244
      %v2246 = vpop.f32.mrb[0].mxu0
      %2247 = vmatprep.mubr.f32.mxu0 0.0
      %2248 = vmatmul.mubr.f32.gmra.mrb[0].mxu0 %v2111
      %v2249 = vpop.f32.mrb[0].mxu0
      %v2250 = vadd.f32 0.0, %v2249
      %v2251 = vpop.f32.mrb[0].mxu0
      %2252 = vmatprep.mubr.f32.mxu0 0.0
      %2253 = vmatmul.mubr.f32.gmra.mrb[0].mxu0 %v2113
      %v2254 = vpop.f32.mrb[0].mxu0
      %v2255 = vadd.f32 0.0, %v2254
      %v2256 = vpop.f32.mrb[0].mxu0
      %2257 = vmatprep.mubr.f32.mxu0 0.0
      %2258 = vmatmul.mubr.f32.gmra.mrb[0].mxu0 %v2115
      %v2259 = vpop.f32.mrb[0].mxu0
      %v2260 = vadd.f32 0.0, %v2259
      %v2261 = vpop.f32.mrb[0].mxu0
      %2262 = vmatprep.mubr.f32.mxu0 0.0
      %2263 = vmatmul.mubr.f32.gmra.mrb[0].mxu0 %v2117
      %v2264 = vpop.f32.mrb[0].mxu0
      %v2265 = vadd.f32 0.0, %v2264
      %v2266 = vpop.f32.mrb[0].mxu0
      %2267 = vmatprep.mubr.f32.mxu0 0.0
      %2268 = vmatmul.mubr.f32.gmra.mrb[0].mxu0 %v2119
      %v2269 = vpop.f32.mrb[0].mxu0
      %v2270 = vadd.f32 0.0, %v2269
      %v2271 = vpop.f32.mrb[0].mxu0
      %2272 = vmatprep.mubr.f32.mxu0 0.0
      %2273 = vmatmul.mubr.f32.gmra.mrb[0].mxu0 %v2121
      %v2274 = vpop.f32.mrb[0].mxu0
      %v2275 = vadd.f32 0.0, %v2274
      %v2276 = vpop.f32.mrb[0].mxu0
      %2277 = vmatprep.mubr.f32.mxu0 0.0
      %2278 = vmatmul.mubr.f32.gmra.mrb[0].mxu0 %v2123
      %v2279 = vpop.f32.mrb[0].mxu0
      %v2280 = vadd.f32 0.0, %v2279
      %v2281 = vpop.f32.mrb[0].mxu0
      %2282 = vdwg.mxu0
      %v2283 = vadd.f32 %v2031, %v2195
      %v2284 = vadd.f32 %v2032, %v2200
      %v2285 = vadd.f32 %v2033, %v2205
      %v2286 = vadd.f32 %v2034, %v2210
      %v2287 = vadd.f32 %v2035, %v2215
      %v2288 = vadd.f32 %v2036, %v2220
      %v2289 = vadd.f32 %v2037, %v2225
      %v2290 = vadd.f32 %v2038, %v2230
      %v2291 = vadd.f32 %v2039, %v2235
      %v2292 = vadd.f32 %v2040, %v2240
      %v2293 = vadd.f32 %v2041, %v2245
      %v2294 = vadd.f32 %v2042, %v2250
      %v2295 = vadd.f32 %v2043, %v2255
      %v2296 = vadd.f32 %v2044, %v2260
      %v2297 = vadd.f32 %v2045, %v2265
      %v2298 = vadd.f32 %v2046, %v2270
      %v2299 = vadd.f32 %v2047, %v2275
      %v2300 = vadd.f32 %v2048, %v2280
      %v2301 = vld [vmem:[%s2] sm:$0xff]
      %v2302 = vld [vmem:[%s2 + $0x8] sm:$0xff]
      %v2303 = vld [vmem:[%s2 + $0x10] sm:$0xff]
      %v2304 = vld [vmem:[%s2 + $0x18] sm:$0xff]
      %v2305 = vld [vmem:[%s2 + $0x20] sm:$0xff]
      %v2306 = vld [vmem:[%s2 + $0x28] sm:$0xff]
      %v2307 = vld [vmem:[%s2 + $0x30] sm:$0xff]
      %v2308 = vld [vmem:[%s2 + $0x38] sm:$0xff]
      %v2309 = vld [vmem:[%s2 + $0x40] sm:$0xff]
      %v2310 = vld [vmem:[%s2 + $0x48] sm:$0xff]
      %v2311 = vld [vmem:[%s2 + $0x50] sm:$0xff]
      %v2312 = vld [vmem:[%s2 + $0x58] sm:$0xff]
      %v2313 = vld [vmem:[%s2 + $0x60] sm:$0xff]
      %v2314 = vld [vmem:[%s2 + $0x68] sm:$0xff]
      %v2315 = vld [vmem:[%s2 + $0x70] sm:$0xff]
      %v2316 = vld [vmem:[%s2 + $0x78] sm:$0xff]
      %v2317 = vld [vmem:[%s2 + $0x80] sm:$0xff]
      %v2318 = vld [vmem:[%s2 + $0x88] sm:$0xff]
      %2320 = vset.pattern.permute.xlu0 0
      %2321 = vperm.xlu0 %2320, %v2301
      %v2322 = vpop.permute.xlu0 %2321
      %2325 = vset.pattern.permute.xlu0 0
      %2326 = vperm.xlu0 %2325, %v2302
      %v2327 = vpop.permute.xlu0 %2326
      %2330 = vset.pattern.permute.xlu0 0
      %2331 = vperm.xlu0 %2330, %v2303
      %v2332 = vpop.permute.xlu0 %2331
      %2335 = vset.pattern.permute.xlu0 0
      %2336 = vperm.xlu0 %2335, %v2304
      %v2337 = vpop.permute.xlu0 %2336
      %2340 = vset.pattern.permute.xlu0 0
      %2341 = vperm.xlu0 %2340, %v2305
      %v2342 = vpop.permute.xlu0 %2341
      %2345 = vset.pattern.permute.xlu0 0
      %2346 = vperm.xlu0 %2345, %v2306
      %v2347 = vpop.permute.xlu0 %2346
      %2350 = vset.pattern.permute.xlu0 0
      %2351 = vperm.xlu0 %2350, %v2307
      %v2352 = vpop.permute.xlu0 %2351
      %2355 = vset.pattern.permute.xlu0 0
      %2356 = vperm.xlu0 %2355, %v2308
      %v2357 = vpop.permute.xlu0 %2356
      %2360 = vset.pattern.permute.xlu0 0
      %2361 = vperm.xlu0 %2360, %v2309
      %v2362 = vpop.permute.xlu0 %2361
      %2365 = vset.pattern.permute.xlu0 0
      %2366 = vperm.xlu0 %2365, %v2310
      %v2367 = vpop.permute.xlu0 %2366
      %2370 = vset.pattern.permute.xlu0 0
      %2371 = vperm.xlu0 %2370, %v2311
      %v2372 = vpop.permute.xlu0 %2371
      %2375 = vset.pattern.permute.xlu0 0
      %2376 = vperm.xlu0 %2375, %v2312
      %v2377 = vpop.permute.xlu0 %2376
      %2380 = vset.pattern.permute.xlu0 0
      %2381 = vperm.xlu0 %2380, %v2313
      %v2382 = vpop.permute.xlu0 %2381
      %2385 = vset.pattern.permute.xlu0 0
      %2386 = vperm.xlu0 %2385, %v2314
      %v2387 = vpop.permute.xlu0 %2386
      %2390 = vset.pattern.permute.xlu0 0
      %2391 = vperm.xlu0 %2390, %v2315
      %v2392 = vpop.permute.xlu0 %2391
      %2395 = vset.pattern.permute.xlu0 0
      %2396 = vperm.xlu0 %2395, %v2316
      %v2397 = vpop.permute.xlu0 %2396
      %2400 = vset.pattern.permute.xlu0 0
      %2401 = vperm.xlu0 %2400, %v2317
      %v2402 = vpop.permute.xlu0 %2401
      %2405 = vset.pattern.permute.xlu0 0
      %2406 = vperm.xlu0 %2405, %v2318
      %v2407 = vpop.permute.xlu0 %2406
      %v2409 = vmul.f32 %v2283, %v2322
      %v2410 = vmul.f32 %v2284, %v2327
      %v2411 = vmul.f32 %v2285, %v2332
      %v2412 = vmul.f32 %v2286, %v2337
      %v2413 = vmul.f32 %v2287, %v2342
      %v2414 = vmul.f32 %v2288, %v2347
      %v2415 = vmul.f32 %v2289, %v2352
      %v2416 = vmul.f32 %v2290, %v2357
      %v2417 = vmul.f32 %v2291, %v2362
      %v2418 = vmul.f32 %v2292, %v2367
      %v2419 = vmul.f32 %v2293, %v2372
      %v2420 = vmul.f32 %v2294, %v2377
      %v2421 = vmul.f32 %v2295, %v2382
      %v2422 = vmul.f32 %v2296, %v2387
      %v2423 = vmul.f32 %v2297, %v2392
      %v2424 = vmul.f32 %v2298, %v2397
      %v2425 = vmul.f32 %v2299, %v2402
      %v2426 = vmul.f32 %v2300, %v2407
      %v2427 = vadd.f32 %v2409, %v2410
      %v2428 = vadd.f32 %v2427, %v2411
      %v2429 = vadd.f32 %v2428, %v2412
      %v2430 = vadd.f32 %v2429, %v2413
      %v2431 = vadd.f32 %v2430, %v2414
      %v2432 = vadd.f32 %v2431, %v2415
      %v2433 = vadd.f32 %v2432, %v2416
      %v2434 = vadd.f32 %v2433, %v2417
      %v2435 = vadd.f32 %v2434, %v2418
      %v2436 = vadd.f32 %v2435, %v2419
      %v2437 = vadd.f32 %v2436, %v2420
      %v2438 = vadd.f32 %v2437, %v2421
      %v2439 = vadd.f32 %v2438, %v2422
      %v2440 = vadd.f32 %v2439, %v2423
      %v2441 = vadd.f32 %v2440, %v2424
      %v2442 = vadd.f32 %v2441, %v2425
      %v2443 = vadd.f32 %v2442, %v2426
      %v2444 = vrot.slane %v2443, 4
      %v2445 = vadd.f32 %v2443, %v2444
      %v2446 = vrot.slane %v2445, 2
      %v2447 = vadd.f32 %v2445, %v2446
      %v2448 = vrot.slane %v2447, 1
      %v2449 = vadd.f32 %v2447, %v2448
      %v2450 = vmul.f32 %v2449, 0.0078125
      %v2451 = vsub.f32 %v2283, %v2450
      %v2452 = vsub.f32 %v2284, %v2450
      %v2453 = vsub.f32 %v2285, %v2450
      %v2454 = vsub.f32 %v2286, %v2450
      %v2455 = vsub.f32 %v2287, %v2450
      %v2456 = vsub.f32 %v2288, %v2450
      %v2457 = vsub.f32 %v2289, %v2450
      %v2458 = vsub.f32 %v2290, %v2450
      %v2459 = vsub.f32 %v2291, %v2450
      %v2460 = vsub.f32 %v2292, %v2450
      %v2461 = vsub.f32 %v2293, %v2450
      %v2462 = vsub.f32 %v2294, %v2450
      %v2463 = vsub.f32 %v2295, %v2450
      %v2464 = vsub.f32 %v2296, %v2450
      %v2465 = vsub.f32 %v2297, %v2450
      %v2466 = vsub.f32 %v2298, %v2450
      %v2467 = vsub.f32 %v2299, %v2450
      %v2468 = vsub.f32 %v2300, %v2450
      %v2469 = vmul.f32 %v2451, %v2322
      %v2470 = vmul.f32 %v2452, %v2327
      %v2471 = vmul.f32 %v2453, %v2332
      %v2472 = vmul.f32 %v2454, %v2337
      %v2473 = vmul.f32 %v2455, %v2342
      %v2474 = vmul.f32 %v2456, %v2347
      %v2475 = vmul.f32 %v2457, %v2352
      %v2476 = vmul.f32 %v2458, %v2357
      %v2477 = vmul.f32 %v2459, %v2362
      %v2478 = vmul.f32 %v2460, %v2367
      %v2479 = vmul.f32 %v2461, %v2372
      %v2480 = vmul.f32 %v2462, %v2377
      %v2481 = vmul.f32 %v2463, %v2382
      %v2482 = vmul.f32 %v2464, %v2387
      %v2483 = vmul.f32 %v2465, %v2392
      %v2484 = vmul.f32 %v2466, %v2397
      %v2485 = vmul.f32 %v2467, %v2402
      %v2486 = vmul.f32 %v2468, %v2407
      %v2487 = vmul.f32 %v2469, %v2469
      %v2488 = vmul.f32 %v2470, %v2470
      %v2489 = vmul.f32 %v2471, %v2471
      %v2490 = vmul.f32 %v2472, %v2472
      %v2491 = vmul.f32 %v2473, %v2473
      %v2492 = vmul.f32 %v2474, %v2474
      %v2493 = vmul.f32 %v2475, %v2475
      %v2494 = vmul.f32 %v2476, %v2476
      %v2495 = vmul.f32 %v2477, %v2477
      %v2496 = vmul.f32 %v2478, %v2478
      %v2497 = vmul.f32 %v2479, %v2479
      %v2498 = vmul.f32 %v2480, %v2480
      %v2499 = vmul.f32 %v2481, %v2481
      %v2500 = vmul.f32 %v2482, %v2482
      %v2501 = vmul.f32 %v2483, %v2483
      %v2502 = vmul.f32 %v2484, %v2484
      %v2503 = vmul.f32 %v2485, %v2485
      %v2504 = vmul.f32 %v2486, %v2486
      %v2505 = vadd.f32 %v2487, %v2488
      %v2506 = vadd.f32 %v2505, %v2489
      %v2507 = vadd.f32 %v2506, %v2490
      %v2508 = vadd.f32 %v2507, %v2491
      %v2509 = vadd.f32 %v2508, %v2492
      %v2510 = vadd.f32 %v2509, %v2493
      %v2511 = vadd.f32 %v2510, %v2494
      %v2512 = vadd.f32 %v2511, %v2495
      %v2513 = vadd.f32 %v2512, %v2496
      %v2514 = vadd.f32 %v2513, %v2497
      %v2515 = vadd.f32 %v2514, %v2498
      %v2516 = vadd.f32 %v2515, %v2499
      %v2517 = vadd.f32 %v2516, %v2500
      %v2518 = vadd.f32 %v2517, %v2501
      %v2519 = vadd.f32 %v2518, %v2502
      %v2520 = vadd.f32 %v2519, %v2503
      %v2521 = vadd.f32 %v2520, %v2504
      %v2522 = vrot.slane %v2521, 4
      %v2523 = vadd.f32 %v2521, %v2522
      %v2524 = vrot.slane %v2523, 2
      %v2525 = vadd.f32 %v2523, %v2524
      %v2526 = vrot.slane %v2525, 1
      %v2527 = vadd.f32 %v2525, %v2526
      %2528 = vst [vmem:[%s190] sm:$0x1] %v2449
      %2529 = vst [vmem:[%s190 + $0x1] sm:$0x1] %v2527
      %2530 = vst [vmem:[%s190 + $0x2] sm:$0x3f] 0.0
      %p2531 = scmp.lt.s32.totalorder %s18, 1
      %s2532 = scalar_select %p2531, %s18, 1
      %p2533 = scmp.lt.s32.totalorder %s19, 1
      %s2534 = scalar_select %p2533, %s19, 1
      %s2535 = smul.addr %s2532, 2
      %s2536 = sadd.s32 %s2534, %s2535
      %s2537 = smul.addr %s2536, 8
      %s2538 = scalar_lea.vmem %s3, %s2537
      // Predicated region
      $region33: #{upblock_forward.2} parent=31 // pred_check
        %p2539 = pneg %p114
      $region34: #{upblock_forward.2} parent=31 // pred_check_branch
        %2541 = sbr.rel (%p2539) target = $region36
      $region35: #{upblock_forward.2} parent=31 // pred_region
        _
      $region36: #{upblock_forward.2} parent=31 // pred_fallthru
        _
    $region32: #{upblock_forward.2} parent=5 // pred_fallthru
      _
    %p2542 = scmp.le.s32.totalorder 2, %s9
    // Predicated region
    $region37: #{upblock_forward.2} parent=5 // pred_check
      %p2543 = pneg %p2542
    $region38: #{upblock_forward.2} parent=5 // pred_check_branch
      %2545 = sbr.rel (%p2543) target = $region40
    $region39: #{upblock_forward.2} parent=5 // pred_region
      %s2546 = ssub.s32 %s9, 2
      // Predicated region
      $region41: #{upblock_forward.2} parent=39 // pred_check
        %p2547 = pneg %p120
      $region42: #{upblock_forward.2} parent=39 // pred_check_branch
        %2549 = sbr.rel (%p2547) target = $region44
      $region43: #{upblock_forward.2} parent=39 // pred_region
        %p2550 = scmp.lt.s32.totalorder %s20, 1
        %s2551 = scalar_select %p2550, %s20, 1
        %p2552 = scmp.lt.s32.totalorder %s21, 1
        %s2553 = scalar_select %p2552, %s21, 1
        %s2554 = smul.addr %s2551, 2
        %s2555 = sadd.s32 %s2553, %s2554
        %s2556 = smul.addr %s2555, 8
        %s2557 = scalar_lea.vmem %s3, %s2556
      $region44: #{upblock_forward.2} parent=39 // pred_fallthru
        _
    $region40: #{upblock_forward.2} parent=5 // pred_fallthru
      _
  $region6: #{upblock_forward.2} parent=0 // loop_footer
    %s13 = sadd.s32 1, %s9
  $region7: #{upblock_forward.2} parent=0 // loop_footer_branch
    %8 = sbr.rel target = $region3
  $region8: #{upblock_forward.2} parent=0 // loop_exit
    _

// kernel: upblock_forward.3
$region0: #{upblock_forward.3}
  #allocation0 [shape = 'u32[]', space=smem, size = 0x4, offset = 0x4, fixed_abs, tag = 'smem constant byte address 0x4 - core index']
  #allocation1 [shape = 'u32[144,128]{1,0:T(1,128)}', space=vmem, size = 0x12000, scoped, tag = 'internal scratch']
  %s0 = inlined_call_operand.vmem [shape: f32[2,326,4], index: 0, kind: input, shape index: {}]
  %s1 = inlined_call_operand.vmem [shape: f32[9,4,128], index: 1, kind: input, shape index: {}]
  %s2 = inlined_call_operand.vmem [shape: f32[1,128], index: 2, kind: input, shape index: {}]
  %s3 = inlined_call_operand.vmem [shape: f32[1,128], index: 3, kind: input, shape index: {}]
  %s4 = inlined_call_operand.vmem [shape: f32[2,288,128], index: 4, kind: output, shape index: {}]
  %s5 = sld [smem:[#allocation0]]
  $region49: #{upblock_forward.3} parent=0
    _
  %s7 = ssub.s32 1, %s5
  %s8 = scalar_select 0, %s7, %s5
  loop: start=0, step=1, limit=6
  $region2: #{upblock_forward.3} parent=0 // loop_pre_header
    _
  $region3: #{upblock_forward.3} parent=0 // loop_header
    %s10 = sphi 0, %s14
    %p11 = scmp.ge.s32.totalorder %s10, 6
    %s17 = sphi 0, %s29
    %s18 = sphi 0, %s25
    %s19 = sphi 0, %s17
    %s20 = sphi 0, %s18
    %s21 = sphi 0, %s19
    %s22 = sphi 0, %s20
    %s32 = sphi 0, %s34
    %s35 = sphi 0, %s32
    %s36 = sphi 0, %s35
    %s52 = sphi 0, %s36
    %s56 = sphi 0, %s56
    %s58 = sphi 0, %s56
    %s59 = sphi 0, %s58
    %s73 = sphi 0, %s59
    %s77 = sphi 0, %s77
    %s79 = sphi 0, %s77
    %s80 = sphi 0, %s79
    %s94 = sphi 0, %s80
    %s98 = sphi 0, %s98
    %s100 = sphi 0, %s98
    %s101 = sphi 0, %s100
    %s115 = sphi 0, %s101
    %s123 = sphi 0, %s125
    %s126 = sphi 0, %s123
    %s127 = sphi 0, %s126
    %s143 = sphi 0, %s127
  $region4: #{upblock_forward.3} parent=0 // loop_header_branch
    %13 = sbr.rel (%p11) target = $region8
  $region5: #{upblock_forward.3} parent=0 // loop_body
    %s15 = ssub.s32 %s10, 1
    %s16 = ssub.s32 %s10, 2
    %s23 = sadd.s32 1, %s18
    %p24 = scmp.ge.s32.totalorder %s23, 2
    %s25 = scalar_select %p24, 0, %s23
    %s26 = sadd.s32 1, %s17
    %s27 = scalar_select %p24, %s26, %s17
    %p28 = scmp.ge.s32.totalorder %s27, 2
    %s29 = scalar_select %p28, 0, %s27
    %s30 = ssub.s32 %s17, %s29
    %p31 = scmp.eq.s32.totalorder %s30, 0
    %s33 = sadd.s32 %s32, 1
    %s34 = scalar_select %p31, %s32, %s33
    %p37 = pneg %p31
    %p38 = scmp.eq.s32.totalorder %s10, 3
    %p39 = por %p37, %p38
    %p40 = scmp.ne.s32.totalorder %s32, %s35
    %p41 = scmp.eq.s32.totalorder %s10, 0
    %p42 = por %p40, %p41
    %p43 = scmp.ne.s32.totalorder %s32, %s35
    %p44 = scmp.eq.s32.totalorder %s15, 3
    %p45 = por %p43, %p44
    %p46 = scmp.ne.s32.totalorder %s35, %s36
    %p47 = scmp.eq.s32.totalorder %s15, 0
    %p48 = por %p46, %p47
    %p49 = scmp.ne.s32.totalorder %s35, %s36
    %p50 = scmp.eq.s32.totalorder %s16, 3
    %p51 = por %p49, %p50
    %p53 = scmp.ne.s32.totalorder %s36, %s52
    %p54 = scmp.eq.s32.totalorder %s16, 0
    %p55 = por %p53, %p54
    %s57 = sadd.s32 %s56, 1
    %p60 = scmp.eq.s32.totalorder %s10, 3
    %p61 = scmp.ne.s32.totalorder %s56, %s58
    %p62 = scmp.eq.s32.totalorder %s10, 0
    %p63 = por %p61, %p62
    %p64 = scmp.ne.s32.totalorder %s56, %s58
    %p65 = scmp.eq.s32.totalorder %s15, 3
    %p66 = por %p64, %p65
    %p67 = scmp.ne.s32.totalorder %s58, %s59
    %p68 = scmp.eq.s32.totalorder %s15, 0
    %p69 = por %p67, %p68
    %p70 = scmp.ne.s32.totalorder %s58, %s59
    %p71 = scmp.eq.s32.totalorder %s16, 3
    %p72 = por %p70, %p71
    %p74 = scmp.ne.s32.totalorder %s59, %s73
    %p75 = scmp.eq.s32.totalorder %s16, 0
    %p76 = por %p74, %p75
    %s78 = sadd.s32 %s77, 1
    %p81 = scmp.eq.s32.totalorder %s10, 3
    %p82 = scmp.ne.s32.totalorder %s77, %s79
    %p83 = scmp.eq.s32.totalorder %s10, 0
    %p84 = por %p82, %p83
    %p85 = scmp.ne.s32.totalorder %s77, %s79
    %p86 = scmp.eq.s32.totalorder %s15, 3
    %p87 = por %p85, %p86
    %p88 = scmp.ne.s32.totalorder %s79, %s80
    %p89 = scmp.eq.s32.totalorder %s15, 0
    %p90 = por %p88, %p89
    %p91 = scmp.ne.s32.totalorder %s79, %s80
    %p92 = scmp.eq.s32.totalorder %s16, 3
    %p93 = por %p91, %p92
    %p95 = scmp.ne.s32.totalorder %s80, %s94
    %p96 = scmp.eq.s32.totalorder %s16, 0
    %p97 = por %p95, %p96
    %s99 = sadd.s32 %s98, 1
    %p102 = scmp.eq.s32.totalorder %s10, 3
    %p103 = scmp.ne.s32.totalorder %s98, %s100
    %p104 = scmp.eq.s32.totalorder %s10, 0
    %p105 = por %p103, %p104
    %p106 = scmp.ne.s32.totalorder %s98, %s100
    %p107 = scmp.eq.s32.totalorder %s15, 3
    %p108 = por %p106, %p107
    %p109 = scmp.ne.s32.totalorder %s100, %s101
    %p110 = scmp.eq.s32.totalorder %s15, 0
    %p111 = por %p109, %p110
    %p112 = scmp.ne.s32.totalorder %s100, %s101
    %p113 = scmp.eq.s32.totalorder %s16, 3
    %p114 = por %p112, %p113
    %p116 = scmp.ne.s32.totalorder %s101, %s115
    %p117 = scmp.eq.s32.totalorder %s16, 0
    %p118 = por %p116, %p117
    %s119 = ssub.s32 %s17, %s29
    %s120 = ssub.s32 %s18, %s25
    %s121 = sor.u32 %s119, %s120
    %p122 = scmp.eq.s32.totalorder %s121, 0
    %s124 = sadd.s32 %s123, 1
    %s125 = scalar_select %p122, %s123, %s124
    %p128 = pneg %p122
    %p129 = scmp.eq.s32.totalorder %s10, 3
    %p130 = por %p128, %p129
    %p131 = scmp.ne.s32.totalorder %s123, %s126
    %p132 = scmp.eq.s32.totalorder %s10, 0
    %p133 = por %p131, %p132
    %p134 = scmp.ne.s32.totalorder %s123, %s126
    %p135 = scmp.eq.s32.totalorder %s15, 3
    %p136 = por %p134, %p135
    %p137 = scmp.ne.s32.totalorder %s126, %s127
    %p138 = scmp.eq.s32.totalorder %s15, 0
    %p139 = por %p137, %p138
    %p140 = scmp.ne.s32.totalorder %s126, %s127
    %p141 = scmp.eq.s32.totalorder %s16, 3
    %p142 = por %p140, %p141
    %p144 = scmp.ne.s32.totalorder %s127, %s143
    %p145 = scmp.eq.s32.totalorder %s16, 0
    %p146 = por %p144, %p145
    %p147 = scmp.le.s32.totalorder 1, %s10
    %p148 = scmp.lt.s32.totalorder %s10, 5
    %p149 = pnand %p147, %p148
    %p150 = pneg %p149
    // Predicated region
    $region9: #{upblock_forward.3} parent=5 // pred_check
      _
    $region10: #{upblock_forward.3} parent=5 // pred_check_branch
      %152 = sbr.rel (%p149) target = $region12
    $region11: #{upblock_forward.3} parent=5 // pred_region
      %s153 = ssub.s32 %s10, 1
      // Predicated region
      $region13: #{upblock_forward.3} parent=11 // pred_check
        %p154 = pneg %p69
      $region14: #{upblock_forward.3} parent=11 // pred_check_branch
        %156 = sbr.rel (%p154) target = $region16
      $region15: #{upblock_forward.3} parent=11 // pred_region
        _
      $region16: #{upblock_forward.3} parent=11 // pred_fallthru
        _
      // Predicated region
      $region17: #{upblock_forward.3} parent=11 // pred_check
        %p157 = pneg %p90
      $region18: #{upblock_forward.3} parent=11 // pred_check_branch
        %159 = sbr.rel (%p157) target = $region20
      $region19: #{upblock_forward.3} parent=11 // pred_region
        _
      $region20: #{upblock_forward.3} parent=11 // pred_fallthru
        _
      // Predicated region
      $region21: #{upblock_forward.3} parent=11 // pred_check
        %p160 = pneg %p111
      $region22: #{upblock_forward.3} parent=11 // pred_check_branch
        %162 = sbr.rel (%p160) target = $region24
      $region23: #{upblock_forward.3} parent=11 // pred_region
        _
      $region24: #{upblock_forward.3} parent=11 // pred_fallthru
        _
    $region12: #{upblock_forward.3} parent=5 // pred_fallthru
      _
    %p163 = scmp.lt.s32.totalorder %s10, 4
    // Predicated region
    $region25: #{upblock_forward.3} parent=5 // pred_check
      %p164 = pneg %p163
    $region26: #{upblock_forward.3} parent=5 // pred_check_branch
      %166 = sbr.rel (%p164) target = $region28
    $region27: #{upblock_forward.3} parent=5 // pred_region
      // Predicated region
      $region29: #{upblock_forward.3} parent=27 // pred_check
        %p167 = pneg %p42
      $region30: #{upblock_forward.3} parent=27 // pred_check_branch
        %169 = sbr.rel (%p167) target = $region32
      $region31: #{upblock_forward.3} parent=27 // pred_region
        %p170 = scmp.lt.s32.totalorder %s17, 1
        %s171 = scalar_select %p170, %s17, 1
        %s172 = smul.addr %s171, 41
        %s173 = smul.addr %s172, 8
        %s174 = scalar_lea.vmem %s0, %s173
      $region32: #{upblock_forward.3} parent=27 // pred_fallthru
        _
    $region28: #{upblock_forward.3} parent=5 // pred_fallthru
      _
    %p175 = scmp.le.s32.totalorder 1, %s10
    %p176 = scmp.lt.s32.totalorder %s10, 5
    %p177 = pnand %p175, %p176
    %p178 = pneg %p177
    // Predicated region
    $region33: #{upblock_forward.3} parent=5 // pred_check
      _
    $region34: #{upblock_forward.3} parent=5 // pred_check_branch
      %180 = sbr.rel (%p177) target = $region36
    $region35: #{upblock_forward.3} parent=5 // pred_region
      %s181 = ssub.s32 %s10, 1
      %p182 = scmp.lt.s32.totalorder %s19, 1
      %s183 = scalar_select %p182, %s19, 1
      %s184 = smul.addr %s183, 41
      %s185 = smul.addr %s184, 8
      %s186 = scalar_lea.vmem %s0, %s185
      %p187 = pneg %p48
      %p188 = pneg %p45
      %p189 = pneg %p69
      %p190 = pneg %p66
      %p191 = pneg %p90
      %p192 = pneg %p87
      %p193 = pneg %p111
      %p194 = pneg %p108
      %p195 = pneg %p139
      %p196 = pneg %p136
      %s197 = smul.u32 18, %s20
      %p198 = scmp.lt.s32.totalorder %s19, 1
      %s199 = scalar_select %p198, %s19, 1
      %p200 = scmp.lt.s32.totalorder %s197, 35
      %s201 = scalar_select %p200, %s197, 35
      %s202 = smul.addr %s199, 36
      %s203 = sadd.s32 %s201, %s202
      %s204 = smul.addr %s203, 8
      %s205 = scalar_lea.vmem %s4, %s204
      %p206 = scmp.lt.s32.totalorder %s19, 1
      %s207 = scalar_select %p206, %s19, 1
      %s208 = smul.addr %s207, 41
      %s209 = smul.addr %s208, 8
      %s210 = scalar_lea.vmem %s0, %s209
      %s211 = smul.u32 18, %s20
      %p212 = scmp.lt.s32.totalorder %s19, 1
      %s213 = scalar_select %p212, %s19, 1
      %p214 = scmp.lt.s32.totalorder %s211, 35
      %s215 = scalar_select %p214, %s211, 35
      %s216 = smul.addr %s213, 36
      %s217 = sadd.s32 %s215, %s216
      %s218 = smul.addr %s217, 8
      %s219 = scalar_lea.vmem %s4, %s218
      %s220 = smul.u32 18, %s20
      %s221 = smul.u32 %s20, 144
      %s222 = scalar_lea.vmem %s210, %s221
      %v223 = vld [vmem:[%s222] sm:$0xff]
      %v224 = vld [vmem:[%s222 + $0x8] sm:$0xff]
      %v225 = vld [vmem:[%s222 + $0x10] sm:$0xff]
      %v226 = vld [vmem:[%s222 + $0x18] sm:$0xff]
      %v227 = vld [vmem:[%s222 + $0x20] sm:$0xff]
      %v228 = vld [vmem:[%s222 + $0x28] sm:$0xff]
      %v229 = vld [vmem:[%s222 + $0x30] sm:$0xff]
      %v230 = vld [vmem:[%s222 + $0x38] sm:$0xff]
      %v231 = vld [vmem:[%s222 + $0x40] sm:$0xff]
      %v232 = vld [vmem:[%s222 + $0x48] sm:$0xff]
      %v233 = vld [vmem:[%s222 + $0x50] sm:$0xff]
      %v234 = vld [vmem:[%s222 + $0x58] sm:$0xff]
      %v235 = vld [vmem:[%s222 + $0x60] sm:$0xff]
      %v236 = vld [vmem:[%s222 + $0x68] sm:$0xff]
      %v237 = vld [vmem:[%s222 + $0x70] sm:$0xff]
      %v238 = vld [vmem:[%s222 + $0x78] sm:$0xff]
      %v239 = vld [vmem:[%s222 + $0x80] sm:$0xff]
      %v240 = vld [vmem:[%s222 + $0x88] sm:$0xff]
      %v241 = vld [vmem:[%s222 + $0x90] sm:$0xff]
      %v242 = vld [vmem:[%s222 + $0x98] sm:$0xff]
      %v243 = vld [vmem:[%s222 + $0xa0] sm:$0xff]
      %v244 = vld [vmem:[%s222 + $0xa8] sm:$0xff]
      %v245 = vld [vmem:[%s222 + $0xb0] sm:$0x3f]
      %v246 = vld [vmem:[%s1] sm:$0xf]
      %s247 = scalar_lea.vmem %s1, 4
      %v248 = vld [vmem:[%s247] sm:$0xf]
      %vm268 = vcmask 1046528
      %v269 = vrot.slane %v223, 1
      %v270 = vrot.slane %v224, 1
      %v271 = vsel %vm268, %v269, %v270
      %v272 = vrot.slane %v225, 1
      %v273 = vsel %vm268, %v270, %v272
      %v274 = vrot.slane %v226, 1
      %v275 = vsel %vm268, %v272, %v274
      %v276 = vrot.slane %v227, 1
      %v277 = vsel %vm268, %v274, %v276
      %v278 = vrot.slane %v228, 1
      %v279 = vsel %vm268, %v276, %v278
      %v280 = vrot.slane %v229, 1
      %v281 = vsel %vm268, %v278, %v280
      %v282 = vrot.slane %v230, 1
      %v283 = vsel %vm268, %v280, %v282
      %v284 = vrot.slane %v231, 1
      %v285 = vsel %vm268, %v282, %v284
      %v286 = vrot.slane %v232, 1
      %v287 = vsel %vm268, %v284, %v286
      %v288 = vrot.slane %v233, 1
      %v289 = vsel %vm268, %v286, %v288
      %v290 = vrot.slane %v234, 1
      %v291 = vsel %vm268, %v288, %v290
      %v292 = vrot.slane %v235, 1
      %v293 = vsel %vm268, %v290, %v292
      %v294 = vrot.slane %v236, 1
      %v295 = vsel %vm268, %v292, %v294
      %v296 = vrot.slane %v237, 1
      %v297 = vsel %vm268, %v294, %v296
      %v298 = vrot.slane %v238, 1
      %v299 = vsel %vm268, %v296, %v298
      %v300 = vrot.slane %v239, 1
      %v301 = vsel %vm268, %v298, %v300
      %v302 = vrot.slane %v240, 1
      %v303 = vsel %vm268, %v300, %v302
      %v304 = vrot.slane %v241, 1
      %v305 = vsel %vm268, %v302, %v304
      %vm306 = vcmask 31744
      %v307 = vsel %vm306, %v271, 0
      %v309 = vsel %vm306, %v273, 0
      %v311 = vsel %vm306, %v275, 0
      %v313 = vsel %vm306, %v277, 0
      %v315 = vsel %vm306, %v279, 0
      %v317 = vsel %vm306, %v281, 0
      %v319 = vsel %vm306, %v283, 0
      %v321 = vsel %vm306, %v285, 0
      %v323 = vsel %vm306, %v287, 0
      %v325 = vsel %vm306, %v289, 0
      %v327 = vsel %vm306, %v291, 0
      %v329 = vsel %vm306, %v293, 0
      %v331 = vsel %vm306, %v295, 0
      %v333 = vsel %vm306, %v297, 0
      %v335 = vsel %vm306, %v299, 0
      %v337 = vsel %vm306, %v301, 0
      %v339 = vsel %vm306, %v303, 0
      %v341 = vsel %vm306, %v305, 0
      %vm343 = vcmask 1043456
      %v345 = vsel %vm343, %v248, 0
      %347 = vmatprep.subr.mxu0 0.0
      %348 = vmatpush1.msra.mxu0 %v345
      %349 = vmatprep.subr.mxu0 0.0
      %350 = vmatpush1.msra.mxu0 0.0
      %351 = vmatprep.subr.mxu0 0.0
      %352 = vmatpush1.msra.mxu0 0.0
      %353 = vmatprep.subr.mxu0 0.0
      %354 = vmatpush1.msra.mxu0 0.0
      %355 = vmatprep.subr.mxu0 0.0
      %356 = vmatpush1.msra.mxu0 0.0
      %357 = vmatprep.subr.mxu0 0.0
      %358 = vmatpush1.msra.mxu0 0.0
      %359 = vmatprep.subr.mxu0 0.0
      %360 = vmatpush1.msra.mxu0 0.0
      %361 = vmatprep.subr.mxu0 0.0
      %362 = vmatpush1.msra.mxu0 0.0
      %363 = vmatprep.subr.mxu0 0.0
      %364 = vmatpush1.msra.mxu0 0.0
      %365 = vmatprep.subr.mxu0 0.0
      %366 = vmatpush1.msra.mxu0 0.0
      %367 = vmatprep.subr.mxu0 0.0
      %368 = vmatpush1.msra.mxu0 0.0
      %369 = vmatprep.subr.mxu0 0.0
      %370 = vmatpush1.msra.mxu0 0.0
      %371 = vmatprep.subr.mxu0 0.0
      %372 = vmatpush1.msra.mxu0 0.0
      %373 = vmatprep.subr.mxu0 0.0
      %374 = vmatpush1.msra.mxu0 0.0
      %375 = vmatprep.subr.mxu0 0.0
      %376 = vmatpush1.msra.mxu0 0.0
      %377 = vmatprep.subr.mxu0 0.0
      %378 = vmatpush1.msra.mxu0 0.0
      %379 = vmatprep.subr.mxu0 0.0
      %380 = vmatpush1.msra.mxu0 0.0
      %381 = vmatprep.subr.mxu0 0.0
      %382 = vmatpush1.msra.mxu0 0.0
      %383 = vmatprep.subr.mxu0 0.0
      %384 = vmatpush1.msra.mxu0 0.0
      %385 = vmatprep.subr.mxu0 0.0
      %386 = vmatpush1.msra.mxu0 0.0
      %387 = vmatprep.subr.mxu0 0.0
      %388 = vmatpush1.msra.mxu0 0.0
      %389 = vmatprep.subr.mxu0 0.0
      %390 = vmatpush1.msra.mxu0 0.0
      %391 = vmatprep.subr.mxu0 0.0
      %392 = vmatpush1.msra.mxu0 0.0
      %393 = vmatprep.subr.mxu0 0.0
      %394 = vmatpush1.msra.mxu0 0.0
      %395 = vmatprep.subr.mxu0 0.0
      %396 = vmatpush1.msra.mxu0 0.0
      %397 = vmatprep.subr.mxu0 0.0
      %398 = vmatpush1.msra.mxu0 0.0
      %399 = vmatprep.subr.mxu0 0.0
      %400 = vmatpush1.msra.mxu0 0.0
      %401 = vmatprep.subr.mxu0 0.0
      %402 = vmatpush1.msra.mxu0 0.0
      %403 = vmatprep.subr.mxu0 0.0
      %404 = vmatpush1.msra.mxu0 0.0
      %405 = vmatprep.subr.mxu0 0.0
      %406 = vmatpush1.msra.mxu0 0.0
      %407 = vmatprep.subr.mxu0 0.0
      %408 = vmatpush1.msra.mxu0 0.0
      %409 = vmatprep.subr.mxu0 0.0
      %410 = vmatpush1.msra.mxu0 0.0
      %411 = vmatprep.mubr.f32.mxu0 0.0
      %412 = vmatmul.mubr.f32.gmra.mrb[0].mxu0 %v307
      %v413 = vpop.f32.mrb[0].mxu0
      %v414 = vadd.f32 0.0, %v413
      %v415 = vpop.f32.mrb[0].mxu0
      %416 = vmatprep.mubr.f32.mxu0 0.0
      %417 = vmatmul.mubr.f32.gmra.mrb[0].mxu0 %v309
      %v418 = vpop.f32.mrb[0].mxu0
      %v419 = vadd.f32 0.0, %v418
      %v420 = vpop.f32.mrb[0].mxu0
      %421 = vmatprep.mubr.f32.mxu0 0.0
      %422 = vmatmul.mubr.f32.gmra.mrb[0].mxu0 %v311
      %v423 = vpop.f32.mrb[0].mxu0
      %v424 = vadd.f32 0.0, %v423
      %v425 = vpop.f32.mrb[0].mxu0
      %426 = vmatprep.mubr.f32.mxu0 0.0
      %427 = vmatmul.mubr.f32.gmra.mrb[0].mxu0 %v313
      %v428 = vpop.f32.mrb[0].mxu0
      %v429 = vadd.f32 0.0, %v428
      %v430 = vpop.f32.mrb[0].mxu0
      %431 = vmatprep.mubr.f32.mxu0 0.0
      %432 = vmatmul.mubr.f32.gmra.mrb[0].mxu0 %v315
      %v433 = vpop.f32.mrb[0].mxu0
      %v434 = vadd.f32 0.0, %v433
      %v435 = vpop.f32.mrb[0].mxu0
      %436 = vmatprep.mubr.f32.mxu0 0.0
      %437 = vmatmul.mubr.f32.gmra.mrb[0].mxu0 %v317
      %v438 = vpop.f32.mrb[0].mxu0
      %v439 = vadd.f32 0.0, %v438
      %v440 = vpop.f32.mrb[0].mxu0
      %441 = vmatprep.mubr.f32.mxu0 0.0
      %442 = vmatmul.mubr.f32.gmra.mrb[0].mxu0 %v319
      %v443 = vpop.f32.mrb[0].mxu0
      %v444 = vadd.f32 0.0, %v443
      %v445 = vpop.f32.mrb[0].mxu0
      %446 = vmatprep.mubr.f32.mxu0 0.0
      %447 = vmatmul.mubr.f32.gmra.mrb[0].mxu0 %v321
      %v448 = vpop.f32.mrb[0].mxu0
      %v449 = vadd.f32 0.0, %v448
      %v450 = vpop.f32.mrb[0].mxu0
      %451 = vmatprep.mubr.f32.mxu0 0.0
      %452 = vmatmul.mubr.f32.gmra.mrb[0].mxu0 %v323
      %v453 = vpop.f32.mrb[0].mxu0
      %v454 = vadd.f32 0.0, %v453
      %v455 = vpop.f32.mrb[0].mxu0
      %456 = vmatprep.mubr.f32.mxu0 0.0
      %457 = vmatmul.mubr.f32.gmra.mrb[0].mxu0 %v325
      %v458 = vpop.f32.mrb[0].mxu0
      %v459 = vadd.f32 0.0, %v458
      %v460 = vpop.f32.mrb[0].mxu0
      %461 = vmatprep.mubr.f32.mxu0 0.0
      %462 = vmatmul.mubr.f32.gmra.mrb[0].mxu0 %v327
      %v463 = vpop.f32.mrb[0].mxu0
      %v464 = vadd.f32 0.0, %v463
      %v465 = vpop.f32.mrb[0].mxu0
      %466 = vmatprep.mubr.f32.mxu0 0.0
      %467 = vmatmul.mubr.f32.gmra.mrb[0].mxu0 %v329
      %v468 = vpop.f32.mrb[0].mxu0
      %v469 = vadd.f32 0.0, %v468
      %v470 = vpop.f32.mrb[0].mxu0
      %471 = vmatprep.mubr.f32.mxu0 0.0
      %472 = vmatmul.mubr.f32.gmra.mrb[0].mxu0 %v331
      %v473 = vpop.f32.mrb[0].mxu0
      %v474 = vadd.f32 0.0, %v473
      %v475 = vpop.f32.mrb[0].mxu0
      %476 = vmatprep.mubr.f32.mxu0 0.0
      %477 = vmatmul.mubr.f32.gmra.mrb[0].mxu0 %v333
      %v478 = vpop.f32.mrb[0].mxu0
      %v479 = vadd.f32 0.0, %v478
      %v480 = vpop.f32.mrb[0].mxu0
      %481 = vmatprep.mubr.f32.mxu0 0.0
      %482 = vmatmul.mubr.f32.gmra.mrb[0].mxu0 %v335
      %v483 = vpop.f32.mrb[0].mxu0
      %v484 = vadd.f32 0.0, %v483
      %v485 = vpop.f32.mrb[0].mxu0
      %486 = vmatprep.mubr.f32.mxu0 0.0
      %487 = vmatmul.mubr.f32.gmra.mrb[0].mxu0 %v337
      %v488 = vpop.f32.mrb[0].mxu0
      %v489 = vadd.f32 0.0, %v488
      %v490 = vpop.f32.mrb[0].mxu0
      %491 = vmatprep.mubr.f32.mxu0 0.0
      %492 = vmatmul.mubr.f32.gmra.mrb[0].mxu0 %v339
      %v493 = vpop.f32.mrb[0].mxu0
      %v494 = vadd.f32 0.0, %v493
      %v495 = vpop.f32.mrb[0].mxu0
      %496 = vmatprep.mubr.f32.mxu0 0.0
      %497 = vmatmul.mubr.f32.gmra.mrb[0].mxu0 %v341
      %v498 = vpop.f32.mrb[0].mxu0
      %v499 = vadd.f32 0.0, %v498
      %v500 = vpop.f32.mrb[0].mxu0
      %501 = vdwg.mxu0
      %v502 = vsel %vm306, %v223, 0
      %v504 = vsel %vm306, %v224, 0
      %v506 = vsel %vm306, %v225, 0
      %v508 = vsel %vm306, %v226, 0
      %v510 = vsel %vm306, %v227, 0
      %v512 = vsel %vm306, %v228, 0
      %v514 = vsel %vm306, %v229, 0
      %v516 = vsel %vm306, %v230, 0
      %v518 = vsel %vm306, %v231, 0
      %v520 = vsel %vm306, %v232, 0
      %v522 = vsel %vm306, %v233, 0
      %v524 = vsel %vm306, %v234, 0
      %v526 = vsel %vm306, %v235, 0
      %v528 = vsel %vm306, %v236, 0
      %v530 = vsel %vm306, %v237, 0
      %v532 = vsel %vm306, %v238, 0
      %v534 = vsel %vm306, %v239, 0
      %v536 = vsel %vm306, %v240, 0
      %v539 = vsel %vm343, %v246, 0
      %541 = vmatprep.subr.mxu0 0.0
      %542 = vmatpush1.msra.mxu0 %v539
      %543 = vmatprep.subr.mxu0 0.0
      %544 = vmatpush1.msra.mxu0 0.0
      %545 = vmatprep.subr.mxu0 0.0
      %546 = vmatpush1.msra.mxu0 0.0
      %547 = vmatprep.subr.mxu0 0.0
      %548 = vmatpush1.msra.mxu0 0.0
      %549 = vmatprep.subr.mxu0 0.0
      %550 = vmatpush1.msra.mxu0 0.0
      %551 = vmatprep.subr.mxu0 0.0
      %552 = vmatpush1.msra.mxu0 0.0
      %553 = vmatprep.subr.mxu0 0.0
      %554 = vmatpush1.msra.mxu0 0.0
      %555 = vmatprep.subr.mxu0 0.0
      %556 = vmatpush1.msra.mxu0 0.0
      %557 = vmatprep.subr.mxu0 0.0
      %558 = vmatpush1.msra.mxu0 0.0
      %559 = vmatprep.subr.mxu0 0.0
      %560 = vmatpush1.msra.mxu0 0.0
      %561 = vmatprep.subr.mxu0 0.0
      %562 = vmatpush1.msra.mxu0 0.0
      %563 = vmatprep.subr.mxu0 0.0
      %564 = vmatpush1.msra.mxu0 0.0
      %565 = vmatprep.subr.mxu0 0.0
      %566 = vmatpush1.msra.mxu0 0.0
      %567 = vmatprep.subr.mxu0 0.0
      %568 = vmatpush1.msra.mxu0 0.0
      %569 = vmatprep.subr.mxu0 0.0
      %570 = vmatpush1.msra.mxu0 0.0
      %571 = vmatprep.subr.mxu0 0.0
      %572 = vmatpush1.msra.mxu0 0.0
      %573 = vmatprep.subr.mxu0 0.0
      %574 = vmatpush1.msra.mxu0 0.0
      %575 = vmatprep.subr.mxu0 0.0
      %576 = vmatpush1.msra.mxu0 0.0
      %577 = vmatprep.subr.mxu0 0.0
      %578 = vmatpush1.msra.mxu0 0.0
      %579 = vmatprep.subr.mxu0 0.0
      %580 = vmatpush1.msra.mxu0 0.0
      %581 = vmatprep.subr.mxu0 0.0
      %582 = vmatpush1.msra.mxu0 0.0
      %583 = vmatprep.subr.mxu0 0.0
      %584 = vmatpush1.msra.mxu0 0.0
      %585 = vmatprep.subr.mxu0 0.0
      %586 = vmatpush1.msra.mxu0 0.0
      %587 = vmatprep.subr.mxu0 0.0
      %588 = vmatpush1.msra.mxu0 0.0
      %589 = vmatprep.subr.mxu0 0.0
      %590 = vmatpush1.msra.mxu0 0.0
      %591 = vmatprep.subr.mxu0 0.0
      %592 = vmatpush1.msra.mxu0 0.0
      %593 = vmatprep.subr.mxu0 0.0
      %594 = vmatpush1.msra.mxu0 0.0
      %595 = vmatprep.subr.mxu0 0.0
      %596 = vmatpush1.msra.mxu0 0.0
      %597 = vmatprep.subr.mxu0 0.0
      %598 = vmatpush1.msra.mxu0 0.0
      %599 = vmatprep.subr.mxu0 0.0
      %600 = vmatpush1.msra.mxu0 0.0
      %601 = vmatprep.subr.mxu0 0.0
      %602 = vmatpush1.msra.mxu0 0.0
      %603 = vmatprep.subr.mxu0 0.0
      %604 = vmatpush1.msra.mxu0 0.0
      %605 = vmatprep.mubr.f32.mxu0 0.0
      %606 = vmatmul.mubr.f32.gmra.mrb[0].mxu0 %v502
      %v607 = vpop.f32.mrb[0].mxu0
      %v608 = vadd.f32 %v414, %v607
      %v609 = vpop.f32.mrb[0].mxu0
      %610 = vmatprep.mubr.f32.mxu0 0.0
      %611 = vmatmul.mubr.f32.gmra.mrb[0].mxu0 %v504
      %v612 = vpop.f32.mrb[0].mxu0
      %v613 = vadd.f32 %v419, %v612
      %v614 = vpop.f32.mrb[0].mxu0
      %615 = vmatprep.mubr.f32.mxu0 0.0
      %616 = vmatmul.mubr.f32.gmra.mrb[0].mxu0 %v506
      %v617 = vpop.f32.mrb[0].mxu0
      %v618 = vadd.f32 %v424, %v617
      %v619 = vpop.f32.mrb[0].mxu0
      %620 = vmatprep.mubr.f32.mxu0 0.0
      %621 = vmatmul.mubr.f32.gmra.mrb[0].mxu0 %v508
      %v622 = vpop.f32.mrb[0].mxu0
      %v623 = vadd.f32 %v429, %v622
      %v624 = vpop.f32.mrb[0].mxu0
      %625 = vmatprep.mubr.f32.mxu0 0.0
      %626 = vmatmul.mubr.f32.gmra.mrb[0].mxu0 %v510
      %v627 = vpop.f32.mrb[0].mxu0
      %v628 = vadd.f32 %v434, %v627
      %v629 = vpop.f32.mrb[0].mxu0
      %630 = vmatprep.mubr.f32.mxu0 0.0
      %631 = vmatmul.mubr.f32.gmra.mrb[0].mxu0 %v512
      %v632 = vpop.f32.mrb[0].mxu0
      %v633 = vadd.f32 %v439, %v632
      %v634 = vpop.f32.mrb[0].mxu0
      %635 = vmatprep.mubr.f32.mxu0 0.0
      %636 = vmatmul.mubr.f32.gmra.mrb[0].mxu0 %v514
      %v637 = vpop.f32.mrb[0].mxu0
      %v638 = vadd.f32 %v444, %v637
      %v639 = vpop.f32.mrb[0].mxu0
      %640 = vmatprep.mubr.f32.mxu0 0.0
      %641 = vmatmul.mubr.f32.gmra.mrb[0].mxu0 %v516
      %v642 = vpop.f32.mrb[0].mxu0
      %v643 = vadd.f32 %v449, %v642
      %v644 = vpop.f32.mrb[0].mxu0
      %645 = vmatprep.mubr.f32.mxu0 0.0
      %646 = vmatmul.mubr.f32.gmra.mrb[0].mxu0 %v518
      %v647 = vpop.f32.mrb[0].mxu0
      %v648 = vadd.f32 %v454, %v647
      %v649 = vpop.f32.mrb[0].mxu0
      %650 = vmatprep.mubr.f32.mxu0 0.0
      %651 = vmatmul.mubr.f32.gmra.mrb[0].mxu0 %v520
      %v652 = vpop.f32.mrb[0].mxu0
      %v653 = vadd.f32 %v459, %v652
      %v654 = vpop.f32.mrb[0].mxu0
      %655 = vmatprep.mubr.f32.mxu0 0.0
      %656 = vmatmul.mubr.f32.gmra.mrb[0].mxu0 %v522
      %v657 = vpop.f32.mrb[0].mxu0
      %v658 = vadd.f32 %v464, %v657
      %v659 = vpop.f32.mrb[0].mxu0
      %660 = vmatprep.mubr.f32.mxu0 0.0
      %661 = vmatmul.mubr.f32.gmra.mrb[0].mxu0 %v524
      %v662 = vpop.f32.mrb[0].mxu0
      %v663 = vadd.f32 %v469, %v662
      %v664 = vpop.f32.mrb[0].mxu0
      %665 = vmatprep.mubr.f32.mxu0 0.0
      %666 = vmatmul.mubr.f32.gmra.mrb[0].mxu0 %v526
      %v667 = vpop.f32.mrb[0].mxu0
      %v668 = vadd.f32 %v474, %v667
      %v669 = vpop.f32.mrb[0].mxu0
      %670 = vmatprep.mubr.f32.mxu0 0.0
      %671 = vmatmul.mubr.f32.gmra.mrb[0].mxu0 %v528
      %v672 = vpop.f32.mrb[0].mxu0
      %v673 = vadd.f32 %v479, %v672
      %v674 = vpop.f32.mrb[0].mxu0
      %675 = vmatprep.mubr.f32.mxu0 0.0
      %676 = vmatmul.mubr.f32.gmra.mrb[0].mxu0 %v530
      %v677 = vpop.f32.mrb[0].mxu0
      %v678 = vadd.f32 %v484, %v677
      %v679 = vpop.f32.mrb[0].mxu0
      %680 = vmatprep.mubr.f32.mxu0 0.0
      %681 = vmatmul.mubr.f32.gmra.mrb[0].mxu0 %v532
      %v682 = vpop.f32.mrb[0].mxu0
      %v683 = vadd.f32 %v489, %v682
      %v684 = vpop.f32.mrb[0].mxu0
      %685 = vmatprep.mubr.f32.mxu0 0.0
      %686 = vmatmul.mubr.f32.gmra.mrb[0].mxu0 %v534
      %v687 = vpop.f32.mrb[0].mxu0
      %v688 = vadd.f32 %v494, %v687
      %v689 = vpop.f32.mrb[0].mxu0
      %690 = vmatprep.mubr.f32.mxu0 0.0
      %691 = vmatmul.mubr.f32.gmra.mrb[0].mxu0 %v536
      %v692 = vpop.f32.mrb[0].mxu0
      %v693 = vadd.f32 %v499, %v692
      %v694 = vpop.f32.mrb[0].mxu0
      %695 = vdwg.mxu0
      %s696 = scalar_lea.vmem %s1, 8
      %v697 = vld [vmem:[%s696] sm:$0xf]
      %vm698 = vcmask 1045504
      %v699 = vrot.slane %v223, 2
      %v700 = vrot.slane %v224, 2
      %v701 = vsel %vm698, %v699, %v700
      %v702 = vrot.slane %v225, 2
      %v703 = vsel %vm698, %v700, %v702
      %v704 = vrot.slane %v226, 2
      %v705 = vsel %vm698, %v702, %v704
      %v706 = vrot.slane %v227, 2
      %v707 = vsel %vm698, %v704, %v706
      %v708 = vrot.slane %v228, 2
      %v709 = vsel %vm698, %v706, %v708
      %v710 = vrot.slane %v229, 2
      %v711 = vsel %vm698, %v708, %v710
      %v712 = vrot.slane %v230, 2
      %v713 = vsel %vm698, %v710, %v712
      %v714 = vrot.slane %v231, 2
      %v715 = vsel %vm698, %v712, %v714
      %v716 = vrot.slane %v232, 2
      %v717 = vsel %vm698, %v714, %v716
      %v718 = vrot.slane %v233, 2
      %v719 = vsel %vm698, %v716, %v718
      %v720 = vrot.slane %v234, 2
      %v721 = vsel %vm698, %v718, %v720
      %v722 = vrot.slane %v235, 2
      %v723 = vsel %vm698, %v720, %v722
      %v724 = vrot.slane %v236, 2
      %v725 = vsel %vm698, %v722, %v724
      %v726 = vrot.slane %v237, 2
      %v727 = vsel %vm698, %v724, %v726
      %v728 = vrot.slane %v238, 2
      %v729 = vsel %vm698, %v726, %v728
      %v730 = vrot.slane %v239, 2
      %v731 = vsel %vm698, %v728, %v730
      %v732 = vrot.slane %v240, 2
      %v733 = vsel %vm698, %v730, %v732
      %v734 = vrot.slane %v241, 2
      %v735 = vsel %vm698, %v732, %v734
      %v736 = vsel %vm306, %v701, 0
      %v738 = vsel %vm306, %v703, 0
      %v740 = vsel %vm306, %v705, 0
      %v742 = vsel %vm306, %v707, 0
      %v744 = vsel %vm306, %v709, 0
      %v746 = vsel %vm306, %v711, 0
      %v748 = vsel %vm306, %v713, 0
      %v750 = vsel %vm306, %v715, 0
      %v752 = vsel %vm306, %v717, 0
      %v754 = vsel %vm306, %v719, 0
      %v756 = vsel %vm306, %v721, 0
      %v758 = vsel %vm306, %v723, 0
      %v760 = vsel %vm306, %v725, 0
      %v762 = vsel %vm306, %v727, 0
      %v764 = vsel %vm306, %v729, 0
      %v766 = vsel %vm306, %v731, 0
      %v768 = vsel %vm306, %v733, 0
      %v770 = vsel %vm306, %v735, 0
      %v773 = vsel %vm343, %v697, 0
      %775 = vmatprep.subr.mxu0 0.0
      %776 = vmatpush1.msra.mxu0 %v773
      %777 = vmatprep.subr.mxu0 0.0
      %778 = vmatpush1.msra.mxu0 0.0
      %779 = vmatprep.subr.mxu0 0.0
      %780 = vmatpush1.msra.mxu0 0.0
      %781 = vmatprep.subr.mxu0 0.0
      %782 = vmatpush1.msra.mxu0 0.0
      %783 = vmatprep.subr.mxu0 0.0
      %784 = vmatpush1.msra.mxu0 0.0
      %785 = vmatprep.subr.mxu0 0.0
      %786 = vmatpush1.msra.mxu0 0.0
      %787 = vmatprep.subr.mxu0 0.0
      %788 = vmatpush1.msra.mxu0 0.0
      %789 = vmatprep.subr.mxu0 0.0
      %790 = vmatpush1.msra.mxu0 0.0
      %791 = vmatprep.subr.mxu0 0.0
      %792 = vmatpush1.msra.mxu0 0.0
      %793 = vmatprep.subr.mxu0 0.0
      %794 = vmatpush1.msra.mxu0 0.0
      %795 = vmatprep.subr.mxu0 0.0
      %796 = vmatpush1.msra.mxu0 0.0
      %797 = vmatprep.subr.mxu0 0.0
      %798 = vmatpush1.msra.mxu0 0.0
      %799 = vmatprep.subr.mxu0 0.0
      %800 = vmatpush1.msra.mxu0 0.0
      %801 = vmatprep.subr.mxu0 0.0
      %802 = vmatpush1.msra.mxu0 0.0
      %803 = vmatprep.subr.mxu0 0.0
      %804 = vmatpush1.msra.mxu0 0.0
      %805 = vmatprep.subr.mxu0 0.0
      %806 = vmatpush1.msra.mxu0 0.0
      %807 = vmatprep.subr.mxu0 0.0
      %808 = vmatpush1.msra.mxu0 0.0
      %809 = vmatprep.subr.mxu0 0.0
      %810 = vmatpush1.msra.mxu0 0.0
      %811 = vmatprep.subr.mxu0 0.0
      %812 = vmatpush1.msra.mxu0 0.0
      %813 = vmatprep.subr.mxu0 0.0
      %814 = vmatpush1.msra.mxu0 0.0
      %815 = vmatprep.subr.mxu0 0.0
      %816 = vmatpush1.msra.mxu0 0.0
      %817 = vmatprep.subr.mxu0 0.0
      %818 = vmatpush1.msra.mxu0 0.0
      %819 = vmatprep.subr.mxu0 0.0
      %820 = vmatpush1.msra.mxu0 0.0
      %821 = vmatprep.subr.mxu0 0.0
      %822 = vmatpush1.msra.mxu0 0.0
      %823 = vmatprep.subr.mxu0 0.0
      %824 = vmatpush1.msra.mxu0 0.0
      %825 = vmatprep.subr.mxu0 0.0
      %826 = vmatpush1.msra.mxu0 0.0
      %827 = vmatprep.subr.mxu0 0.0
      %828 = vmatpush1.msra.mxu0 0.0
      %829 = vmatprep.subr.mxu0 0.0
      %830 = vmatpush1.msra.mxu0 0.0
      %831 = vmatprep.subr.mxu0 0.0
      %832 = vmatpush1.msra.mxu0 0.0
      %833 = vmatprep.subr.mxu0 0.0
      %834 = vmatpush1.msra.mxu0 0.0
      %835 = vmatprep.subr.mxu0 0.0
      %836 = vmatpush1.msra.mxu0 0.0
      %837 = vmatprep.subr.mxu0 0.0
      %838 = vmatpush1.msra.mxu0 0.0
      %839 = vmatprep.mubr.f32.mxu0 0.0
      %840 = vmatmul.mubr.f32.gmra.mrb[0].mxu0 %v736
      %v841 = vpop.f32.mrb[0].mxu0
      %v842 = vadd.f32 0.0, %v841
      %v843 = vpop.f32.mrb[0].mxu0
      %844 = vmatprep.mubr.f32.mxu0 0.0
      %845 = vmatmul.mubr.f32.gmra.mrb[0].mxu0 %v738
      %v846 = vpop.f32.mrb[0].mxu0
      %v847 = vadd.f32 0.0, %v846
      %v848 = vpop.f32.mrb[0].mxu0
      %849 = vmatprep.mubr.f32.mxu0 0.0
      %850 = vmatmul.mubr.f32.gmra.mrb[0].mxu0 %v740
      %v851 = vpop.f32.mrb[0].mxu0
      %v852 = vadd.f32 0.0, %v851
      %v853 = vpop.f32.mrb[0].mxu0
      %854 = vmatprep.mubr.f32.mxu0 0.0
      %855 = vmatmul.mubr.f32.gmra.mrb[0].mxu0 %v742
      %v856 = vpop.f32.mrb[0].mxu0
      %v857 = vadd.f32 0.0, %v856
      %v858 = vpop.f32.mrb[0].mxu0
      %859 = vmatprep.mubr.f32.mxu0 0.0
      %860 = vmatmul.mubr.f32.gmra.mrb[0].mxu0 %v744
      %v861 = vpop.f32.mrb[0].mxu0
      %v862 = vadd.f32 0.0, %v861
      %v863 = vpop.f32.mrb[0].mxu0
      %864 = vmatprep.mubr.f32.mxu0 0.0
      %865 = vmatmul.mubr.f32.gmra.mrb[0].mxu0 %v746
      %v866 = vpop.f32.mrb[0].mxu0
      %v867 = vadd.f32 0.0, %v866
      %v868 = vpop.f32.mrb[0].mxu0
      %869 = vmatprep.mubr.f32.mxu0 0.0
      %870 = vmatmul.mubr.f32.gmra.mrb[0].mxu0 %v748
      %v871 = vpop.f32.mrb[0].mxu0
      %v872 = vadd.f32 0.0, %v871
      %v873 = vpop.f32.mrb[0].mxu0
      %874 = vmatprep.mubr.f32.mxu0 0.0
      %875 = vmatmul.mubr.f32.gmra.mrb[0].mxu0 %v750
      %v876 = vpop.f32.mrb[0].mxu0
      %v877 = vadd.f32 0.0, %v876
      %v878 = vpop.f32.mrb[0].mxu0
      %879 = vmatprep.mubr.f32.mxu0 0.0
      %880 = vmatmul.mubr.f32.gmra.mrb[0].mxu0 %v752
      %v881 = vpop.f32.mrb[0].mxu0
      %v882 = vadd.f32 0.0, %v881
      %v883 = vpop.f32.mrb[0].mxu0
      %884 = vmatprep.mubr.f32.mxu0 0.0
      %885 = vmatmul.mubr.f32.gmra.mrb[0].mxu0 %v754
      %v886 = vpop.f32.mrb[0].mxu0
      %v887 = vadd.f32 0.0, %v886
      %v888 = vpop.f32.mrb[0].mxu0
      %889 = vmatprep.mubr.f32.mxu0 0.0
      %890 = vmatmul.mubr.f32.gmra.mrb[0].mxu0 %v756
      %v891 = vpop.f32.mrb[0].mxu0
      %v892 = vadd.f32 0.0, %v891
      %v893 = vpop.f32.mrb[0].mxu0
      %894 = vmatprep.mubr.f32.mxu0 0.0
      %895 = vmatmul.mubr.f32.gmra.mrb[0].mxu0 %v758
      %v896 = vpop.f32.mrb[0].mxu0
      %v897 = vadd.f32 0.0, %v896
      %v898 = vpop.f32.mrb[0].mxu0
      %899 = vmatprep.mubr.f32.mxu0 0.0
      %900 = vmatmul.mubr.f32.gmra.mrb[0].mxu0 %v760
      %v901 = vpop.f32.mrb[0].mxu0
      %v902 = vadd.f32 0.0, %v901
      %v903 = vpop.f32.mrb[0].mxu0
      %904 = vmatprep.mubr.f32.mxu0 0.0
      %905 = vmatmul.mubr.f32.gmra.mrb[0].mxu0 %v762
      %v906 = vpop.f32.mrb[0].mxu0
      %v907 = vadd.f32 0.0, %v906
      %v908 = vpop.f32.mrb[0].mxu0
      %909 = vmatprep.mubr.f32.mxu0 0.0
      %910 = vmatmul.mubr.f32.gmra.mrb[0].mxu0 %v764
      %v911 = vpop.f32.mrb[0].mxu0
      %v912 = vadd.f32 0.0, %v911
      %v913 = vpop.f32.mrb[0].mxu0
      %914 = vmatprep.mubr.f32.mxu0 0.0
      %915 = vmatmul.mubr.f32.gmra.mrb[0].mxu0 %v766
      %v916 = vpop.f32.mrb[0].mxu0
      %v917 = vadd.f32 0.0, %v916
      %v918 = vpop.f32.mrb[0].mxu0
      %919 = vmatprep.mubr.f32.mxu0 0.0
      %920 = vmatmul.mubr.f32.gmra.mrb[0].mxu0 %v768
      %v921 = vpop.f32.mrb[0].mxu0
      %v922 = vadd.f32 0.0, %v921
      %v923 = vpop.f32.mrb[0].mxu0
      %924 = vmatprep.mubr.f32.mxu0 0.0
      %925 = vmatmul.mubr.f32.gmra.mrb[0].mxu0 %v770
      %v926 = vpop.f32.mrb[0].mxu0
      %v927 = vadd.f32 0.0, %v926
      %v928 = vpop.f32.mrb[0].mxu0
      %929 = vdwg.mxu0
      %v930 = vadd.f32 %v608, %v842
      %v931 = vadd.f32 %v613, %v847
      %v932 = vadd.f32 %v618, %v852
      %v933 = vadd.f32 %v623, %v857
      %v934 = vadd.f32 %v628, %v862
      %v935 = vadd.f32 %v633, %v867
      %v936 = vadd.f32 %v638, %v872
      %v937 = vadd.f32 %v643, %v877
      %v938 = vadd.f32 %v648, %v882
      %v939 = vadd.f32 %v653, %v887
      %v940 = vadd.f32 %v658, %v892
      %v941 = vadd.f32 %v663, %v897
      %v942 = vadd.f32 %v668, %v902
      %v943 = vadd.f32 %v673, %v907
      %v944 = vadd.f32 %v678, %v912
      %v945 = vadd.f32 %v683, %v917
      %v946 = vadd.f32 %v688, %v922
      %v947 = vadd.f32 %v693, %v927
      %s948 = scalar_lea.vmem %s1, 12
      %v949 = vld [vmem:[%s948] sm:$0xf]
      %v952 = vrot.slane %v242, 2
      %v953 = vsel %vm698, %v734, %v952
      %v954 = vrot.slane %v243, 2
      %v955 = vsel %vm698, %v952, %v954
      %v956 = vsel %vm306, %v953, 0
      %v958 = vsel %vm306, %v955, 0
      %v961 = vsel %vm343, %v949, 0
      %963 = vmatprep.subr.mxu0 0.0
      %964 = vmatpush1.msra.mxu0 %v961
      %965 = vmatprep.subr.mxu0 0.0
      %966 = vmatpush1.msra.mxu0 0.0
      %967 = vmatprep.subr.mxu0 0.0
      %968 = vmatpush1.msra.mxu0 0.0
      %969 = vmatprep.subr.mxu0 0.0
      %970 = vmatpush1.msra.mxu0 0.0
      %971 = vmatprep.subr.mxu0 0.0
      %972 = vmatpush1.msra.mxu0 0.0
      %973 = vmatprep.subr.mxu0 0.0
      %974 = vmatpush1.msra.mxu0 0.0
      %975 = vmatprep.subr.mxu0 0.0
      %976 = vmatpush1.msra.mxu0 0.0
      %977 = vmatprep.subr.mxu0 0.0
      %978 = vmatpush1.msra.mxu0 0.0
      %979 = vmatprep.subr.mxu0 0.0
      %980 = vmatpush1.msra.mxu0 0.0
      %981 = vmatprep.subr.mxu0 0.0
      %982 = vmatpush1.msra.mxu0 0.0
      %983 = vmatprep.subr.mxu0 0.0
      %984 = vmatpush1.msra.mxu0 0.0
      %985 = vmatprep.subr.mxu0 0.0
      %986 = vmatpush1.msra.mxu0 0.0
      %987 = vmatprep.subr.mxu0 0.0
      %988 = vmatpush1.msra.mxu0 0.0
      %989 = vmatprep.subr.mxu0 0.0
      %990 = vmatpush1.msra.mxu0 0.0
      %991 = vmatprep.subr.mxu0 0.0
      %992 = vmatpush1.msra.mxu0 0.0
      %993 = vmatprep.subr.mxu0 0.0
      %994 = vmatpush1.msra.mxu0 0.0
      %995 = vmatprep.subr.mxu0 0.0
      %996 = vmatpush1.msra.mxu0 0.0
      %997 = vmatprep.subr.mxu0 0.0
      %998 = vmatpush1.msra.mxu0 0.0
      %999 = vmatprep.subr.mxu0 0.0
      %1000 = vmatpush1.msra.mxu0 0.0
      %1001 = vmatprep.subr.mxu0 0.0
      %1002 = vmatpush1.msra.mxu0 0.0
      %1003 = vmatprep.subr.mxu0 0.0
      %1004 = vmatpush1.msra.mxu0 0.0
      %1005 = vmatprep.subr.mxu0 0.0
      %1006 = vmatpush1.msra.mxu0 0.0
      %1007 = vmatprep.subr.mxu0 0.0
      %1008 = vmatpush1.msra.mxu0 0.0
      %1009 = vmatprep.subr.mxu0 0.0
      %1010 = vmatpush1.msra.mxu0 0.0
      %1011 = vmatprep.subr.mxu0 0.0
      %1012 = vmatpush1.msra.mxu0 0.0
      %1013 = vmatprep.subr.mxu0 0.0
      %1014 = vmatpush1.msra.mxu0 0.0
      %1015 = vmatprep.subr.mxu0 0.0
      %1016 = vmatpush1.msra.mxu0 0.0
      %1017 = vmatprep.subr.mxu0 0.0
      %1018 = vmatpush1.msra.mxu0 0.0
      %1019 = vmatprep.subr.mxu0 0.0
      %1020 = vmatpush1.msra.mxu0 0.0
      %1021 = vmatprep.subr.mxu0 0.0
      %1022 = vmatpush1.msra.mxu0 0.0
      %1023 = vmatprep.subr.mxu0 0.0
      %1024 = vmatpush1.msra.mxu0 0.0
      %1025 = vmatprep.subr.mxu0 0.0
      %1026 = vmatpush1.msra.mxu0 0.0
      %1027 = vmatprep.mubr.f32.mxu0 0.0
      %1028 = vmatmul.mubr.f32.gmra.mrb[0].mxu0 %v740
      %v1029 = vpop.f32.mrb[0].mxu0
      %v1030 = vadd.f32 0.0, %v1029
      %v1031 = vpop.f32.mrb[0].mxu0
      %1032 = vmatprep.mubr.f32.mxu0 0.0
      %1033 = vmatmul.mubr.f32.gmra.mrb[0].mxu0 %v742
      %v1034 = vpop.f32.mrb[0].mxu0
      %v1035 = vadd.f32 0.0, %v1034
      %v1036 = vpop.f32.mrb[0].mxu0
      %1037 = vmatprep.mubr.f32.mxu0 0.0
      %1038 = vmatmul.mubr.f32.gmra.mrb[0].mxu0 %v744
      %v1039 = vpop.f32.mrb[0].mxu0
      %v1040 = vadd.f32 0.0, %v1039
      %v1041 = vpop.f32.mrb[0].mxu0
      %1042 = vmatprep.mubr.f32.mxu0 0.0
      %1043 = vmatmul.mubr.f32.gmra.mrb[0].mxu0 %v746
      %v1044 = vpop.f32.mrb[0].mxu0
      %v1045 = vadd.f32 0.0, %v1044
      %v1046 = vpop.f32.mrb[0].mxu0
      %1047 = vmatprep.mubr.f32.mxu0 0.0
      %1048 = vmatmul.mubr.f32.gmra.mrb[0].mxu0 %v748
      %v1049 = vpop.f32.mrb[0].mxu0
      %v1050 = vadd.f32 0.0, %v1049
      %v1051 = vpop.f32.mrb[0].mxu0
      %1052 = vmatprep.mubr.f32.mxu0 0.0
      %1053 = vmatmul.mubr.f32.gmra.mrb[0].mxu0 %v750
      %v1054 = vpop.f32.mrb[0].mxu0
      %v1055 = vadd.f32 0.0, %v1054
      %v1056 = vpop.f32.mrb[0].mxu0
      %1057 = vmatprep.mubr.f32.mxu0 0.0
      %1058 = vmatmul.mubr.f32.gmra.mrb[0].mxu0 %v752
      %v1059 = vpop.f32.mrb[0].mxu0
      %v1060 = vadd.f32 0.0, %v1059
      %v1061 = vpop.f32.mrb[0].mxu0
      %1062 = vmatprep.mubr.f32.mxu0 0.0
      %1063 = vmatmul.mubr.f32.gmra.mrb[0].mxu0 %v754
      %v1064 = vpop.f32.mrb[0].mxu0
      %v1065 = vadd.f32 0.0, %v1064
      %v1066 = vpop.f32.mrb[0].mxu0
      %1067 = vmatprep.mubr.f32.mxu0 0.0
      %1068 = vmatmul.mubr.f32.gmra.mrb[0].mxu0 %v756
      %v1069 = vpop.f32.mrb[0].mxu0
      %v1070 = vadd.f32 0.0, %v1069
      %v1071 = vpop.f32.mrb[0].mxu0
      %1072 = vmatprep.mubr.f32.mxu0 0.0
      %1073 = vmatmul.mubr.f32.gmra.mrb[0].mxu0 %v758
      %v1074 = vpop.f32.mrb[0].mxu0
      %v1075 = vadd.f32 0.0, %v1074
      %v1076 = vpop.f32.mrb[0].mxu0
      %1077 = vmatprep.mubr.f32.mxu0 0.0
      %1078 = vmatmul.mubr.f32.gmra.mrb[0].mxu0 %v760
      %v1079 = vpop.f32.mrb[0].mxu0
      %v1080 = vadd.f32 0.0, %v1079
      %v1081 = vpop.f32.mrb[0].mxu0
      %1082 = vmatprep.mubr.f32.mxu0 0.0
      %1083 = vmatmul.mubr.f32.gmra.mrb[0].mxu0 %v762
      %v1084 = vpop.f32.mrb[0].mxu0
      %v1085 = vadd.f32 0.0, %v1084
      %v1086 = vpop.f32.mrb[0].mxu0
      %1087 = vmatprep.mubr.f32.mxu0 0.0
      %1088 = vmatmul.mubr.f32.gmra.mrb[0].mxu0 %v764
      %v1089 = vpop.f32.mrb[0].mxu0
      %v1090 = vadd.f32 0.0, %v1089
      %v1091 = vpop.f32.mrb[0].mxu0
      %1092 = vmatprep.mubr.f32.mxu0 0.0
      %1093 = vmatmul.mubr.f32.gmra.mrb[0].mxu0 %v766
      %v1094 = vpop.f32.mrb[0].mxu0
      %v1095 = vadd.f32 0.0, %v1094
      %v1096 = vpop.f32.mrb[0].mxu0
      %1097 = vmatprep.mubr.f32.mxu0 0.0
      %1098 = vmatmul.mubr.f32.gmra.mrb[0].mxu0 %v768
      %v1099 = vpop.f32.mrb[0].mxu0
      %v1100 = vadd.f32 0.0, %v1099
      %v1101 = vpop.f32.mrb[0].mxu0
      %1102 = vmatprep.mubr.f32.mxu0 0.0
      %1103 = vmatmul.mubr.f32.gmra.mrb[0].mxu0 %v770
      %v1104 = vpop.f32.mrb[0].mxu0
      %v1105 = vadd.f32 0.0, %v1104
      %v1106 = vpop.f32.mrb[0].mxu0
      %1107 = vmatprep.mubr.f32.mxu0 0.0
      %1108 = vmatmul.mubr.f32.gmra.mrb[0].mxu0 %v956
      %v1109 = vpop.f32.mrb[0].mxu0
      %v1110 = vadd.f32 0.0, %v1109
      %v1111 = vpop.f32.mrb[0].mxu0
      %1112 = vmatprep.mubr.f32.mxu0 0.0
      %1113 = vmatmul.mubr.f32.gmra.mrb[0].mxu0 %v958
      %v1114 = vpop.f32.mrb[0].mxu0
      %v1115 = vadd.f32 0.0, %v1114
      %v1116 = vpop.f32.mrb[0].mxu0
      %1117 = vdwg.mxu0
      %v1118 = vadd.f32 %v930, %v1030
      %v1119 = vadd.f32 %v931, %v1035
      %v1120 = vadd.f32 %v932, %v1040
      %v1121 = vadd.f32 %v933, %v1045
      %v1122 = vadd.f32 %v934, %v1050
      %v1123 = vadd.f32 %v935, %v1055
      %v1124 = vadd.f32 %v936, %v1060
      %v1125 = vadd.f32 %v937, %v1065
      %v1126 = vadd.f32 %v938, %v1070
      %v1127 = vadd.f32 %v939, %v1075
      %v1128 = vadd.f32 %v940, %v1080
      %v1129 = vadd.f32 %v941, %v1085
      %v1130 = vadd.f32 %v942, %v1090
      %v1131 = vadd.f32 %v943, %v1095
      %v1132 = vadd.f32 %v944, %v1100
      %v1133 = vadd.f32 %v945, %v1105
      %v1134 = vadd.f32 %v946, %v1110
      %v1135 = vadd.f32 %v947, %v1115
      %s1136 = scalar_lea.vmem %s1, 16
      %v1137 = vld [vmem:[%s1136] sm:$0xf]
      %vm1138 = vcmask 1044480
      %v1139 = vrot.slane %v225, 3
      %v1140 = vrot.slane %v226, 3
      %v1141 = vsel %vm1138, %v1139, %v1140
      %v1142 = vrot.slane %v227, 3
      %v1143 = vsel %vm1138, %v1140, %v1142
      %v1144 = vrot.slane %v228, 3
      %v1145 = vsel %vm1138, %v1142, %v1144
      %v1146 = vrot.slane %v229, 3
      %v1147 = vsel %vm1138, %v1144, %v1146
      %v1148 = vrot.slane %v230, 3
      %v1149 = vsel %vm1138, %v1146, %v1148
      %v1150 = vrot.slane %v231, 3
      %v1151 = vsel %vm1138, %v1148, %v1150
      %v1152 = vrot.slane %v232, 3
      %v1153 = vsel %vm1138, %v1150, %v1152
      %v1154 = vrot.slane %v233, 3
      %v1155 = vsel %vm1138, %v1152, %v1154
      %v1156 = vrot.slane %v234, 3
      %v1157 = vsel %vm1138, %v1154, %v1156
      %v1158 = vrot.slane %v235, 3
      %v1159 = vsel %vm1138, %v1156, %v1158
      %v1160 = vrot.slane %v236, 3
      %v1161 = vsel %vm1138, %v1158, %v1160
      %v1162 = vrot.slane %v237, 3
      %v1163 = vsel %vm1138, %v1160, %v1162
      %v1164 = vrot.slane %v238, 3
      %v1165 = vsel %vm1138, %v1162, %v1164
      %v1166 = vrot.slane %v239, 3
      %v1167 = vsel %vm1138, %v1164, %v1166
      %v1168 = vrot.slane %v240, 3
      %v1169 = vsel %vm1138, %v1166, %v1168
      %v1170 = vrot.slane %v241, 3
      %v1171 = vsel %vm1138, %v1168, %v1170
      %v1172 = vrot.slane %v242, 3
      %v1173 = vsel %vm1138, %v1170, %v1172
      %v1174 = vrot.slane %v243, 3
      %v1175 = vsel %vm1138, %v1172, %v1174
      %v1176 = vsel %vm306, %v1141, 0
      %v1178 = vsel %vm306, %v1143, 0
      %v1180 = vsel %vm306, %v1145, 0
      %v1182 = vsel %vm306, %v1147, 0
      %v1184 = vsel %vm306, %v1149, 0
      %v1186 = vsel %vm306, %v1151, 0
      %v1188 = vsel %vm306, %v1153, 0
      %v1190 = vsel %vm306, %v1155, 0
      %v1192 = vsel %vm306, %v1157, 0
      %v1194 = vsel %vm306, %v1159, 0
      %v1196 = vsel %vm306, %v1161, 0
      %v1198 = vsel %vm306, %v1163, 0
      %v1200 = vsel %vm306, %v1165, 0
      %v1202 = vsel %vm306, %v1167, 0
      %v1204 = vsel %vm306, %v1169, 0
      %v1206 = vsel %vm306, %v1171, 0
      %v1208 = vsel %vm306, %v1173, 0
      %v1210 = vsel %vm306, %v1175, 0
      %v1213 = vsel %vm343, %v1137, 0
      %1215 = vmatprep.subr.mxu0 0.0
      %1216 = vmatpush1.msra.mxu0 %v1213
      %1217 = vmatprep.subr.mxu0 0.0
      %1218 = vmatpush1.msra.mxu0 0.0
      %1219 = vmatprep.subr.mxu0 0.0
      %1220 = vmatpush1.msra.mxu0 0.0
      %1221 = vmatprep.subr.mxu0 0.0
      %1222 = vmatpush1.msra.mxu0 0.0
      %1223 = vmatprep.subr.mxu0 0.0
      %1224 = vmatpush1.msra.mxu0 0.0
      %1225 = vmatprep.subr.mxu0 0.0
      %1226 = vmatpush1.msra.mxu0 0.0
      %1227 = vmatprep.subr.mxu0 0.0
      %1228 = vmatpush1.msra.mxu0 0.0
      %1229 = vmatprep.subr.mxu0 0.0
      %1230 = vmatpush1.msra.mxu0 0.0
      %1231 = vmatprep.subr.mxu0 0.0
      %1232 = vmatpush1.msra.mxu0 0.0
      %1233 = vmatprep.subr.mxu0 0.0
      %1234 = vmatpush1.msra.mxu0 0.0
      %1235 = vmatprep.subr.mxu0 0.0
      %1236 = vmatpush1.msra.mxu0 0.0
      %1237 = vmatprep.subr.mxu0 0.0
      %1238 = vmatpush1.msra.mxu0 0.0
      %1239 = vmatprep.subr.mxu0 0.0
      %1240 = vmatpush1.msra.mxu0 0.0
      %1241 = vmatprep.subr.mxu0 0.0
      %1242 = vmatpush1.msra.mxu0 0.0
      %1243 = vmatprep.subr.mxu0 0.0
      %1244 = vmatpush1.msra.mxu0 0.0
      %1245 = vmatprep.subr.mxu0 0.0
      %1246 = vmatpush1.msra.mxu0 0.0
      %1247 = vmatprep.subr.mxu0 0.0
      %1248 = vmatpush1.msra.mxu0 0.0
      %1249 = vmatprep.subr.mxu0 0.0
      %1250 = vmatpush1.msra.mxu0 0.0
      %1251 = vmatprep.subr.mxu0 0.0
      %1252 = vmatpush1.msra.mxu0 0.0
      %1253 = vmatprep.subr.mxu0 0.0
      %1254 = vmatpush1.msra.mxu0 0.0
      %1255 = vmatprep.subr.mxu0 0.0
      %1256 = vmatpush1.msra.mxu0 0.0
      %1257 = vmatprep.subr.mxu0 0.0
      %1258 = vmatpush1.msra.mxu0 0.0
      %1259 = vmatprep.subr.mxu0 0.0
      %1260 = vmatpush1.msra.mxu0 0.0
      %1261 = vmatprep.subr.mxu0 0.0
      %1262 = vmatpush1.msra.mxu0 0.0
      %1263 = vmatprep.subr.mxu0 0.0
      %1264 = vmatpush1.msra.mxu0 0.0
      %1265 = vmatprep.subr.mxu0 0.0
      %1266 = vmatpush1.msra.mxu0 0.0
      %1267 = vmatprep.subr.mxu0 0.0
      %1268 = vmatpush1.msra.mxu0 0.0
      %1269 = vmatprep.subr.mxu0 0.0
      %1270 = vmatpush1.msra.mxu0 0.0
      %1271 = vmatprep.subr.mxu0 0.0
      %1272 = vmatpush1.msra.mxu0 0.0
      %1273 = vmatprep.subr.mxu0 0.0
      %1274 = vmatpush1.msra.mxu0 0.0
      %1275 = vmatprep.subr.mxu0 0.0
      %1276 = vmatpush1.msra.mxu0 0.0
      %1277 = vmatprep.subr.mxu0 0.0
      %1278 = vmatpush1.msra.mxu0 0.0
      %1279 = vmatprep.mubr.f32.mxu0 0.0
      %1280 = vmatmul.mubr.f32.gmra.mrb[0].mxu0 %v1176
      %v1281 = vpop.f32.mrb[0].mxu0
      %v1282 = vadd.f32 0.0, %v1281
      %v1283 = vpop.f32.mrb[0].mxu0
      %1284 = vmatprep.mubr.f32.mxu0 0.0
      %1285 = vmatmul.mubr.f32.gmra.mrb[0].mxu0 %v1178
      %v1286 = vpop.f32.mrb[0].mxu0
      %v1287 = vadd.f32 0.0, %v1286
      %v1288 = vpop.f32.mrb[0].mxu0
      %1289 = vmatprep.mubr.f32.mxu0 0.0
      %1290 = vmatmul.mubr.f32.gmra.mrb[0].mxu0 %v1180
      %v1291 = vpop.f32.mrb[0].mxu0
      %v1292 = vadd.f32 0.0, %v1291
      %v1293 = vpop.f32.mrb[0].mxu0
      %1294 = vmatprep.mubr.f32.mxu0 0.0
      %1295 = vmatmul.mubr.f32.gmra.mrb[0].mxu0 %v1182
      %v1296 = vpop.f32.mrb[0].mxu0
      %v1297 = vadd.f32 0.0, %v1296
      %v1298 = vpop.f32.mrb[0].mxu0
      %1299 = vmatprep.mubr.f32.mxu0 0.0
      %1300 = vmatmul.mubr.f32.gmra.mrb[0].mxu0 %v1184
      %v1301 = vpop.f32.mrb[0].mxu0
      %v1302 = vadd.f32 0.0, %v1301
      %v1303 = vpop.f32.mrb[0].mxu0
      %1304 = vmatprep.mubr.f32.mxu0 0.0
      %1305 = vmatmul.mubr.f32.gmra.mrb[0].mxu0 %v1186
      %v1306 = vpop.f32.mrb[0].mxu0
      %v1307 = vadd.f32 0.0, %v1306
      %v1308 = vpop.f32.mrb[0].mxu0
      %1309 = vmatprep.mubr.f32.mxu0 0.0
      %1310 = vmatmul.mubr.f32.gmra.mrb[0].mxu0 %v1188
      %v1311 = vpop.f32.mrb[0].mxu0
      %v1312 = vadd.f32 0.0, %v1311
      %v1313 = vpop.f32.mrb[0].mxu0
      %1314 = vmatprep.mubr.f32.mxu0 0.0
      %1315 = vmatmul.mubr.f32.gmra.mrb[0].mxu0 %v1190
      %v1316 = vpop.f32.mrb[0].mxu0
      %v1317 = vadd.f32 0.0, %v1316
      %v1318 = vpop.f32.mrb[0].mxu0
      %1319 = vmatprep.mubr.f32.mxu0 0.0
      %1320 = vmatmul.mubr.f32.gmra.mrb[0].mxu0 %v1192
      %v1321 = vpop.f32.mrb[0].mxu0
      %v1322 = vadd.f32 0.0, %v1321
      %v1323 = vpop.f32.mrb[0].mxu0
      %1324 = vmatprep.mubr.f32.mxu0 0.0
      %1325 = vmatmul.mubr.f32.gmra.mrb[0].mxu0 %v1194
      %v1326 = vpop.f32.mrb[0].mxu0
      %v1327 = vadd.f32 0.0, %v1326
      %v1328 = vpop.f32.mrb[0].mxu0
      %1329 = vmatprep.mubr.f32.mxu0 0.0
      %1330 = vmatmul.mubr.f32.gmra.mrb[0].mxu0 %v1196
      %v1331 = vpop.f32.mrb[0].mxu0
      %v1332 = vadd.f32 0.0, %v1331
      %v1333 = vpop.f32.mrb[0].mxu0
      %1334 = vmatprep.mubr.f32.mxu0 0.0
      %1335 = vmatmul.mubr.f32.gmra.mrb[0].mxu0 %v1198
      %v1336 = vpop.f32.mrb[0].mxu0
      %v1337 = vadd.f32 0.0, %v1336
      %v1338 = vpop.f32.mrb[0].mxu0
      %1339 = vmatprep.mubr.f32.mxu0 0.0
      %1340 = vmatmul.mubr.f32.gmra.mrb[0].mxu0 %v1200
      %v1341 = vpop.f32.mrb[0].mxu0
      %v1342 = vadd.f32 0.0, %v1341
      %v1343 = vpop.f32.mrb[0].mxu0
      %1344 = vmatprep.mubr.f32.mxu0 0.0
      %1345 = vmatmul.mubr.f32.gmra.mrb[0].mxu0 %v1202
      %v1346 = vpop.f32.mrb[0].mxu0
      %v1347 = vadd.f32 0.0, %v1346
      %v1348 = vpop.f32.mrb[0].mxu0
      %1349 = vmatprep.mubr.f32.mxu0 0.0
      %1350 = vmatmul.mubr.f32.gmra.mrb[0].mxu0 %v1204
      %v1351 = vpop.f32.mrb[0].mxu0
      %v1352 = vadd.f32 0.0, %v1351
      %v1353 = vpop.f32.mrb[0].mxu0
      %1354 = vmatprep.mubr.f32.mxu0 0.0
      %1355 = vmatmul.mubr.f32.gmra.mrb[0].mxu0 %v1206
      %v1356 = vpop.f32.mrb[0].mxu0
      %v1357 = vadd.f32 0.0, %v1356
      %v1358 = vpop.f32.mrb[0].mxu0
      %1359 = vmatprep.mubr.f32.mxu0 0.0
      %1360 = vmatmul.mubr.f32.gmra.mrb[0].mxu0 %v1208
      %v1361 = vpop.f32.mrb[0].mxu0
      %v1362 = vadd.f32 0.0, %v1361
      %v1363 = vpop.f32.mrb[0].mxu0
      %1364 = vmatprep.mubr.f32.mxu0 0.0
      %1365 = vmatmul.mubr.f32.gmra.mrb[0].mxu0 %v1210
      %v1366 = vpop.f32.mrb[0].mxu0
      %v1367 = vadd.f32 0.0, %v1366
      %v1368 = vpop.f32.mrb[0].mxu0
      %1369 = vdwg.mxu0
      %v1370 = vadd.f32 %v1118, %v1282
      %v1371 = vadd.f32 %v1119, %v1287
      %v1372 = vadd.f32 %v1120, %v1292
      %v1373 = vadd.f32 %v1121, %v1297
      %v1374 = vadd.f32 %v1122, %v1302
      %v1375 = vadd.f32 %v1123, %v1307
      %v1376 = vadd.f32 %v1124, %v1312
      %v1377 = vadd.f32 %v1125, %v1317
      %v1378 = vadd.f32 %v1126, %v1322
      %v1379 = vadd.f32 %v1127, %v1327
      %v1380 = vadd.f32 %v1128, %v1332
      %v1381 = vadd.f32 %v1129, %v1337
      %v1382 = vadd.f32 %v1130, %v1342
      %v1383 = vadd.f32 %v1131, %v1347
      %v1384 = vadd.f32 %v1132, %v1352
      %v1385 = vadd.f32 %v1133, %v1357
      %v1386 = vadd.f32 %v1134, %v1362
      %v1387 = vadd.f32 %v1135, %v1367
      %s1388 = scalar_lea.vmem %s1, 20
      %v1389 = vld [vmem:[%s1388] sm:$0xf]
      %v1390 = vrot.slane %v225, 4
      %v1391 = vrot.slane %v226, 4
      %v1392 = vsel %vm343, %v1390, %v1391
      %v1393 = vrot.slane %v227, 4
      %v1394 = vsel %vm343, %v1391, %v1393
      %v1395 = vrot.slane %v228, 4
      %v1396 = vsel %vm343, %v1393, %v1395
      %v1397 = vrot.slane %v229, 4
      %v1398 = vsel %vm343, %v1395, %v1397
      %v1399 = vrot.slane %v230, 4
      %v1400 = vsel %vm343, %v1397, %v1399
      %v1401 = vrot.slane %v231, 4
      %v1402 = vsel %vm343, %v1399, %v1401
      %v1403 = vrot.slane %v232, 4
      %v1404 = vsel %vm343, %v1401, %v1403
      %v1405 = vrot.slane %v233, 4
      %v1406 = vsel %vm343, %v1403, %v1405
      %v1407 = vrot.slane %v234, 4
      %v1408 = vsel %vm343, %v1405, %v1407
      %v1409 = vrot.slane %v235, 4
      %v1410 = vsel %vm343, %v1407, %v1409
      %v1411 = vrot.slane %v236, 4
      %v1412 = vsel %vm343, %v1409, %v1411
      %v1413 = vrot.slane %v237, 4
      %v1414 = vsel %vm343, %v1411, %v1413
      %v1415 = vrot.slane %v238, 4
      %v1416 = vsel %vm343, %v1413, %v1415
      %v1417 = vrot.slane %v239, 4
      %v1418 = vsel %vm343, %v1415, %v1417
      %v1419 = vrot.slane %v240, 4
      %v1420 = vsel %vm343, %v1417, %v1419
      %v1421 = vrot.slane %v241, 4
      %v1422 = vsel %vm343, %v1419, %v1421
      %v1423 = vrot.slane %v242, 4
      %v1424 = vsel %vm343, %v1421, %v1423
      %v1425 = vrot.slane %v243, 4
      %v1426 = vsel %vm343, %v1423, %v1425
      %v1427 = vsel %vm306, %v1392, 0
      %v1429 = vsel %vm306, %v1394, 0
      %v1431 = vsel %vm306, %v1396, 0
      %v1433 = vsel %vm306, %v1398, 0
      %v1435 = vsel %vm306, %v1400, 0
      %v1437 = vsel %vm306, %v1402, 0
      %v1439 = vsel %vm306, %v1404, 0
      %v1441 = vsel %vm306, %v1406, 0
      %v1443 = vsel %vm306, %v1408, 0
      %v1445 = vsel %vm306, %v1410, 0
      %v1447 = vsel %vm306, %v1412, 0
      %v1449 = vsel %vm306, %v1414, 0
      %v1451 = vsel %vm306, %v1416, 0
      %v1453 = vsel %vm306, %v1418, 0
      %v1455 = vsel %vm306, %v1420, 0
      %v1457 = vsel %vm306, %v1422, 0
      %v1459 = vsel %vm306, %v1424, 0
      %v1461 = vsel %vm306, %v1426, 0
      %v1464 = vsel %vm343, %v1389, 0
      %1466 = vmatprep.subr.mxu0 0.0
      %1467 = vmatpush1.msra.mxu0 %v1464
      %1468 = vmatprep.subr.mxu0 0.0
      %1469 = vmatpush1.msra.mxu0 0.0
      %1470 = vmatprep.subr.mxu0 0.0
      %1471 = vmatpush1.msra.mxu0 0.0
      %1472 = vmatprep.subr.mxu0 0.0
      %1473 = vmatpush1.msra.mxu0 0.0
      %1474 = vmatprep.subr.mxu0 0.0
      %1475 = vmatpush1.msra.mxu0 0.0
      %1476 = vmatprep.subr.mxu0 0.0
      %1477 = vmatpush1.msra.mxu0 0.0
      %1478 = vmatprep.subr.mxu0 0.0
      %1479 = vmatpush1.msra.mxu0 0.0
      %1480 = vmatprep.subr.mxu0 0.0
      %1481 = vmatpush1.msra.mxu0 0.0
      %1482 = vmatprep.subr.mxu0 0.0
      %1483 = vmatpush1.msra.mxu0 0.0
      %1484 = vmatprep.subr.mxu0 0.0
      %1485 = vmatpush1.msra.mxu0 0.0
      %1486 = vmatprep.subr.mxu0 0.0
      %1487 = vmatpush1.msra.mxu0 0.0
      %1488 = vmatprep.subr.mxu0 0.0
      %1489 = vmatpush1.msra.mxu0 0.0
      %1490 = vmatprep.subr.mxu0 0.0
      %1491 = vmatpush1.msra.mxu0 0.0
      %1492 = vmatprep.subr.mxu0 0.0
      %1493 = vmatpush1.msra.mxu0 0.0
      %1494 = vmatprep.subr.mxu0 0.0
      %1495 = vmatpush1.msra.mxu0 0.0
      %1496 = vmatprep.subr.mxu0 0.0
      %1497 = vmatpush1.msra.mxu0 0.0
      %1498 = vmatprep.subr.mxu0 0.0
      %1499 = vmatpush1.msra.mxu0 0.0
      %1500 = vmatprep.subr.mxu0 0.0
      %1501 = vmatpush1.msra.mxu0 0.0
      %1502 = vmatprep.subr.mxu0 0.0
      %1503 = vmatpush1.msra.mxu0 0.0
      %1504 = vmatprep.subr.mxu0 0.0
      %1505 = vmatpush1.msra.mxu0 0.0
      %1506 = vmatprep.subr.mxu0 0.0
      %1507 = vmatpush1.msra.mxu0 0.0
      %1508 = vmatprep.subr.mxu0 0.0
      %1509 = vmatpush1.msra.mxu0 0.0
      %1510 = vmatprep.subr.mxu0 0.0
      %1511 = vmatpush1.msra.mxu0 0.0
      %1512 = vmatprep.subr.mxu0 0.0
      %1513 = vmatpush1.msra.mxu0 0.0
      %1514 = vmatprep.subr.mxu0 0.0
      %1515 = vmatpush1.msra.mxu0 0.0
      %1516 = vmatprep.subr.mxu0 0.0
      %1517 = vmatpush1.msra.mxu0 0.0
      %1518 = vmatprep.subr.mxu0 0.0
      %1519 = vmatpush1.msra.mxu0 0.0
      %1520 = vmatprep.subr.mxu0 0.0
      %1521 = vmatpush1.msra.mxu0 0.0
      %1522 = vmatprep.subr.mxu0 0.0
      %1523 = vmatpush1.msra.mxu0 0.0
      %1524 = vmatprep.subr.mxu0 0.0
      %1525 = vmatpush1.msra.mxu0 0.0
      %1526 = vmatprep.subr.mxu0 0.0
      %1527 = vmatpush1.msra.mxu0 0.0
      %1528 = vmatprep.subr.mxu0 0.0
      %1529 = vmatpush1.msra.mxu0 0.0
      %1530 = vmatprep.mubr.f32.mxu0 0.0
      %1531 = vmatmul.mubr.f32.gmra.mrb[0].mxu0 %v1427
      %v1532 = vpop.f32.mrb[0].mxu0
      %v1533 = vadd.f32 0.0, %v1532
      %v1534 = vpop.f32.mrb[0].mxu0
      %1535 = vmatprep.mubr.f32.mxu0 0.0
      %1536 = vmatmul.mubr.f32.gmra.mrb[0].mxu0 %v1429
      %v1537 = vpop.f32.mrb[0].mxu0
      %v1538 = vadd.f32 0.0, %v1537
      %v1539 = vpop.f32.mrb[0].mxu0
      %1540 = vmatprep.mubr.f32.mxu0 0.0
      %1541 = vmatmul.mubr.f32.gmra.mrb[0].mxu0 %v1431
      %v1542 = vpop.f32.mrb[0].mxu0
      %v1543 = vadd.f32 0.0, %v1542
      %v1544 = vpop.f32.mrb[0].mxu0
      %1545 = vmatprep.mubr.f32.mxu0 0.0
      %1546 = vmatmul.mubr.f32.gmra.mrb[0].mxu0 %v1433
      %v1547 = vpop.f32.mrb[0].mxu0
      %v1548 = vadd.f32 0.0, %v1547
      %v1549 = vpop.f32.mrb[0].mxu0
      %1550 = vmatprep.mubr.f32.mxu0 0.0
      %1551 = vmatmul.mubr.f32.gmra.mrb[0].mxu0 %v1435
      %v1552 = vpop.f32.mrb[0].mxu0
      %v1553 = vadd.f32 0.0, %v1552
      %v1554 = vpop.f32.mrb[0].mxu0
      %1555 = vmatprep.mubr.f32.mxu0 0.0
      %1556 = vmatmul.mubr.f32.gmra.mrb[0].mxu0 %v1437
      %v1557 = vpop.f32.mrb[0].mxu0
      %v1558 = vadd.f32 0.0, %v1557
      %v1559 = vpop.f32.mrb[0].mxu0
      %1560 = vmatprep.mubr.f32.mxu0 0.0
      %1561 = vmatmul.mubr.f32.gmra.mrb[0].mxu0 %v1439
      %v1562 = vpop.f32.mrb[0].mxu0
      %v1563 = vadd.f32 0.0, %v1562
      %v1564 = vpop.f32.mrb[0].mxu0
      %1565 = vmatprep.mubr.f32.mxu0 0.0
      %1566 = vmatmul.mubr.f32.gmra.mrb[0].mxu0 %v1441
      %v1567 = vpop.f32.mrb[0].mxu0
      %v1568 = vadd.f32 0.0, %v1567
      %v1569 = vpop.f32.mrb[0].mxu0
      %1570 = vmatprep.mubr.f32.mxu0 0.0
      %1571 = vmatmul.mubr.f32.gmra.mrb[0].mxu0 %v1443
      %v1572 = vpop.f32.mrb[0].mxu0
      %v1573 = vadd.f32 0.0, %v1572
      %v1574 = vpop.f32.mrb[0].mxu0
      %1575 = vmatprep.mubr.f32.mxu0 0.0
      %1576 = vmatmul.mubr.f32.gmra.mrb[0].mxu0 %v1445
      %v1577 = vpop.f32.mrb[0].mxu0
      %v1578 = vadd.f32 0.0, %v1577
      %v1579 = vpop.f32.mrb[0].mxu0
      %1580 = vmatprep.mubr.f32.mxu0 0.0
      %1581 = vmatmul.mubr.f32.gmra.mrb[0].mxu0 %v1447
      %v1582 = vpop.f32.mrb[0].mxu0
      %v1583 = vadd.f32 0.0, %v1582
      %v1584 = vpop.f32.mrb[0].mxu0
      %1585 = vmatprep.mubr.f32.mxu0 0.0
      %1586 = vmatmul.mubr.f32.gmra.mrb[0].mxu0 %v1449
      %v1587 = vpop.f32.mrb[0].mxu0
      %v1588 = vadd.f32 0.0, %v1587
      %v1589 = vpop.f32.mrb[0].mxu0
      %1590 = vmatprep.mubr.f32.mxu0 0.0
      %1591 = vmatmul.mubr.f32.gmra.mrb[0].mxu0 %v1451
      %v1592 = vpop.f32.mrb[0].mxu0
      %v1593 = vadd.f32 0.0, %v1592
      %v1594 = vpop.f32.mrb[0].mxu0
      %1595 = vmatprep.mubr.f32.mxu0 0.0
      %1596 = vmatmul.mubr.f32.gmra.mrb[0].mxu0 %v1453
      %v1597 = vpop.f32.mrb[0].mxu0
      %v1598 = vadd.f32 0.0, %v1597
      %v1599 = vpop.f32.mrb[0].mxu0
      %1600 = vmatprep.mubr.f32.mxu0 0.0
      %1601 = vmatmul.mubr.f32.gmra.mrb[0].mxu0 %v1455
      %v1602 = vpop.f32.mrb[0].mxu0
      %v1603 = vadd.f32 0.0, %v1602
      %v1604 = vpop.f32.mrb[0].mxu0
      %1605 = vmatprep.mubr.f32.mxu0 0.0
      %1606 = vmatmul.mubr.f32.gmra.mrb[0].mxu0 %v1457
      %v1607 = vpop.f32.mrb[0].mxu0
      %v1608 = vadd.f32 0.0, %v1607
      %v1609 = vpop.f32.mrb[0].mxu0
      %1610 = vmatprep.mubr.f32.mxu0 0.0
      %1611 = vmatmul.mubr.f32.gmra.mrb[0].mxu0 %v1459
      %v1612 = vpop.f32.mrb[0].mxu0
      %v1613 = vadd.f32 0.0, %v1612
      %v1614 = vpop.f32.mrb[0].mxu0
      %1615 = vmatprep.mubr.f32.mxu0 0.0
      %1616 = vmatmul.mubr.f32.gmra.mrb[0].mxu0 %v1461
      %v1617 = vpop.f32.mrb[0].mxu0
      %v1618 = vadd.f32 0.0, %v1617
      %v1619 = vpop.f32.mrb[0].mxu0
      %1620 = vdwg.mxu0
      %v1621 = vadd.f32 %v1370, %v1533
      %v1622 = vadd.f32 %v1371, %v1538
      %v1623 = vadd.f32 %v1372, %v1543
      %v1624 = vadd.f32 %v1373, %v1548
      %v1625 = vadd.f32 %v1374, %v1553
      %v1626 = vadd.f32 %v1375, %v1558
      %v1627 = vadd.f32 %v1376, %v1563
      %v1628 = vadd.f32 %v1377, %v1568
      %v1629 = vadd.f32 %v1378, %v1573
      %v1630 = vadd.f32 %v1379, %v1578
      %v1631 = vadd.f32 %v1380, %v1583
      %v1632 = vadd.f32 %v1381, %v1588
      %v1633 = vadd.f32 %v1382, %v1593
      %v1634 = vadd.f32 %v1383, %v1598
      %v1635 = vadd.f32 %v1384, %v1603
      %v1636 = vadd.f32 %v1385, %v1608
      %v1637 = vadd.f32 %v1386, %v1613
      %v1638 = vadd.f32 %v1387, %v1618
      %s1639 = scalar_lea.vmem %s1, 24
      %v1640 = vld [vmem:[%s1639] sm:$0xf]
      %v1643 = vrot.slane %v244, 4
      %v1644 = vsel %vm343, %v1425, %v1643
      %v1645 = vrot.slane %v245, 4
      %v1646 = vsel %vm343, %v1643, %v1645
      %v1647 = vsel %vm306, %v1644, 0
      %v1649 = vsel %vm306, %v1646, 0
      %v1652 = vsel %vm343, %v1640, 0
      %1654 = vmatprep.subr.mxu0 0.0
      %1655 = vmatpush1.msra.mxu0 %v1652
      %1656 = vmatprep.subr.mxu0 0.0
      %1657 = vmatpush1.msra.mxu0 0.0
      %1658 = vmatprep.subr.mxu0 0.0
      %1659 = vmatpush1.msra.mxu0 0.0
      %1660 = vmatprep.subr.mxu0 0.0
      %1661 = vmatpush1.msra.mxu0 0.0
      %1662 = vmatprep.subr.mxu0 0.0
      %1663 = vmatpush1.msra.mxu0 0.0
      %1664 = vmatprep.subr.mxu0 0.0
      %1665 = vmatpush1.msra.mxu0 0.0
      %1666 = vmatprep.subr.mxu0 0.0
      %1667 = vmatpush1.msra.mxu0 0.0
      %1668 = vmatprep.subr.mxu0 0.0
      %1669 = vmatpush1.msra.mxu0 0.0
      %1670 = vmatprep.subr.mxu0 0.0
      %1671 = vmatpush1.msra.mxu0 0.0
      %1672 = vmatprep.subr.mxu0 0.0
      %1673 = vmatpush1.msra.mxu0 0.0
      %1674 = vmatprep.subr.mxu0 0.0
      %1675 = vmatpush1.msra.mxu0 0.0
      %1676 = vmatprep.subr.mxu0 0.0
      %1677 = vmatpush1.msra.mxu0 0.0
      %1678 = vmatprep.subr.mxu0 0.0
      %1679 = vmatpush1.msra.mxu0 0.0
      %1680 = vmatprep.subr.mxu0 0.0
      %1681 = vmatpush1.msra.mxu0 0.0
      %1682 = vmatprep.subr.mxu0 0.0
      %1683 = vmatpush1.msra.mxu0 0.0
      %1684 = vmatprep.subr.mxu0 0.0
      %1685 = vmatpush1.msra.mxu0 0.0
      %1686 = vmatprep.subr.mxu0 0.0
      %1687 = vmatpush1.msra.mxu0 0.0
      %1688 = vmatprep.subr.mxu0 0.0
      %1689 = vmatpush1.msra.mxu0 0.0
      %1690 = vmatprep.subr.mxu0 0.0
      %1691 = vmatpush1.msra.mxu0 0.0
      %1692 = vmatprep.subr.mxu0 0.0
      %1693 = vmatpush1.msra.mxu0 0.0
      %1694 = vmatprep.subr.mxu0 0.0
      %1695 = vmatpush1.msra.mxu0 0.0
      %1696 = vmatprep.subr.mxu0 0.0
      %1697 = vmatpush1.msra.mxu0 0.0
      %1698 = vmatprep.subr.mxu0 0.0
      %1699 = vmatpush1.msra.mxu0 0.0
      %1700 = vmatprep.subr.mxu0 0.0
      %1701 = vmatpush1.msra.mxu0 0.0
      %1702 = vmatprep.subr.mxu0 0.0
      %1703 = vmatpush1.msra.mxu0 0.0
      %1704 = vmatprep.subr.mxu0 0.0
      %1705 = vmatpush1.msra.mxu0 0.0
      %1706 = vmatprep.subr.mxu0 0.0
      %1707 = vmatpush1.msra.mxu0 0.0
      %1708 = vmatprep.subr.mxu0 0.0
      %1709 = vmatpush1.msra.mxu0 0.0
      %1710 = vmatprep.subr.mxu0 0.0
      %1711 = vmatpush1.msra.mxu0 0.0
      %1712 = vmatprep.subr.mxu0 0.0
      %1713 = vmatpush1.msra.mxu0 0.0
      %1714 = vmatprep.subr.mxu0 0.0
      %1715 = vmatpush1.msra.mxu0 0.0
      %1716 = vmatprep.subr.mxu0 0.0
      %1717 = vmatpush1.msra.mxu0 0.0
      %1718 = vmatprep.mubr.f32.mxu0 0.0
      %1719 = vmatmul.mubr.f32.gmra.mrb[0].mxu0 %v1431
      %v1720 = vpop.f32.mrb[0].mxu0
      %v1721 = vadd.f32 0.0, %v1720
      %v1722 = vpop.f32.mrb[0].mxu0
      %1723 = vmatprep.mubr.f32.mxu0 0.0
      %1724 = vmatmul.mubr.f32.gmra.mrb[0].mxu0 %v1433
      %v1725 = vpop.f32.mrb[0].mxu0
      %v1726 = vadd.f32 0.0, %v1725
      %v1727 = vpop.f32.mrb[0].mxu0
      %1728 = vmatprep.mubr.f32.mxu0 0.0
      %1729 = vmatmul.mubr.f32.gmra.mrb[0].mxu0 %v1435
      %v1730 = vpop.f32.mrb[0].mxu0
      %v1731 = vadd.f32 0.0, %v1730
      %v1732 = vpop.f32.mrb[0].mxu0
      %1733 = vmatprep.mubr.f32.mxu0 0.0
      %1734 = vmatmul.mubr.f32.gmra.mrb[0].mxu0 %v1437
      %v1735 = vpop.f32.mrb[0].mxu0
      %v1736 = vadd.f32 0.0, %v1735
      %v1737 = vpop.f32.mrb[0].mxu0
      %1738 = vmatprep.mubr.f32.mxu0 0.0
      %1739 = vmatmul.mubr.f32.gmra.mrb[0].mxu0 %v1439
      %v1740 = vpop.f32.mrb[0].mxu0
      %v1741 = vadd.f32 0.0, %v1740
      %v1742 = vpop.f32.mrb[0].mxu0
      %1743 = vmatprep.mubr.f32.mxu0 0.0
      %1744 = vmatmul.mubr.f32.gmra.mrb[0].mxu0 %v1441
      %v1745 = vpop.f32.mrb[0].mxu0
      %v1746 = vadd.f32 0.0, %v1745
      %v1747 = vpop.f32.mrb[0].mxu0
      %1748 = vmatprep.mubr.f32.mxu0 0.0
      %1749 = vmatmul.mubr.f32.gmra.mrb[0].mxu0 %v1443
      %v1750 = vpop.f32.mrb[0].mxu0
      %v1751 = vadd.f32 0.0, %v1750
      %v1752 = vpop.f32.mrb[0].mxu0
      %1753 = vmatprep.mubr.f32.mxu0 0.0
      %1754 = vmatmul.mubr.f32.gmra.mrb[0].mxu0 %v1445
      %v1755 = vpop.f32.mrb[0].mxu0
      %v1756 = vadd.f32 0.0, %v1755
      %v1757 = vpop.f32.mrb[0].mxu0
      %1758 = vmatprep.mubr.f32.mxu0 0.0
      %1759 = vmatmul.mubr.f32.gmra.mrb[0].mxu0 %v1447
      %v1760 = vpop.f32.mrb[0].mxu0
      %v1761 = vadd.f32 0.0, %v1760
      %v1762 = vpop.f32.mrb[0].mxu0
      %1763 = vmatprep.mubr.f32.mxu0 0.0
      %1764 = vmatmul.mubr.f32.gmra.mrb[0].mxu0 %v1449
      %v1765 = vpop.f32.mrb[0].mxu0
      %v1766 = vadd.f32 0.0, %v1765
      %v1767 = vpop.f32.mrb[0].mxu0
      %1768 = vmatprep.mubr.f32.mxu0 0.0
      %1769 = vmatmul.mubr.f32.gmra.mrb[0].mxu0 %v1451
      %v1770 = vpop.f32.mrb[0].mxu0
      %v1771 = vadd.f32 0.0, %v1770
      %v1772 = vpop.f32.mrb[0].mxu0
      %1773 = vmatprep.mubr.f32.mxu0 0.0
      %1774 = vmatmul.mubr.f32.gmra.mrb[0].mxu0 %v1453
      %v1775 = vpop.f32.mrb[0].mxu0
      %v1776 = vadd.f32 0.0, %v1775
      %v1777 = vpop.f32.mrb[0].mxu0
      %1778 = vmatprep.mubr.f32.mxu0 0.0
      %1779 = vmatmul.mubr.f32.gmra.mrb[0].mxu0 %v1455
      %v1780 = vpop.f32.mrb[0].mxu0
      %v1781 = vadd.f32 0.0, %v1780
      %v1782 = vpop.f32.mrb[0].mxu0
      %1783 = vmatprep.mubr.f32.mxu0 0.0
      %1784 = vmatmul.mubr.f32.gmra.mrb[0].mxu0 %v1457
      %v1785 = vpop.f32.mrb[0].mxu0
      %v1786 = vadd.f32 0.0, %v1785
      %v1787 = vpop.f32.mrb[0].mxu0
      %1788 = vmatprep.mubr.f32.mxu0 0.0
      %1789 = vmatmul.mubr.f32.gmra.mrb[0].mxu0 %v1459
      %v1790 = vpop.f32.mrb[0].mxu0
      %v1791 = vadd.f32 0.0, %v1790
      %v1792 = vpop.f32.mrb[0].mxu0
      %1793 = vmatprep.mubr.f32.mxu0 0.0
      %1794 = vmatmul.mubr.f32.gmra.mrb[0].mxu0 %v1461
      %v1795 = vpop.f32.mrb[0].mxu0
      %v1796 = vadd.f32 0.0, %v1795
      %v1797 = vpop.f32.mrb[0].mxu0
      %1798 = vmatprep.mubr.f32.mxu0 0.0
      %1799 = vmatmul.mubr.f32.gmra.mrb[0].mxu0 %v1647
      %v1800 = vpop.f32.mrb[0].mxu0
      %v1801 = vadd.f32 0.0, %v1800
      %v1802 = vpop.f32.mrb[0].mxu0
      %1803 = vmatprep.mubr.f32.mxu0 0.0
      %1804 = vmatmul.mubr.f32.gmra.mrb[0].mxu0 %v1649
      %v1805 = vpop.f32.mrb[0].mxu0
      %v1806 = vadd.f32 0.0, %v1805
      %v1807 = vpop.f32.mrb[0].mxu0
      %1808 = vdwg.mxu0
      %v1809 = vadd.f32 %v1621, %v1721
      %v1810 = vadd.f32 %v1622, %v1726
      %v1811 = vadd.f32 %v1623, %v1731
      %v1812 = vadd.f32 %v1624, %v1736
      %v1813 = vadd.f32 %v1625, %v1741
      %v1814 = vadd.f32 %v1626, %v1746
      %v1815 = vadd.f32 %v1627, %v1751
      %v1816 = vadd.f32 %v1628, %v1756
      %v1817 = vadd.f32 %v1629, %v1761
      %v1818 = vadd.f32 %v1630, %v1766
      %v1819 = vadd.f32 %v1631, %v1771
      %v1820 = vadd.f32 %v1632, %v1776
      %v1821 = vadd.f32 %v1633, %v1781
      %v1822 = vadd.f32 %v1634, %v1786
      %v1823 = vadd.f32 %v1635, %v1791
      %v1824 = vadd.f32 %v1636, %v1796
      %v1825 = vadd.f32 %v1637, %v1801
      %v1826 = vadd.f32 %v1638, %v1806
      %s1827 = scalar_lea.vmem %s1, 28
      %v1828 = vld [vmem:[%s1827] sm:$0xf]
      %vm1829 = vcmask 1042432
      %v1830 = vrot.slane %v227, 5
      %v1831 = vrot.slane %v228, 5
      %v1832 = vsel %vm1829, %v1830, %v1831
      %v1833 = vrot.slane %v229, 5
      %v1834 = vsel %vm1829, %v1831, %v1833
      %v1835 = vrot.slane %v230, 5
      %v1836 = vsel %vm1829, %v1833, %v1835
      %v1837 = vrot.slane %v231, 5
      %v1838 = vsel %vm1829, %v1835, %v1837
      %v1839 = vrot.slane %v232, 5
      %v1840 = vsel %vm1829, %v1837, %v1839
      %v1841 = vrot.slane %v233, 5
      %v1842 = vsel %vm1829, %v1839, %v1841
      %v1843 = vrot.slane %v234, 5
      %v1844 = vsel %vm1829, %v1841, %v1843
      %v1845 = vrot.slane %v235, 5
      %v1846 = vsel %vm1829, %v1843, %v1845
      %v1847 = vrot.slane %v236, 5
      %v1848 = vsel %vm1829, %v1845, %v1847
      %v1849 = vrot.slane %v237, 5
      %v1850 = vsel %vm1829, %v1847, %v1849
      %v1851 = vrot.slane %v238, 5
      %v1852 = vsel %vm1829, %v1849, %v1851
      %v1853 = vrot.slane %v239, 5
      %v1854 = vsel %vm1829, %v1851, %v1853
      %v1855 = vrot.slane %v240, 5
      %v1856 = vsel %vm1829, %v1853, %v1855
      %v1857 = vrot.slane %v241, 5
      %v1858 = vsel %vm1829, %v1855, %v1857
      %v1859 = vrot.slane %v242, 5
      %v1860 = vsel %vm1829, %v1857, %v1859
      %v1861 = vrot.slane %v243, 5
      %v1862 = vsel %vm1829, %v1859, %v1861
      %v1863 = vrot.slane %v244, 5
      %v1864 = vsel %vm1829, %v1861, %v1863
      %v1865 = vrot.slane %v245, 5
      %v1866 = vsel %vm1829, %v1863, %v1865
      %v1867 = vsel %vm306, %v1832, 0
      %v1869 = vsel %vm306, %v1834, 0
      %v1871 = vsel %vm306, %v1836, 0
      %v1873 = vsel %vm306, %v1838, 0
      %v1875 = vsel %vm306, %v1840, 0
      %v1877 = vsel %vm306, %v1842, 0
      %v1879 = vsel %vm306, %v1844, 0
      %v1881 = vsel %vm306, %v1846, 0
      %v1883 = vsel %vm306, %v1848, 0
      %v1885 = vsel %vm306, %v1850, 0
      %v1887 = vsel %vm306, %v1852, 0
      %v1889 = vsel %vm306, %v1854, 0
      %v1891 = vsel %vm306, %v1856, 0
      %v1893 = vsel %vm306, %v1858, 0
      %v1895 = vsel %vm306, %v1860, 0
      %v1897 = vsel %vm306, %v1862, 0
      %v1899 = vsel %vm306, %v1864, 0
      %v1901 = vsel %vm306, %v1866, 0
      %v1904 = vsel %vm343, %v1828, 0
      %1906 = vmatprep.subr.mxu0 0.0
      %1907 = vmatpush1.msra.mxu0 %v1904
      %1908 = vmatprep.subr.mxu0 0.0
      %1909 = vmatpush1.msra.mxu0 0.0
      %1910 = vmatprep.subr.mxu0 0.0
      %1911 = vmatpush1.msra.mxu0 0.0
      %1912 = vmatprep.subr.mxu0 0.0
      %1913 = vmatpush1.msra.mxu0 0.0
      %1914 = vmatprep.subr.mxu0 0.0
      %1915 = vmatpush1.msra.mxu0 0.0
      %1916 = vmatprep.subr.mxu0 0.0
      %1917 = vmatpush1.msra.mxu0 0.0
      %1918 = vmatprep.subr.mxu0 0.0
      %1919 = vmatpush1.msra.mxu0 0.0
      %1920 = vmatprep.subr.mxu0 0.0
      %1921 = vmatpush1.msra.mxu0 0.0
      %1922 = vmatprep.subr.mxu0 0.0
      %1923 = vmatpush1.msra.mxu0 0.0
      %1924 = vmatprep.subr.mxu0 0.0
      %1925 = vmatpush1.msra.mxu0 0.0
      %1926 = vmatprep.subr.mxu0 0.0
      %1927 = vmatpush1.msra.mxu0 0.0
      %1928 = vmatprep.subr.mxu0 0.0
      %1929 = vmatpush1.msra.mxu0 0.0
      %1930 = vmatprep.subr.mxu0 0.0
      %1931 = vmatpush1.msra.mxu0 0.0
      %1932 = vmatprep.subr.mxu0 0.0
      %1933 = vmatpush1.msra.mxu0 0.0
      %1934 = vmatprep.subr.mxu0 0.0
      %1935 = vmatpush1.msra.mxu0 0.0
      %1936 = vmatprep.subr.mxu0 0.0
      %1937 = vmatpush1.msra.mxu0 0.0
      %1938 = vmatprep.subr.mxu0 0.0
      %1939 = vmatpush1.msra.mxu0 0.0
      %1940 = vmatprep.subr.mxu0 0.0
      %1941 = vmatpush1.msra.mxu0 0.0
      %1942 = vmatprep.subr.mxu0 0.0
      %1943 = vmatpush1.msra.mxu0 0.0
      %1944 = vmatprep.subr.mxu0 0.0
      %1945 = vmatpush1.msra.mxu0 0.0
      %1946 = vmatprep.subr.mxu0 0.0
      %1947 = vmatpush1.msra.mxu0 0.0
      %1948 = vmatprep.subr.mxu0 0.0
      %1949 = vmatpush1.msra.mxu0 0.0
      %1950 = vmatprep.subr.mxu0 0.0
      %1951 = vmatpush1.msra.mxu0 0.0
      %1952 = vmatprep.subr.mxu0 0.0
      %1953 = vmatpush1.msra.mxu0 0.0
      %1954 = vmatprep.subr.mxu0 0.0
      %1955 = vmatpush1.msra.mxu0 0.0
      %1956 = vmatprep.subr.mxu0 0.0
      %1957 = vmatpush1.msra.mxu0 0.0
      %1958 = vmatprep.subr.mxu0 0.0
      %1959 = vmatpush1.msra.mxu0 0.0
      %1960 = vmatprep.subr.mxu0 0.0
      %1961 = vmatpush1.msra.mxu0 0.0
      %1962 = vmatprep.subr.mxu0 0.0
      %1963 = vmatpush1.msra.mxu0 0.0
      %1964 = vmatprep.subr.mxu0 0.0
      %1965 = vmatpush1.msra.mxu0 0.0
      %1966 = vmatprep.subr.mxu0 0.0
      %1967 = vmatpush1.msra.mxu0 0.0
      %1968 = vmatprep.subr.mxu0 0.0
      %1969 = vmatpush1.msra.mxu0 0.0
      %1970 = vmatprep.mubr.f32.mxu0 0.0
      %1971 = vmatmul.mubr.f32.gmra.mrb[0].mxu0 %v1867
      %v1972 = vpop.f32.mrb[0].mxu0
      %v1973 = vadd.f32 0.0, %v1972
      %v1974 = vpop.f32.mrb[0].mxu0
      %1975 = vmatprep.mubr.f32.mxu0 0.0
      %1976 = vmatmul.mubr.f32.gmra.mrb[0].mxu0 %v1869
      %v1977 = vpop.f32.mrb[0].mxu0
      %v1978 = vadd.f32 0.0, %v1977
      %v1979 = vpop.f32.mrb[0].mxu0
      %1980 = vmatprep.mubr.f32.mxu0 0.0
      %1981 = vmatmul.mubr.f32.gmra.mrb[0].mxu0 %v1871
      %v1982 = vpop.f32.mrb[0].mxu0
      %v1983 = vadd.f32 0.0, %v1982
      %v1984 = vpop.f32.mrb[0].mxu0
      %1985 = vmatprep.mubr.f32.mxu0 0.0
      %1986 = vmatmul.mubr.f32.gmra.mrb[0].mxu0 %v1873
      %v1987 = vpop.f32.mrb[0].mxu0
      %v1988 = vadd.f32 0.0, %v1987
      %v1989 = vpop.f32.mrb[0].mxu0
      %1990 = vmatprep.mubr.f32.mxu0 0.0
      %1991 = vmatmul.mubr.f32.gmra.mrb[0].mxu0 %v1875
      %v1992 = vpop.f32.mrb[0].mxu0
      %v1993 = vadd.f32 0.0, %v1992
      %v1994 = vpop.f32.mrb[0].mxu0
      %1995 = vmatprep.mubr.f32.mxu0 0.0
      %1996 = vmatmul.mubr.f32.gmra.mrb[0].mxu0 %v1877
      %v1997 = vpop.f32.mrb[0].mxu0
      %v1998 = vadd.f32 0.0, %v1997
      %v1999 = vpop.f32.mrb[0].mxu0
      %2000 = vmatprep.mubr.f32.mxu0 0.0
      %2001 = vmatmul.mubr.f32.gmra.mrb[0].mxu0 %v1879
      %v2002 = vpop.f32.mrb[0].mxu0
      %v2003 = vadd.f32 0.0, %v2002
      %v2004 = vpop.f32.mrb[0].mxu0
      %2005 = vmatprep.mubr.f32.mxu0 0.0
      %2006 = vmatmul.mubr.f32.gmra.mrb[0].mxu0 %v1881
      %v2007 = vpop.f32.mrb[0].mxu0
      %v2008 = vadd.f32 0.0, %v2007
      %v2009 = vpop.f32.mrb[0].mxu0
      %2010 = vmatprep.mubr.f32.mxu0 0.0
      %2011 = vmatmul.mubr.f32.gmra.mrb[0].mxu0 %v1883
      %v2012 = vpop.f32.mrb[0].mxu0
      %v2013 = vadd.f32 0.0, %v2012
      %v2014 = vpop.f32.mrb[0].mxu0
      %2015 = vmatprep.mubr.f32.mxu0 0.0
      %2016 = vmatmul.mubr.f32.gmra.mrb[0].mxu0 %v1885
      %v2017 = vpop.f32.mrb[0].mxu0
      %v2018 = vadd.f32 0.0, %v2017
      %v2019 = vpop.f32.mrb[0].mxu0
      %2020 = vmatprep.mubr.f32.mxu0 0.0
      %2021 = vmatmul.mubr.f32.gmra.mrb[0].mxu0 %v1887
      %v2022 = vpop.f32.mrb[0].mxu0
      %v2023 = vadd.f32 0.0, %v2022
      %v2024 = vpop.f32.mrb[0].mxu0
      %2025 = vmatprep.mubr.f32.mxu0 0.0
      %2026 = vmatmul.mubr.f32.gmra.mrb[0].mxu0 %v1889
      %v2027 = vpop.f32.mrb[0].mxu0
      %v2028 = vadd.f32 0.0, %v2027
      %v2029 = vpop.f32.mrb[0].mxu0
      %2030 = vmatprep.mubr.f32.mxu0 0.0
      %2031 = vmatmul.mubr.f32.gmra.mrb[0].mxu0 %v1891
      %v2032 = vpop.f32.mrb[0].mxu0
      %v2033 = vadd.f32 0.0, %v2032
      %v2034 = vpop.f32.mrb[0].mxu0
      %2035 = vmatprep.mubr.f32.mxu0 0.0
      %2036 = vmatmul.mubr.f32.gmra.mrb[0].mxu0 %v1893
      %v2037 = vpop.f32.mrb[0].mxu0
      %v2038 = vadd.f32 0.0, %v2037
      %v2039 = vpop.f32.mrb[0].mxu0
      %2040 = vmatprep.mubr.f32.mxu0 0.0
      %2041 = vmatmul.mubr.f32.gmra.mrb[0].mxu0 %v1895
      %v2042 = vpop.f32.mrb[0].mxu0
      %v2043 = vadd.f32 0.0, %v2042
      %v2044 = vpop.f32.mrb[0].mxu0
      %2045 = vmatprep.mubr.f32.mxu0 0.0
      %2046 = vmatmul.mubr.f32.gmra.mrb[0].mxu0 %v1897
      %v2047 = vpop.f32.mrb[0].mxu0
      %v2048 = vadd.f32 0.0, %v2047
      %v2049 = vpop.f32.mrb[0].mxu0
      %2050 = vmatprep.mubr.f32.mxu0 0.0
      %2051 = vmatmul.mubr.f32.gmra.mrb[0].mxu0 %v1899
      %v2052 = vpop.f32.mrb[0].mxu0
      %v2053 = vadd.f32 0.0, %v2052
      %v2054 = vpop.f32.mrb[0].mxu0
      %2055 = vmatprep.mubr.f32.mxu0 0.0
      %2056 = vmatmul.mubr.f32.gmra.mrb[0].mxu0 %v1901
      %v2057 = vpop.f32.mrb[0].mxu0
      %v2058 = vadd.f32 0.0, %v2057
      %v2059 = vpop.f32.mrb[0].mxu0
      %2060 = vdwg.mxu0
      %v2061 = vadd.f32 %v1809, %v1973
      %v2062 = vadd.f32 %v1810, %v1978
      %v2063 = vadd.f32 %v1811, %v1983
      %v2064 = vadd.f32 %v1812, %v1988
      %v2065 = vadd.f32 %v1813, %v1993
      %v2066 = vadd.f32 %v1814, %v1998
      %v2067 = vadd.f32 %v1815, %v2003
      %v2068 = vadd.f32 %v1816, %v2008
      %v2069 = vadd.f32 %v1817, %v2013
      %v2070 = vadd.f32 %v1818, %v2018
      %v2071 = vadd.f32 %v1819, %v2023
      %v2072 = vadd.f32 %v1820, %v2028
      %v2073 = vadd.f32 %v1821, %v2033
      %v2074 = vadd.f32 %v1822, %v2038
      %v2075 = vadd.f32 %v1823, %v2043
      %v2076 = vadd.f32 %v1824, %v2048
      %v2077 = vadd.f32 %v1825, %v2053
      %v2078 = vadd.f32 %v1826, %v2058
      %s2079 = scalar_lea.vmem %s1, 32
      %v2080 = vld [vmem:[%s2079] sm:$0xf]
      %vm2081 = vcmask 1041408
      %v2082 = vrot.slane %v227, 6
      %v2083 = vrot.slane %v228, 6
      %v2084 = vsel %vm2081, %v2082, %v2083
      %v2085 = vrot.slane %v229, 6
      %v2086 = vsel %vm2081, %v2083, %v2085
      %v2087 = vrot.slane %v230, 6
      %v2088 = vsel %vm2081, %v2085, %v2087
      %v2089 = vrot.slane %v231, 6
      %v2090 = vsel %vm2081, %v2087, %v2089
      %v2091 = vrot.slane %v232, 6
      %v2092 = vsel %vm2081, %v2089, %v2091
      %v2093 = vrot.slane %v233, 6
      %v2094 = vsel %vm2081, %v2091, %v2093
      %v2095 = vrot.slane %v234, 6
      %v2096 = vsel %vm2081, %v2093, %v2095
      %v2097 = vrot.slane %v235, 6
      %v2098 = vsel %vm2081, %v2095, %v2097
      %v2099 = vrot.slane %v236, 6
      %v2100 = vsel %vm2081, %v2097, %v2099
      %v2101 = vrot.slane %v237, 6
      %v2102 = vsel %vm2081, %v2099, %v2101
      %v2103 = vrot.slane %v238, 6
      %v2104 = vsel %vm2081, %v2101, %v2103
      %v2105 = vrot.slane %v239, 6
      %v2106 = vsel %vm2081, %v2103, %v2105
      %v2107 = vrot.slane %v240, 6
      %v2108 = vsel %vm2081, %v2105, %v2107
      %v2109 = vrot.slane %v241, 6
      %v2110 = vsel %vm2081, %v2107, %v2109
      %v2111 = vrot.slane %v242, 6
      %v2112 = vsel %vm2081, %v2109, %v2111
      %v2113 = vrot.slane %v243, 6
      %v2114 = vsel %vm2081, %v2111, %v2113
      %v2115 = vrot.slane %v244, 6
      %v2116 = vsel %vm2081, %v2113, %v2115
      %v2117 = vrot.slane %v245, 6
      %v2118 = vsel %vm2081, %v2115, %v2117
      %v2119 = vsel %vm306, %v2084, 0
      %v2121 = vsel %vm306, %v2086, 0
      %v2123 = vsel %vm306, %v2088, 0
      %v2125 = vsel %vm306, %v2090, 0
      %v2127 = vsel %vm306, %v2092, 0
      %v2129 = vsel %vm306, %v2094, 0
      %v2131 = vsel %vm306, %v2096, 0
      %v2133 = vsel %vm306, %v2098, 0
      %v2135 = vsel %vm306, %v2100, 0
      %v2137 = vsel %vm306, %v2102, 0
      %v2139 = vsel %vm306, %v2104, 0
      %v2141 = vsel %vm306, %v2106, 0
      %v2143 = vsel %vm306, %v2108, 0
      %v2145 = vsel %vm306, %v2110, 0
      %v2147 = vsel %vm306, %v2112, 0
      %v2149 = vsel %vm306, %v2114, 0
      %v2151 = vsel %vm306, %v2116, 0
      %v2153 = vsel %vm306, %v2118, 0
      %v2156 = vsel %vm343, %v2080, 0
      %2158 = vmatprep.subr.mxu0 0.0
      %2159 = vmatpush1.msra.mxu0 %v2156
      %2160 = vmatprep.subr.mxu0 0.0
      %2161 = vmatpush1.msra.mxu0 0.0
      %2162 = vmatprep.subr.mxu0 0.0
      %2163 = vmatpush1.msra.mxu0 0.0
      %2164 = vmatprep.subr.mxu0 0.0
      %2165 = vmatpush1.msra.mxu0 0.0
      %2166 = vmatprep.subr.mxu0 0.0
      %2167 = vmatpush1.msra.mxu0 0.0
      %2168 = vmatprep.subr.mxu0 0.0
      %2169 = vmatpush1.msra.mxu0 0.0
      %2170 = vmatprep.subr.mxu0 0.0
      %2171 = vmatpush1.msra.mxu0 0.0
      %2172 = vmatprep.subr.mxu0 0.0
      %2173 = vmatpush1.msra.mxu0 0.0
      %2174 = vmatprep.subr.mxu0 0.0
      %2175 = vmatpush1.msra.mxu0 0.0
      %2176 = vmatprep.subr.mxu0 0.0
      %2177 = vmatpush1.msra.mxu0 0.0
      %2178 = vmatprep.subr.mxu0 0.0
      %2179 = vmatpush1.msra.mxu0 0.0
      %2180 = vmatprep.subr.mxu0 0.0
      %2181 = vmatpush1.msra.mxu0 0.0
      %2182 = vmatprep.subr.mxu0 0.0
      %2183 = vmatpush1.msra.mxu0 0.0
      %2184 = vmatprep.subr.mxu0 0.0
      %2185 = vmatpush1.msra.mxu0 0.0
      %2186 = vmatprep.subr.mxu0 0.0
      %2187 = vmatpush1.msra.mxu0 0.0
      %2188 = vmatprep.subr.mxu0 0.0
      %2189 = vmatpush1.msra.mxu0 0.0
      %2190 = vmatprep.subr.mxu0 0.0
      %2191 = vmatpush1.msra.mxu0 0.0
      %2192 = vmatprep.subr.mxu0 0.0
      %2193 = vmatpush1.msra.mxu0 0.0
      %2194 = vmatprep.subr.mxu0 0.0
      %2195 = vmatpush1.msra.mxu0 0.0
      %2196 = vmatprep.subr.mxu0 0.0
      %2197 = vmatpush1.msra.mxu0 0.0
      %2198 = vmatprep.subr.mxu0 0.0
      %2199 = vmatpush1.msra.mxu0 0.0
      %2200 = vmatprep.subr.mxu0 0.0
      %2201 = vmatpush1.msra.mxu0 0.0
      %2202 = vmatprep.subr.mxu0 0.0
      %2203 = vmatpush1.msra.mxu0 0.0
      %2204 = vmatprep.subr.mxu0 0.0
      %2205 = vmatpush1.msra.mxu0 0.0
      %2206 = vmatprep.subr.mxu0 0.0
      %2207 = vmatpush1.msra.mxu0 0.0
      %2208 = vmatprep.subr.mxu0 0.0
      %2209 = vmatpush1.msra.mxu0 0.0
      %2210 = vmatprep.subr.mxu0 0.0
      %2211 = vmatpush1.msra.mxu0 0.0
      %2212 = vmatprep.subr.mxu0 0.0
      %2213 = vmatpush1.msra.mxu0 0.0
      %2214 = vmatprep.subr.mxu0 0.0
      %2215 = vmatpush1.msra.mxu0 0.0
      %2216 = vmatprep.subr.mxu0 0.0
      %2217 = vmatpush1.msra.mxu0 0.0
      %2218 = vmatprep.subr.mxu0 0.0
      %2219 = vmatpush1.msra.mxu0 0.0
      %2220 = vmatprep.subr.mxu0 0.0
      %2221 = vmatpush1.msra.mxu0 0.0
      %2222 = vmatprep.mubr.f32.mxu0 0.0
      %2223 = vmatmul.mubr.f32.gmra.mrb[0].mxu0 %v2119
      %v2224 = vpop.f32.mrb[0].mxu0
      %v2225 = vadd.f32 0.0, %v2224
      %v2226 = vpop.f32.mrb[0].mxu0
      %2227 = vmatprep.mubr.f32.mxu0 0.0
      %2228 = vmatmul.mubr.f32.gmra.mrb[0].mxu0 %v2121
      %v2229 = vpop.f32.mrb[0].mxu0
      %v2230 = vadd.f32 0.0, %v2229
      %v2231 = vpop.f32.mrb[0].mxu0
      %2232 = vmatprep.mubr.f32.mxu0 0.0
      %2233 = vmatmul.mubr.f32.gmra.mrb[0].mxu0 %v2123
      %v2234 = vpop.f32.mrb[0].mxu0
      %v2235 = vadd.f32 0.0, %v2234
      %v2236 = vpop.f32.mrb[0].mxu0
      %2237 = vmatprep.mubr.f32.mxu0 0.0
      %2238 = vmatmul.mubr.f32.gmra.mrb[0].mxu0 %v2125
      %v2239 = vpop.f32.mrb[0].mxu0
      %v2240 = vadd.f32 0.0, %v2239
      %v2241 = vpop.f32.mrb[0].mxu0
      %2242 = vmatprep.mubr.f32.mxu0 0.0
      %2243 = vmatmul.mubr.f32.gmra.mrb[0].mxu0 %v2127
      %v2244 = vpop.f32.mrb[0].mxu0
      %v2245 = vadd.f32 0.0, %v2244
      %v2246 = vpop.f32.mrb[0].mxu0
      %2247 = vmatprep.mubr.f32.mxu0 0.0
      %2248 = vmatmul.mubr.f32.gmra.mrb[0].mxu0 %v2129
      %v2249 = vpop.f32.mrb[0].mxu0
      %v2250 = vadd.f32 0.0, %v2249
      %v2251 = vpop.f32.mrb[0].mxu0
      %2252 = vmatprep.mubr.f32.mxu0 0.0
      %2253 = vmatmul.mubr.f32.gmra.mrb[0].mxu0 %v2131
      %v2254 = vpop.f32.mrb[0].mxu0
      %v2255 = vadd.f32 0.0, %v2254
      %v2256 = vpop.f32.mrb[0].mxu0
      %2257 = vmatprep.mubr.f32.mxu0 0.0
      %2258 = vmatmul.mubr.f32.gmra.mrb[0].mxu0 %v2133
      %v2259 = vpop.f32.mrb[0].mxu0
      %v2260 = vadd.f32 0.0, %v2259
      %v2261 = vpop.f32.mrb[0].mxu0
      %2262 = vmatprep.mubr.f32.mxu0 0.0
      %2263 = vmatmul.mubr.f32.gmra.mrb[0].mxu0 %v2135
      %v2264 = vpop.f32.mrb[0].mxu0
      %v2265 = vadd.f32 0.0, %v2264
      %v2266 = vpop.f32.mrb[0].mxu0
      %2267 = vmatprep.mubr.f32.mxu0 0.0
      %2268 = vmatmul.mubr.f32.gmra.mrb[0].mxu0 %v2137
      %v2269 = vpop.f32.mrb[0].mxu0
      %v2270 = vadd.f32 0.0, %v2269
      %v2271 = vpop.f32.mrb[0].mxu0
      %2272 = vmatprep.mubr.f32.mxu0 0.0
      %2273 = vmatmul.mubr.f32.gmra.mrb[0].mxu0 %v2139
      %v2274 = vpop.f32.mrb[0].mxu0
      %v2275 = vadd.f32 0.0, %v2274
      %v2276 = vpop.f32.mrb[0].mxu0
      %2277 = vmatprep.mubr.f32.mxu0 0.0
      %2278 = vmatmul.mubr.f32.gmra.mrb[0].mxu0 %v2141
      %v2279 = vpop.f32.mrb[0].mxu0
      %v2280 = vadd.f32 0.0, %v2279
      %v2281 = vpop.f32.mrb[0].mxu0
      %2282 = vmatprep.mubr.f32.mxu0 0.0
      %2283 = vmatmul.mubr.f32.gmra.mrb[0].mxu0 %v2143
      %v2284 = vpop.f32.mrb[0].mxu0
      %v2285 = vadd.f32 0.0, %v2284
      %v2286 = vpop.f32.mrb[0].mxu0
      %2287 = vmatprep.mubr.f32.mxu0 0.0
      %2288 = vmatmul.mubr.f32.gmra.mrb[0].mxu0 %v2145
      %v2289 = vpop.f32.mrb[0].mxu0
      %v2290 = vadd.f32 0.0, %v2289
      %v2291 = vpop.f32.mrb[0].mxu0
      %2292 = vmatprep.mubr.f32.mxu0 0.0
      %2293 = vmatmul.mubr.f32.gmra.mrb[0].mxu0 %v2147
      %v2294 = vpop.f32.mrb[0].mxu0
      %v2295 = vadd.f32 0.0, %v2294
      %v2296 = vpop.f32.mrb[0].mxu0
      %2297 = vmatprep.mubr.f32.mxu0 0.0
      %2298 = vmatmul.mubr.f32.gmra.mrb[0].mxu0 %v2149
      %v2299 = vpop.f32.mrb[0].mxu0
      %v2300 = vadd.f32 0.0, %v2299
      %v2301 = vpop.f32.mrb[0].mxu0
      %2302 = vmatprep.mubr.f32.mxu0 0.0
      %2303 = vmatmul.mubr.f32.gmra.mrb[0].mxu0 %v2151
      %v2304 = vpop.f32.mrb[0].mxu0
      %v2305 = vadd.f32 0.0, %v2304
      %v2306 = vpop.f32.mrb[0].mxu0
      %2307 = vmatprep.mubr.f32.mxu0 0.0
      %2308 = vmatmul.mubr.f32.gmra.mrb[0].mxu0 %v2153
      %v2309 = vpop.f32.mrb[0].mxu0
      %v2310 = vadd.f32 0.0, %v2309
      %v2311 = vpop.f32.mrb[0].mxu0
      %2312 = vdwg.mxu0
      %v2313 = vadd.f32 %v2061, %v2225
      %v2314 = vadd.f32 %v2062, %v2230
      %v2315 = vadd.f32 %v2063, %v2235
      %v2316 = vadd.f32 %v2064, %v2240
      %v2317 = vadd.f32 %v2065, %v2245
      %v2318 = vadd.f32 %v2066, %v2250
      %v2319 = vadd.f32 %v2067, %v2255
      %v2320 = vadd.f32 %v2068, %v2260
      %v2321 = vadd.f32 %v2069, %v2265
      %v2322 = vadd.f32 %v2070, %v2270
      %v2323 = vadd.f32 %v2071, %v2275
      %v2324 = vadd.f32 %v2072, %v2280
      %v2325 = vadd.f32 %v2073, %v2285
      %v2326 = vadd.f32 %v2074, %v2290
      %v2327 = vadd.f32 %v2075, %v2295
      %v2328 = vadd.f32 %v2076, %v2300
      %v2329 = vadd.f32 %v2077, %v2305
      %v2330 = vadd.f32 %v2078, %v2310
      %v2331 = vld [vmem:[%s2] sm:$0x1]
      %v2333 = vlaneseq
      %v2334 = vshrl.u32 %v2333, 7
      %v2335 = vsub.s32 0, %v2334
      %v2336 = vrot.slane %v2331, %v2335
      %v2338 = vmul.f32 %v2313, %v2336
      %v2339 = vmul.f32 %v2314, %v2336
      %v2340 = vmul.f32 %v2315, %v2336
      %v2341 = vmul.f32 %v2316, %v2336
      %v2342 = vmul.f32 %v2317, %v2336
      %v2343 = vmul.f32 %v2318, %v2336
      %v2344 = vmul.f32 %v2319, %v2336
      %v2345 = vmul.f32 %v2320, %v2336
      %v2346 = vmul.f32 %v2321, %v2336
      %v2347 = vmul.f32 %v2322, %v2336
      %v2348 = vmul.f32 %v2323, %v2336
      %v2349 = vmul.f32 %v2324, %v2336
      %v2350 = vmul.f32 %v2325, %v2336
      %v2351 = vmul.f32 %v2326, %v2336
      %v2352 = vmul.f32 %v2327, %v2336
      %v2353 = vmul.f32 %v2328, %v2336
      %v2354 = vmul.f32 %v2329, %v2336
      %v2355 = vmul.f32 %v2330, %v2336
      %v2356 = vld [vmem:[%s3] sm:$0x1]
      %v2358 = vlaneseq
      %v2359 = vshrl.u32 %v2358, 7
      %v2360 = vsub.s32 0, %v2359
      %v2361 = vrot.slane %v2356, %v2360
      %v2363 = vadd.f32 %v2338, %v2361
      %v2364 = vadd.f32 %v2339, %v2361
      %v2365 = vadd.f32 %v2340, %v2361
      %v2366 = vadd.f32 %v2341, %v2361
      %v2367 = vadd.f32 %v2342, %v2361
      %v2368 = vadd.f32 %v2343, %v2361
      %v2369 = vadd.f32 %v2344, %v2361
      %v2370 = vadd.f32 %v2345, %v2361
      %v2371 = vadd.f32 %v2346, %v2361
      %v2372 = vadd.f32 %v2347, %v2361
      %v2373 = vadd.f32 %v2348, %v2361
      %v2374 = vadd.f32 %v2349, %v2361
      %v2375 = vadd.f32 %v2350, %v2361
      %v2376 = vadd.f32 %v2351, %v2361
      %v2377 = vadd.f32 %v2352, %v2361
      %v2378 = vadd.f32 %v2353, %v2361
      %v2379 = vadd.f32 %v2354, %v2361
      %v2380 = vadd.f32 %v2355, %v2361
      %vm2381 = vcmp.ge.f32.partialorder %v2363, 0.0
      %vm2382 = vcmp.ge.f32.partialorder %v2364, 0.0
      %vm2383 = vcmp.ge.f32.partialorder %v2365, 0.0
      %vm2384 = vcmp.ge.f32.partialorder %v2366, 0.0
      %vm2385 = vcmp.ge.f32.partialorder %v2367, 0.0
      %vm2386 = vcmp.ge.f32.partialorder %v2368, 0.0
      %vm2387 = vcmp.ge.f32.partialorder %v2369, 0.0
      %vm2388 = vcmp.ge.f32.partialorder %v2370, 0.0
      %vm2389 = vcmp.ge.f32.partialorder %v2371, 0.0
      %vm2390 = vcmp.ge.f32.partialorder %v2372, 0.0
      %vm2391 = vcmp.ge.f32.partialorder %v2373, 0.0
      %vm2392 = vcmp.ge.f32.partialorder %v2374, 0.0
      %vm2393 = vcmp.ge.f32.partialorder %v2375, 0.0
      %vm2394 = vcmp.ge.f32.partialorder %v2376, 0.0
      %vm2395 = vcmp.ge.f32.partialorder %v2377, 0.0
      %vm2396 = vcmp.ge.f32.partialorder %v2378, 0.0
      %vm2397 = vcmp.ge.f32.partialorder %v2379, 0.0
      %vm2398 = vcmp.ge.f32.partialorder %v2380, 0.0
      %v2399 = vmul.f32 %v2363, 0.2
      %v2400 = vmul.f32 %v2364, 0.2
      %v2401 = vmul.f32 %v2365, 0.2
      %v2402 = vmul.f32 %v2366, 0.2
      %v2403 = vmul.f32 %v2367, 0.2
      %v2404 = vmul.f32 %v2368, 0.2
      %v2405 = vmul.f32 %v2369, 0.2
      %v2406 = vmul.f32 %v2370, 0.2
      %v2407 = vmul.f32 %v2371, 0.2
      %v2408 = vmul.f32 %v2372, 0.2
      %v2409 = vmul.f32 %v2373, 0.2
      %v2410 = vmul.f32 %v2374, 0.2
      %v2411 = vmul.f32 %v2375, 0.2
      %v2412 = vmul.f32 %v2376, 0.2
      %v2413 = vmul.f32 %v2377, 0.2
      %v2414 = vmul.f32 %v2378, 0.2
      %v2415 = vmul.f32 %v2379, 0.2
      %v2416 = vmul.f32 %v2380, 0.2
      %v2417 = vsel %vm2381, %v2363, %v2399
      %v2418 = vsel %vm2382, %v2364, %v2400
      %v2419 = vsel %vm2383, %v2365, %v2401
      %v2420 = vsel %vm2384, %v2366, %v2402
      %v2421 = vsel %vm2385, %v2367, %v2403
      %v2422 = vsel %vm2386, %v2368, %v2404
      %v2423 = vsel %vm2387, %v2369, %v2405
      %v2424 = vsel %vm2388, %v2370, %v2406
      %v2425 = vsel %vm2389, %v2371, %v2407
      %v2426 = vsel %vm2390, %v2372, %v2408
      %v2427 = vsel %vm2391, %v2373, %v2409
      %v2428 = vsel %vm2392, %v2374, %v2410
      %v2429 = vsel %vm2393, %v2375, %v2411
      %v2430 = vsel %vm2394, %v2376, %v2412
      %v2431 = vsel %vm2395, %v2377, %v2413
      %v2432 = vsel %vm2396, %v2378, %v2414
      %v2433 = vsel %vm2397, %v2379, %v2415
      %v2434 = vsel %vm2398, %v2380, %v2416
      %2435 = vst [vmem:[%s219] sm:$0xff] %v2417
      %2436 = vst [vmem:[%s219 + $0x8] sm:$0xff] %v2418
      %2437 = vst [vmem:[%s219 + $0x10] sm:$0xff] %v2419
      %2438 = vst [vmem:[%s219 + $0x18] sm:$0xff] %v2420
      %2439 = vst [vmem:[%s219 + $0x20] sm:$0xff] %v2421
      %2440 = vst [vmem:[%s219 + $0x28] sm:$0xff] %v2422
      %2441 = vst [vmem:[%s219 + $0x30] sm:$0xff] %v2423
      %2442 = vst [vmem:[%s219 + $0x38] sm:$0xff] %v2424
      %2443 = vst [vmem:[%s219 + $0x40] sm:$0xff] %v2425
      %2444 = vst [vmem:[%s219 + $0x48] sm:$0xff] %v2426
      %2445 = vst [vmem:[%s219 + $0x50] sm:$0xff] %v2427
      %2446 = vst [vmem:[%s219 + $0x58] sm:$0xff] %v2428
      %2447 = vst [vmem:[%s219 + $0x60] sm:$0xff] %v2429
      %2448 = vst [vmem:[%s219 + $0x68] sm:$0xff] %v2430
      %2449 = vst [vmem:[%s219 + $0x70] sm:$0xff] %v2431
      %2450 = vst [vmem:[%s219 + $0x78] sm:$0xff] %v2432
      %2451 = vst [vmem:[%s219 + $0x80] sm:$0xff] %v2433
      %2452 = vst [vmem:[%s219 + $0x88] sm:$0xff] %v2434
      %s2453 = smul.u32 18, %s20
      %p2454 = scmp.lt.s32.totalorder %s19, 1
      %s2455 = scalar_select %p2454, %s19, 1
      %p2456 = scmp.lt.s32.totalorder %s2453, 35
      %s2457 = scalar_select %p2456, %s2453, 35
      %s2458 = smul.addr %s2455, 36
      %s2459 = sadd.s32 %s2457, %s2458
      %s2460 = smul.addr %s2459, 8
      %s2461 = scalar_lea.vmem %s4, %s2460
      // Predicated region
      $region37: #{upblock_forward.3} parent=35 // pred_check
        %p2462 = pneg %p136
      $region38: #{upblock_forward.3} parent=35 // pred_check_branch
        %2464 = sbr.rel (%p2462) target = $region40
      $region39: #{upblock_forward.3} parent=35 // pred_region
        %s2465 = smul.u32 18, %s20
      $region40: #{upblock_forward.3} parent=35 // pred_fallthru
        _
    $region36: #{upblock_forward.3} parent=5 // pred_fallthru
      _
    %p2466 = scmp.le.s32.totalorder 2, %s10
    // Predicated region
    $region41: #{upblock_forward.3} parent=5 // pred_check
      %p2467 = pneg %p2466
    $region42: #{upblock_forward.3} parent=5 // pred_check_branch
      %2469 = sbr.rel (%p2467) target = $region44
    $region43: #{upblock_forward.3} parent=5 // pred_region
      %s2470 = ssub.s32 %s10, 2
      // Predicated region
      $region45: #{upblock_forward.3} parent=43 // pred_check
        %p2471 = pneg %p142
      $region46: #{upblock_forward.3} parent=43 // pred_check_branch
        %2473 = sbr.rel (%p2471) target = $region48
      $region47: #{upblock_forward.3} parent=43 // pred_region
        %s2474 = smul.u32 18, %s22
        %p2475 = scmp.lt.s32.totalorder %s21, 1
        %s2476 = scalar_select %p2475, %s21, 1
        %p2477 = scmp.lt.s32.totalorder %s2474, 35
        %s2478 = scalar_select %p2477, %s2474, 35
        %s2479 = smul.addr %s2476, 36
        %s2480 = sadd.s32 %s2478, %s2479
        %s2481 = smul.addr %s2480, 8
        %s2482 = scalar_lea.vmem %s4, %s2481
      $region48: #{upblock_forward.3} parent=43 // pred_fallthru
        _
    $region44: #{upblock_forward.3} parent=5 // pred_fallthru
      _
  $region6: #{upblock_forward.3} parent=0 // loop_footer
    %s14 = sadd.s32 1, %s10
  $region7: #{upblock_forward.3} parent=0 // loop_footer_branch
    %9 = sbr.rel target = $region3
  $region8: #{upblock_forward.3} parent=0 // loop_exit
    _

</llo_original>
